<compile_context>
chip_gen: v7x
topology: tpu7x:2x2x1
jax: 0.10.0
libtpu: 0.0.40
codegen_flags: <defaults>
</compile_context>

<pallas_src>
import functools

import jax
import jax.numpy as jnp
from jax.experimental import pallas as pl
from jax.experimental.pallas import tpu as pltpu

_VMEM_LIMIT = 32 * 1024 * 1024  # explicit scoped-VMEM budget (safe on v5e/v6e/v7x)


# ---------------------------------------------------------------------------
# Kernel 1: conv3x3x3 (stride 1, pad 1) with fused GroupNorm statistics.
#   grid = (N, D, Kd); kd is an "arbitrary" reduction axis accumulated into an
#   f32 VMEM scratch; per-channel sum/sumsq accumulate into resident (1, C)
#   output blocks (no separate stats pass over HBM).
# ---------------------------------------------------------------------------
def _conv_gn_stats_kernel(x_ref, w_ref, y_ref, ssum_ref, ssq_ref, acc_ref,
                          *, H, W, Kh, Kw):
    d = pl.program_id(1)
    kd = pl.program_id(2)
    last_kd = pl.num_programs(2) - 1

    @pl.when((d == 0) & (kd == 0))
    def _init_stats():
        ssum_ref[...] = jnp.zeros_like(ssum_ref)
        ssq_ref[...] = jnp.zeros_like(ssq_ref)

    @pl.when(kd == 0)
    def _init_acc():
        acc_ref[...] = jnp.zeros_like(acc_ref)

    # In-kernel tap gather (no HBM im2col): accumulate the Kh*Kw in-plane taps
    # of this kd slab via bf16 MXU matmuls with f32 accumulation.
    # TODO(synk): for larger Cin, concatenate taps along the contraction dim so
    # the 256-wide MXU sees one deep GEMM instead of Kh*Kw shallow ones.
    acc = acc_ref[...]
    for kh in range(Kh):
        for kw in range(Kw):
            slab = x_ref[kh:kh + H, kw:kw + W, :].reshape(H * W, -1)
            acc = acc + jnp.dot(slab, w_ref[kh, kw],
                                preferred_element_type=jnp.float32)
    acc_ref[...] = acc

    @pl.when(kd == last_kd)
    def _finalize():
        y = acc_ref[...]
        y_ref[...] = y.reshape(H, W, -1).astype(y_ref.dtype)
        ssum_ref[...] += jnp.sum(y, axis=0, keepdims=True)
        ssq_ref[...] += jnp.sum(y * y, axis=0, keepdims=True)


def _conv3x3x3_with_stats(x_pad, w_k):
    """x_pad: (N, D+2, H+2, W+2, Cin) bf16 spatially zero-padded, channels-last.
       w_k:   (Kd, Kh, Kw, Cin, Cout) bf16.
       Returns y (N, D, H, W, Cout) f32 and per-(n, channel) sum / sumsq."""
    N, Dp, Hp, Wp, Cin = x_pad.shape
    Kd, Kh, Kw, _, Cout = w_k.shape
    D, H, W = Dp - 2, Hp - 2, Wp - 2

    kernel = functools.partial(_conv_gn_stats_kernel, H=H, W=W, Kh=Kh, Kw=Kw)
    return pl.pallas_call(
        kernel,
        out_shape=(jax.ShapeDtypeStruct((N, D, H, W, Cout), jnp.float32),
                   jax.ShapeDtypeStruct((N, 1, Cout), jnp.float32),
                   jax.ShapeDtypeStruct((N, 1, Cout), jnp.float32)),
        grid=(N, D, Kd),
        in_specs=[
            # kd-shifted input plane, read directly from the padded tensor.
            pl.BlockSpec((None, None, Hp, Wp, Cin),
                         lambda n, d, kd: (n, d + kd, 0, 0, 0)),
            pl.BlockSpec((None, Kh, Kw, Cin, Cout),
                         lambda n, d, kd: (kd, 0, 0, 0, 0)),
        ],
        out_specs=(
            pl.BlockSpec((None, None, H, W, Cout),
                         lambda n, d, kd: (n, d, 0, 0, 0)),
            pl.BlockSpec((None, 1, Cout), lambda n, d, kd: (n, 0, 0)),
            pl.BlockSpec((None, 1, Cout), lambda n, d, kd: (n, 0, 0)),
        ),
        scratch_shapes=[pltpu.VMEM((H * W, Cout), jnp.float32)],
        compiler_params=pltpu.CompilerParams(
            dimension_semantics=("parallel", "arbitrary", "arbitrary"),
            vmem_limit_bytes=_VMEM_LIMIT),
    )(x_pad, w_k)


# ---------------------------------------------------------------------------
# Kernel 2/3: fused GroupNorm normalize + affine + ReLU (+ residual add).
# ---------------------------------------------------------------------------
def _gn_relu_kernel(y_ref, scale_ref, shift_ref, o_ref):
    y = y_ref[...].astype(jnp.float32)
    z = y * scale_ref[...] + shift_ref[...]
    o_ref[...] = jnp.maximum(z, 0.0).astype(o_ref.dtype)


def _gn_res_relu_kernel(y_ref, scale_ref, shift_ref, res_ref, o_ref):
    y = y_ref[...].astype(jnp.float32)
    z = y * scale_ref[...] + shift_ref[...] + res_ref[...].astype(jnp.float32)
    o_ref[...] = jnp.maximum(z, 0.0).astype(o_ref.dtype)


def _gn_relu(y, scale, shift, out_dtype):
    N, D, H, W, C = y.shape
    blk = pl.BlockSpec((None, D, H, W, C), lambda n: (n, 0, 0, 0, 0))
    par = pl.BlockSpec((None, 1, C), lambda n: (n, 0, 0))
    return pl.pallas_call(
        _gn_relu_kernel,
        out_shape=jax.ShapeDtypeStruct((N, D, H, W, C), out_dtype),
        grid=(N,),
        in_specs=[blk, par, par],
        out_specs=pl.BlockSpec((None, D, H, W, C), lambda n: (n, 0, 0, 0, 0)),
        compiler_params=pltpu.CompilerParams(
            dimension_semantics=("parallel",), vmem_limit_bytes=_VMEM_LIMIT),
    )(y, scale, shift)


def _gn_res_relu(y, scale, shift, residual, out_dtype):
    N, D, H, W, C = y.shape
    blk = pl.BlockSpec((None, D, H, W, C), lambda n: (n, 0, 0, 0, 0))
    par = pl.BlockSpec((None, 1, C), lambda n: (n, 0, 0))
    return pl.pallas_call(
        _gn_res_relu_kernel,
        out_shape=jax.ShapeDtypeStruct((N, D, H, W, C), out_dtype),
        grid=(N,),
        in_specs=[blk, par, par, blk],
        out_specs=pl.BlockSpec((None, D, H, W, C), lambda n: (n, 0, 0, 0, 0)),
        compiler_params=pltpu.CompilerParams(
            dimension_semantics=("parallel",), vmem_limit_bytes=_VMEM_LIMIT),
    )(y, scale, shift, residual)


# ---------------------------------------------------------------------------
# Tiny per-(n, group) GroupNorm parameter math (runs on (N, C) arrays).
# ---------------------------------------------------------------------------
def _gn_affine(ssum, ssq, gamma, beta, *, num_groups, spatial, eps=1e-5):
    N, _, C = ssum.shape
    Cg = C // num_groups
    cnt = jnp.float32(Cg * spatial)
    gsum = ssum.reshape(N, num_groups, Cg).sum(axis=-1)
    gsq = ssq.reshape(N, num_groups, Cg).sum(axis=-1)
    mean = gsum / cnt
    var = jnp.maximum(gsq / cnt - mean * mean, 0.0)   # clamp (review concern)
    istd = jax.lax.rsqrt(var + eps)
    mean_c = jnp.repeat(mean, Cg, axis=1)             # (N, C)
    istd_c = jnp.repeat(istd, Cg, axis=1)
    scale = istd_c * gamma[None, :]
    shift = beta[None, :] - mean_c * scale
    return (scale.reshape(N, 1, C).astype(jnp.float32),
            shift.reshape(N, 1, C).astype(jnp.float32))


# ---------------------------------------------------------------------------
# Public forward: ResBlockGN (stride=1, downsample=None).
# ---------------------------------------------------------------------------
def res_block_gn_forward(x, w1, w2, gamma1, beta1, gamma2, beta2,
                         *, num_groups=4, eps=1e-5, stride=1):
    N, C, D, H, W = x.shape
    planes = w1.shape[0]
    if stride != 1 or planes != C:
        # TODO(synk): stride > 1 / downsample path not implemented (the default
        # ResBlockGN config is stride=1, downsample=None).
        raise NotImplementedError("stride != 1 / downsample not supported")
    assert planes % num_groups == 0

    pad3 = ((0, 0), (1, 1), (1, 1), (1, 1), (0, 0))
    spatial = D * H * W

    # NCDHW -> channels-last once; the residual reuses this copy.
    x_cl = jnp.transpose(x, (0, 2, 3, 4, 1)).astype(jnp.float32)

    # --- conv1 + fused GN1 statistics ---------------------------------------
    x_pad = jnp.pad(x_cl, pad3).astype(jnp.bfloat16)
    w1_k = jnp.transpose(w1, (2, 3, 4, 1, 0)).astype(jnp.bfloat16)
    y1, s1, q1 = _conv3x3x3_with_stats(x_pad, w1_k)
    scale1, shift1 = _gn_affine(s1, q1, gamma1, beta1,
                                num_groups=num_groups, spatial=spatial, eps=eps)

    # --- GN1 normalize + ReLU (bf16 output feeds conv2's MXU directly) ------
    h1 = _gn_relu(y1, scale1, shift1, jnp.bfloat16)

    # --- conv2 + fused GN2 statistics ---------------------------------------
    h1_pad = jnp.pad(h1, pad3)
    w2_k = jnp.transpose(w2, (2, 3, 4, 1, 0)).astype(jnp.bfloat16)
    y2, s2, q2 = _conv3x3x3_with_stats(h1_pad, w2_k)
    scale2, shift2 = _gn_affine(s2, q2, gamma2, beta2,
                                num_groups=num_groups, spatial=spatial, eps=eps)

    # --- GN2 normalize + residual add + ReLU ---------------------------------
    out_cl = _gn_res_relu(y2, scale2, shift2, x_cl, jnp.float32)

    # TODO(synk): fold this NCDHW write-back into the last kernel's out_spec
    # (in-kernel relayout) for production sizes; here it is a tiny XLA pass.
    return jnp.transpose(out_cl, (0, 4, 1, 2, 3))


# ---------------------------------------------------------------------------
# Pure-JAX reference (same bf16-operand / f32-accumulate precision policy).
# ---------------------------------------------------------------------------
def _ref_forward(x, w1, w2, gamma1, beta1, gamma2, beta2,
                 *, num_groups=4, eps=1e-5):
    def conv(inp, w):
        return jax.lax.conv_general_dilated(
            inp.astype(jnp.bfloat16), w.astype(jnp.bfloat16),
            window_strides=(1, 1, 1), padding=((1, 1),) * 3,
            dimension_numbers=('NCDHW', 'OIDHW', 'NCDHW'),
            preferred_element_type=jnp.float32)

    def gn(y, g, b):
        n, c = y.shape[:2]
        yg = y.reshape(n, num_groups, c // num_groups, *y.shape[2:])
        mean = yg.mean(axis=(2, 3, 4, 5), keepdims=True)
        var = ((yg - mean) ** 2).mean(axis=(2, 3, 4, 5), keepdims=True)
        yn = ((yg - mean) * jax.lax.rsqrt(var + eps)).reshape(y.shape)
        return yn * g.reshape(1, c, 1, 1, 1) + b.reshape(1, c, 1, 1, 1)

    h = jnp.maximum(gn(conv(x, w1), gamma1, beta1), 0.0)
    h = h.astype(jnp.bfloat16).astype(jnp.float32)   # kernel stores h1 in bf16
    out = gn(conv(h, w2), gamma2, beta2) + x
    return jnp.maximum(out, 0.0)


if __name__ == "__main__":
    key = jax.random.PRNGKey(0)
    k = jax.random.split(key, 7)

    # Small shapes consistent with the module: inplanes = planes = 8 (GroupNorm
    # with 4 groups -> 2 channels/group), batch 2, 8x16x16 volume, stride 1.
    N, C, D, H, W = 2, 8, 8, 16, 16
    x = jax.random.normal(k[0], (N, C, D, H, W), jnp.float32)
    w1 = jax.random.normal(k[1], (C, C, 3, 3, 3), jnp.float32) * 0.1
    w2 = jax.random.normal(k[2], (C, C, 3, 3, 3), jnp.float32) * 0.1
    gamma1 = 1.0 + 0.1 * jax.random.normal(k[3], (C,), jnp.float32)
    beta1 = 0.1 * jax.random.normal(k[4], (C,), jnp.float32)
    gamma2 = 1.0 + 0.1 * jax.random.normal(k[5], (C,), jnp.float32)
    beta2 = 0.1 * jax.random.normal(k[6], (C,), jnp.float32)

    out = res_block_gn_forward(x, w1, w2, gamma1, beta1, gamma2, beta2)
    out = jax.block_until_ready(out)
    assert out.shape == (N, C, D, H, W), out.shape

    ref = _ref_forward(x, w1, w2, gamma1, beta1, gamma2, beta2)
    max_err = float(jnp.max(jnp.abs(out - ref)))
    assert max_err < 1e-2, f"mismatch vs reference: {max_err}"

    print("KERNEL_OK")
</pallas_src>

<mosaic_0001>
module attributes {stable_mosaic.version = 11 : i64} {
  func.func @_conv_gn_stats_kernel(%arg0: i32, %arg1: i32, %arg2: i32, %arg3: memref<1x1x18x18x8xbf16, #tpu.memory_space<vmem>>, %arg4: memref<1x3x3x8x8xbf16, #tpu.memory_space<vmem>>, %arg5: memref<1x1x16x16x8xf32, #tpu.memory_space<vmem>>, %arg6: memref<1x1x8xf32, #tpu.memory_space<vmem>>, %arg7: memref<1x1x8xf32, #tpu.memory_space<vmem>>, %arg8: memref<256x8xf32, #tpu.memory_space<vmem>>) attributes {dimension_semantics = [#tpu.dimension_semantics<parallel>, #tpu.dimension_semantics<arbitrary>, #tpu.dimension_semantics<arbitrary>], iteration_bounds = array<i64: 2, 8, 3>, scalar_prefetch = 0 : i64, scratch_operands = 1 : i64, tpu.core_type = #tpu.core_type<tc>, window_params = [{transform_indices = @transform_0, window_bounds = array<i64: 1, 1, 18, 18, 8>}, {transform_indices = @transform_1, window_bounds = array<i64: 1, 3, 3, 8, 8>}, {transform_indices = @transform_2, window_bounds = array<i64: 1, 1, 16, 16, 8>}, {transform_indices = @transform_3, window_bounds = array<i64: 1, 1, 8>}, {transform_indices = @transform_4, window_bounds = array<i64: 1, 1, 8>}]} {
    %c0_i32 = arith.constant 0 : i32
    %0 = arith.cmpi eq, %arg1, %c0_i32 : i32
    %c0_i32_0 = arith.constant 0 : i32
    %1 = arith.cmpi eq, %arg2, %c0_i32_0 : i32
    %2 = arith.andi %0, %1 : i1
    %3 = arith.extui %2 : i1 to i32
    %c0_i32_1 = arith.constant 0 : i32
    %4 = arith.cmpi ne, %3, %c0_i32_1 : i32
    scf.if %4 {
      %cst_104 = arith.constant 0.000000e+00 : f32
      %76 = vector.broadcast %cst_104 : f32 to vector<1x8xf32>
      %c0_105 = arith.constant 0 : index
      %c0_106 = arith.constant 0 : index
      %c0_107 = arith.constant 0 : index
      %77 = vector.load %arg6[%c0_105, %c0_106, %c0_107] : memref<1x1x8xf32, #tpu.memory_space<vmem>>, vector<1x1x8xf32>
      %78 = vector.shape_cast %77 : vector<1x1x8xf32> to vector<1x8xf32>
      %79 = vector.shape_cast %76 : vector<1x8xf32> to vector<1x1x8xf32>
      tpu.vector_store %arg6[%c0_105, %c0_106, %c0_107], %79 {strides = array<i32>} : memref<1x1x8xf32, #tpu.memory_space<vmem>>, vector<1x1x8xf32>,
      %cst_108 = arith.constant 0.000000e+00 : f32
      %80 = vector.broadcast %cst_108 : f32 to vector<1x8xf32>
      %c0_109 = arith.constant 0 : index
      %c0_110 = arith.constant 0 : index
      %c0_111 = arith.constant 0 : index
      %81 = vector.load %arg7[%c0_109, %c0_110, %c0_111] : memref<1x1x8xf32, #tpu.memory_space<vmem>>, vector<1x1x8xf32>
      %82 = vector.shape_cast %81 : vector<1x1x8xf32> to vector<1x8xf32>
      %83 = vector.shape_cast %80 : vector<1x8xf32> to vector<1x1x8xf32>
      tpu.vector_store %arg7[%c0_109, %c0_110, %c0_111], %83 {strides = array<i32>} : memref<1x1x8xf32, #tpu.memory_space<vmem>>, vector<1x1x8xf32>,
    } else {
    }
    %c0_i32_2 = arith.constant 0 : i32
    %5 = arith.cmpi eq, %arg2, %c0_i32_2 : i32
    %6 = arith.extui %5 : i1 to i32
    %c0_i32_3 = arith.constant 0 : i32
    %7 = arith.cmpi ne, %6, %c0_i32_3 : i32
    scf.if %7 {
      %cst_104 = arith.constant 0.000000e+00 : f32
      %76 = vector.broadcast %cst_104 : f32 to vector<256x8xf32>
      %c0_105 = arith.constant 0 : index
      %c0_106 = arith.constant 0 : index
      %77 = vector.load %arg8[%c0_105, %c0_106] : memref<256x8xf32, #tpu.memory_space<vmem>>, vector<256x8xf32>
      tpu.vector_store %arg8[%c0_105, %c0_106], %76 {strides = array<i32>} : memref<256x8xf32, #tpu.memory_space<vmem>>, vector<256x8xf32>,
    } else {
    }
    %c0 = arith.constant 0 : index
    %c0_4 = arith.constant 0 : index
    %8 = vector.load %arg8[%c0, %c0_4] : memref<256x8xf32, #tpu.memory_space<vmem>>, vector<256x8xf32>
    %c0_5 = arith.constant 0 : index
    %c0_6 = arith.constant 0 : index
    %c0_7 = arith.constant 0 : index
    %c0_8 = arith.constant 0 : index
    %c0_9 = arith.constant 0 : index
    %9 = vector.load %arg3[%c0_5, %c0_6, %c0_7, %c0_8, %c0_9] : memref<1x1x18x18x8xbf16, #tpu.memory_space<vmem>>, vector<1x1x16x16x8xbf16>
    %10 = vector.shape_cast %9 : vector<1x1x16x16x8xbf16> to vector<16x16x8xbf16>
    %11 = vector.shape_cast %10 : vector<16x16x8xbf16> to vector<256x8xbf16>
    %c0_10 = arith.constant 0 : index
    %c0_11 = arith.constant 0 : index
    %c0_12 = arith.constant 0 : index
    %c0_13 = arith.constant 0 : index
    %c0_14 = arith.constant 0 : index
    %12 = vector.load %arg4[%c0_10, %c0_11, %c0_12, %c0_13, %c0_14] : memref<1x3x3x8x8xbf16, #tpu.memory_space<vmem>>, vector<1x1x1x8x8xbf16>
    %13 = vector.shape_cast %12 : vector<1x1x1x8x8xbf16> to vector<8x8xbf16>
    %cst = arith.constant dense<0.000000e+00> : vector<256x8xf32>
    %14 = tpu.matmul %11, %13, %cst {dimension_numbers = #tpu.dot_dimension_numbers<[1], [0], [0], [1], [0, 0, 1, 1], [], []>} : vector<256x8xbf16>, vector<8x8xbf16>, vector<256x8xf32> -> vector<256x8xf32>
    %15 = arith.addf %8, %14 : vector<256x8xf32>
    %c0_15 = arith.constant 0 : index
    %c0_16 = arith.constant 0 : index
    %c0_17 = arith.constant 0 : index
    %c1 = arith.constant 1 : index
    %c0_18 = arith.constant 0 : index
    %16 = vector.load %arg3[%c0_15, %c0_16, %c0_17, %c1, %c0_18] : memref<1x1x18x18x8xbf16, #tpu.memory_space<vmem>>, vector<1x1x16x16x8xbf16>
    %17 = vector.shape_cast %16 : vector<1x1x16x16x8xbf16> to vector<16x16x8xbf16>
    %18 = vector.shape_cast %17 : vector<16x16x8xbf16> to vector<256x8xbf16>
    %c0_19 = arith.constant 0 : index
    %c0_20 = arith.constant 0 : index
    %c1_21 = arith.constant 1 : index
    %c0_22 = arith.constant 0 : index
    %c0_23 = arith.constant 0 : index
    %19 = vector.load %arg4[%c0_19, %c0_20, %c1_21, %c0_22, %c0_23] : memref<1x3x3x8x8xbf16, #tpu.memory_space<vmem>>, vector<1x1x1x8x8xbf16>
    %20 = vector.shape_cast %19 : vector<1x1x1x8x8xbf16> to vector<8x8xbf16>
    %cst_24 = arith.constant dense<0.000000e+00> : vector<256x8xf32>
    %21 = tpu.matmul %18, %20, %cst_24 {dimension_numbers = #tpu.dot_dimension_numbers<[1], [0], [0], [1], [0, 0, 1, 1], [], []>} : vector<256x8xbf16>, vector<8x8xbf16>, vector<256x8xf32> -> vector<256x8xf32>
    %22 = arith.addf %15, %21 : vector<256x8xf32>
    %c0_25 = arith.constant 0 : index
    %c0_26 = arith.constant 0 : index
    %c0_27 = arith.constant 0 : index
    %c2 = arith.constant 2 : index
    %c0_28 = arith.constant 0 : index
    %23 = vector.load %arg3[%c0_25, %c0_26, %c0_27, %c2, %c0_28] : memref<1x1x18x18x8xbf16, #tpu.memory_space<vmem>>, vector<1x1x16x16x8xbf16>
    %24 = vector.shape_cast %23 : vector<1x1x16x16x8xbf16> to vector<16x16x8xbf16>
    %25 = vector.shape_cast %24 : vector<16x16x8xbf16> to vector<256x8xbf16>
    %c0_29 = arith.constant 0 : index
    %c0_30 = arith.constant 0 : index
    %c2_31 = arith.constant 2 : index
    %c0_32 = arith.constant 0 : index
    %c0_33 = arith.constant 0 : index
    %26 = vector.load %arg4[%c0_29, %c0_30, %c2_31, %c0_32, %c0_33] : memref<1x3x3x8x8xbf16, #tpu.memory_space<vmem>>, vector<1x1x1x8x8xbf16>
    %27 = vector.shape_cast %26 : vector<1x1x1x8x8xbf16> to vector<8x8xbf16>
    %cst_34 = arith.constant dense<0.000000e+00> : vector<256x8xf32>
    %28 = tpu.matmul %25, %27, %cst_34 {dimension_numbers = #tpu.dot_dimension_numbers<[1], [0], [0], [1], [0, 0, 1, 1], [], []>} : vector<256x8xbf16>, vector<8x8xbf16>, vector<256x8xf32> -> vector<256x8xf32>
    %29 = arith.addf %22, %28 : vector<256x8xf32>
    %c0_35 = arith.constant 0 : index
    %c0_36 = arith.constant 0 : index
    %c1_37 = arith.constant 1 : index
    %c0_38 = arith.constant 0 : index
    %c0_39 = arith.constant 0 : index
    %30 = vector.load %arg3[%c0_35, %c0_36, %c1_37, %c0_38, %c0_39] : memref<1x1x18x18x8xbf16, #tpu.memory_space<vmem>>, vector<1x1x16x16x8xbf16>
    %31 = vector.shape_cast %30 : vector<1x1x16x16x8xbf16> to vector<16x16x8xbf16>
    %32 = vector.shape_cast %31 : vector<16x16x8xbf16> to vector<256x8xbf16>
    %c0_40 = arith.constant 0 : index
    %c1_41 = arith.constant 1 : index
    %c0_42 = arith.constant 0 : index
    %c0_43 = arith.constant 0 : index
    %c0_44 = arith.constant 0 : index
    %33 = vector.load %arg4[%c0_40, %c1_41, %c0_42, %c0_43, %c0_44] : memref<1x3x3x8x8xbf16, #tpu.memory_space<vmem>>, vector<1x1x1x8x8xbf16>
    %34 = vector.shape_cast %33 : vector<1x1x1x8x8xbf16> to vector<8x8xbf16>
    %cst_45 = arith.constant dense<0.000000e+00> : vector<256x8xf32>
    %35 = tpu.matmul %32, %34, %cst_45 {dimension_numbers = #tpu.dot_dimension_numbers<[1], [0], [0], [1], [0, 0, 1, 1], [], []>} : vector<256x8xbf16>, vector<8x8xbf16>, vector<256x8xf32> -> vector<256x8xf32>
    %36 = arith.addf %29, %35 : vector<256x8xf32>
    %c0_46 = arith.constant 0 : index
    %c0_47 = arith.constant 0 : index
    %c1_48 = arith.constant 1 : index
    %c1_49 = arith.constant 1 : index
    %c0_50 = arith.constant 0 : index
    %37 = vector.load %arg3[%c0_46, %c0_47, %c1_48, %c1_49, %c0_50] : memref<1x1x18x18x8xbf16, #tpu.memory_space<vmem>>, vector<1x1x16x16x8xbf16>
    %38 = vector.shape_cast %37 : vector<1x1x16x16x8xbf16> to vector<16x16x8xbf16>
    %39 = vector.shape_cast %38 : vector<16x16x8xbf16> to vector<256x8xbf16>
    %c0_51 = arith.constant 0 : index
    %c1_52 = arith.constant 1 : index
    %c1_53 = arith.constant 1 : index
    %c0_54 = arith.constant 0 : index
    %c0_55 = arith.constant 0 : index
    %40 = vector.load %arg4[%c0_51, %c1_52, %c1_53, %c0_54, %c0_55] : memref<1x3x3x8x8xbf16, #tpu.memory_space<vmem>>, vector<1x1x1x8x8xbf16>
    %41 = vector.shape_cast %40 : vector<1x1x1x8x8xbf16> to vector<8x8xbf16>
    %cst_56 = arith.constant dense<0.000000e+00> : vector<256x8xf32>
    %42 = tpu.matmul %39, %41, %cst_56 {dimension_numbers = #tpu.dot_dimension_numbers<[1], [0], [0], [1], [0, 0, 1, 1], [], []>} : vector<256x8xbf16>, vector<8x8xbf16>, vector<256x8xf32> -> vector<256x8xf32>
    %43 = arith.addf %36, %42 : vector<256x8xf32>
    %c0_57 = arith.constant 0 : index
    %c0_58 = arith.constant 0 : index
    %c1_59 = arith.constant 1 : index
    %c2_60 = arith.constant 2 : index
    %c0_61 = arith.constant 0 : index
    %44 = vector.load %arg3[%c0_57, %c0_58, %c1_59, %c2_60, %c0_61] : memref<1x1x18x18x8xbf16, #tpu.memory_space<vmem>>, vector<1x1x16x16x8xbf16>
    %45 = vector.shape_cast %44 : vector<1x1x16x16x8xbf16> to vector<16x16x8xbf16>
    %46 = vector.shape_cast %45 : vector<16x16x8xbf16> to vector<256x8xbf16>
    %c0_62 = arith.constant 0 : index
    %c1_63 = arith.constant 1 : index
    %c2_64 = arith.constant 2 : index
    %c0_65 = arith.constant 0 : index
    %c0_66 = arith.constant 0 : index
    %47 = vector.load %arg4[%c0_62, %c1_63, %c2_64, %c0_65, %c0_66] : memref<1x3x3x8x8xbf16, #tpu.memory_space<vmem>>, vector<1x1x1x8x8xbf16>
    %48 = vector.shape_cast %47 : vector<1x1x1x8x8xbf16> to vector<8x8xbf16>
    %cst_67 = arith.constant dense<0.000000e+00> : vector<256x8xf32>
    %49 = tpu.matmul %46, %48, %cst_67 {dimension_numbers = #tpu.dot_dimension_numbers<[1], [0], [0], [1], [0, 0, 1, 1], [], []>} : vector<256x8xbf16>, vector<8x8xbf16>, vector<256x8xf32> -> vector<256x8xf32>
    %50 = arith.addf %43, %49 : vector<256x8xf32>
    %c0_68 = arith.constant 0 : index
    %c0_69 = arith.constant 0 : index
    %c2_70 = arith.constant 2 : index
    %c0_71 = arith.constant 0 : index
    %c0_72 = arith.constant 0 : index
    %51 = vector.load %arg3[%c0_68, %c0_69, %c2_70, %c0_71, %c0_72] : memref<1x1x18x18x8xbf16, #tpu.memory_space<vmem>>, vector<1x1x16x16x8xbf16>
    %52 = vector.shape_cast %51 : vector<1x1x16x16x8xbf16> to vector<16x16x8xbf16>
    %53 = vector.shape_cast %52 : vector<16x16x8xbf16> to vector<256x8xbf16>
    %c0_73 = arith.constant 0 : index
    %c2_74 = arith.constant 2 : index
    %c0_75 = arith.constant 0 : index
    %c0_76 = arith.constant 0 : index
    %c0_77 = arith.constant 0 : index
    %54 = vector.load %arg4[%c0_73, %c2_74, %c0_75, %c0_76, %c0_77] : memref<1x3x3x8x8xbf16, #tpu.memory_space<vmem>>, vector<1x1x1x8x8xbf16>
    %55 = vector.shape_cast %54 : vector<1x1x1x8x8xbf16> to vector<8x8xbf16>
    %cst_78 = arith.constant dense<0.000000e+00> : vector<256x8xf32>
    %56 = tpu.matmul %53, %55, %cst_78 {dimension_numbers = #tpu.dot_dimension_numbers<[1], [0], [0], [1], [0, 0, 1, 1], [], []>} : vector<256x8xbf16>, vector<8x8xbf16>, vector<256x8xf32> -> vector<256x8xf32>
    %57 = arith.addf %50, %56 : vector<256x8xf32>
    %c0_79 = arith.constant 0 : index
    %c0_80 = arith.constant 0 : index
    %c2_81 = arith.constant 2 : index
    %c1_82 = arith.constant 1 : index
    %c0_83 = arith.constant 0 : index
    %58 = vector.load %arg3[%c0_79, %c0_80, %c2_81, %c1_82, %c0_83] : memref<1x1x18x18x8xbf16, #tpu.memory_space<vmem>>, vector<1x1x16x16x8xbf16>
    %59 = vector.shape_cast %58 : vector<1x1x16x16x8xbf16> to vector<16x16x8xbf16>
    %60 = vector.shape_cast %59 : vector<16x16x8xbf16> to vector<256x8xbf16>
    %c0_84 = arith.constant 0 : index
    %c2_85 = arith.constant 2 : index
    %c1_86 = arith.constant 1 : index
    %c0_87 = arith.constant 0 : index
    %c0_88 = arith.constant 0 : index
    %61 = vector.load %arg4[%c0_84, %c2_85, %c1_86, %c0_87, %c0_88] : memref<1x3x3x8x8xbf16, #tpu.memory_space<vmem>>, vector<1x1x1x8x8xbf16>
    %62 = vector.shape_cast %61 : vector<1x1x1x8x8xbf16> to vector<8x8xbf16>
    %cst_89 = arith.constant dense<0.000000e+00> : vector<256x8xf32>
    %63 = tpu.matmul %60, %62, %cst_89 {dimension_numbers = #tpu.dot_dimension_numbers<[1], [0], [0], [1], [0, 0, 1, 1], [], []>} : vector<256x8xbf16>, vector<8x8xbf16>, vector<256x8xf32> -> vector<256x8xf32>
    %64 = arith.addf %57, %63 : vector<256x8xf32>
    %c0_90 = arith.constant 0 : index
    %c0_91 = arith.constant 0 : index
    %c2_92 = arith.constant 2 : index
    %c2_93 = arith.constant 2 : index
    %c0_94 = arith.constant 0 : index
    %65 = vector.load %arg3[%c0_90, %c0_91, %c2_92, %c2_93, %c0_94] : memref<1x1x18x18x8xbf16, #tpu.memory_space<vmem>>, vector<1x1x16x16x8xbf16>
    %66 = vector.shape_cast %65 : vector<1x1x16x16x8xbf16> to vector<16x16x8xbf16>
    %67 = vector.shape_cast %66 : vector<16x16x8xbf16> to vector<256x8xbf16>
    %c0_95 = arith.constant 0 : index
    %c2_96 = arith.constant 2 : index
    %c2_97 = arith.constant 2 : index
    %c0_98 = arith.constant 0 : index
    %c0_99 = arith.constant 0 : index
    %68 = vector.load %arg4[%c0_95, %c2_96, %c2_97, %c0_98, %c0_99] : memref<1x3x3x8x8xbf16, #tpu.memory_space<vmem>>, vector<1x1x1x8x8xbf16>
    %69 = vector.shape_cast %68 : vector<1x1x1x8x8xbf16> to vector<8x8xbf16>
    %cst_100 = arith.constant dense<0.000000e+00> : vector<256x8xf32>
    %70 = tpu.matmul %67, %69, %cst_100 {dimension_numbers = #tpu.dot_dimension_numbers<[1], [0], [0], [1], [0, 0, 1, 1], [], []>} : vector<256x8xbf16>, vector<8x8xbf16>, vector<256x8xf32> -> vector<256x8xf32>
    %71 = arith.addf %64, %70 : vector<256x8xf32>
    %c0_101 = arith.constant 0 : index
    %c0_102 = arith.constant 0 : index
    %72 = vector.load %arg8[%c0_101, %c0_102] : memref<256x8xf32, #tpu.memory_space<vmem>>, vector<256x8xf32>
    tpu.vector_store %arg8[%c0_101, %c0_102], %71 {strides = array<i32>} : memref<256x8xf32, #tpu.memory_space<vmem>>, vector<256x8xf32>,
    %c2_i32 = arith.constant 2 : i32
    %73 = arith.cmpi eq, %arg2, %c2_i32 : i32
    %74 = arith.extui %73 : i1 to i32
    %c0_i32_103 = arith.constant 0 : i32
    %75 = arith.cmpi ne, %74, %c0_i32_103 : i32
    scf.if %75 {
      %c0_104 = arith.constant 0 : index
      %c0_105 = arith.constant 0 : index
      %76 = vector.load %arg8[%c0_104, %c0_105] : memref<256x8xf32, #tpu.memory_space<vmem>>, vector<256x8xf32>
      %77 = vector.shape_cast %76 : vector<256x8xf32> to vector<16x16x8xf32>
      %c0_106 = arith.constant 0 : index
      %c0_107 = arith.constant 0 : index
      %c0_108 = arith.constant 0 : index
      %c0_109 = arith.constant 0 : index
      %c0_110 = arith.constant 0 : index
      %78 = vector.load %arg5[%c0_106, %c0_107, %c0_108, %c0_109, %c0_110] : memref<1x1x16x16x8xf32, #tpu.memory_space<vmem>>, vector<1x1x16x16x8xf32>
      %79 = vector.shape_cast %78 : vector<1x1x16x16x8xf32> to vector<16x16x8xf32>
      %80 = vector.shape_cast %77 : vector<16x16x8xf32> to vector<1x1x16x16x8xf32>
      tpu.vector_store %arg5[%c0_106, %c0_107, %c0_108, %c0_109, %c0_110], %80 {strides = array<i32>} : memref<1x1x16x16x8xf32, #tpu.memory_space<vmem>>, vector<1x1x16x16x8xf32>,
      %c0_111 = arith.constant 0 : index
      %c0_112 = arith.constant 0 : index
      %c0_113 = arith.constant 0 : index
      %81 = vector.load %arg6[%c0_111, %c0_112, %c0_113] : memref<1x1x8xf32, #tpu.memory_space<vmem>>, vector<1x1x8xf32>
      %82 = vector.shape_cast %81 : vector<1x1x8xf32> to vector<1x8xf32>
      %cst_114 = arith.constant dense<0.000000e+00> : vector<8xf32>
      %83 = vector.multi_reduction <add>, %76, %cst_114 [0] : vector<256x8xf32> to vector<8xf32>
      %84 = vector.shape_cast %83 : vector<8xf32> to vector<1x8xf32>
      %85 = arith.addf %82, %84 : vector<1x8xf32>
      %c0_115 = arith.constant 0 : index
      %c0_116 = arith.constant 0 : index
      %c0_117 = arith.constant 0 : index
      %86 = vector.load %arg6[%c0_115, %c0_116, %c0_117] : memref<1x1x8xf32, #tpu.memory_space<vmem>>, vector<1x1x8xf32>
      %87 = vector.shape_cast %86 : vector<1x1x8xf32> to vector<1x8xf32>
      %88 = vector.shape_cast %85 : vector<1x8xf32> to vector<1x1x8xf32>
      tpu.vector_store %arg6[%c0_115, %c0_116, %c0_117], %88 {strides = array<i32>} : memref<1x1x8xf32, #tpu.memory_space<vmem>>, vector<1x1x8xf32>,
      %c0_118 = arith.constant 0 : index
      %c0_119 = arith.constant 0 : index
      %c0_120 = arith.constant 0 : index
      %89 = vector.load %arg7[%c0_118, %c0_119, %c0_120] : memref<1x1x8xf32, #tpu.memory_space<vmem>>, vector<1x1x8xf32>
      %90 = vector.shape_cast %89 : vector<1x1x8xf32> to vector<1x8xf32>
      %91 = arith.mulf %76, %76 : vector<256x8xf32>
      %cst_121 = arith.constant dense<0.000000e+00> : vector<8xf32>
      %92 = vector.multi_reduction <add>, %91, %cst_121 [0] : vector<256x8xf32> to vector<8xf32>
      %93 = vector.shape_cast %92 : vector<8xf32> to vector<1x8xf32>
      %94 = arith.addf %90, %93 : vector<1x8xf32>
      %c0_122 = arith.constant 0 : index
      %c0_123 = arith.constant 0 : index
      %c0_124 = arith.constant 0 : index
      %95 = vector.load %arg7[%c0_122, %c0_123, %c0_124] : memref<1x1x8xf32, #tpu.memory_space<vmem>>, vector<1x1x8xf32>
      %96 = vector.shape_cast %95 : vector<1x1x8xf32> to vector<1x8xf32>
      %97 = vector.shape_cast %94 : vector<1x8xf32> to vector<1x1x8xf32>
      tpu.vector_store %arg7[%c0_122, %c0_123, %c0_124], %97 {strides = array<i32>} : memref<1x1x8xf32, #tpu.memory_space<vmem>>, vector<1x1x8xf32>,
    } else {
    }
    return
  }
  func.func @transform_0(%arg0: i32, %arg1: i32, %arg2: i32) -> (i32, i32, i32, i32, i32) {
    %0 = arith.addi %arg1, %arg2 : i32
    %c0_i32 = arith.constant 0 : i32
    %c0_i32_0 = arith.constant 0 : i32
    %c0_i32_1 = arith.constant 0 : i32
    %c0_i32_2 = arith.constant 0 : i32
    return %arg0, %0, %c0_i32, %c0_i32_0, %c0_i32_1 : i32, i32, i32, i32, i32
  }
  func.func @transform_1(%arg0: i32, %arg1: i32, %arg2: i32) -> (i32, i32, i32, i32, i32) {
    %c0_i32 = arith.constant 0 : i32
    %c0_i32_0 = arith.constant 0 : i32
    %c0_i32_1 = arith.constant 0 : i32
    %c0_i32_2 = arith.constant 0 : i32
    %c0_i32_3 = arith.constant 0 : i32
    return %arg2, %c0_i32, %c0_i32_0, %c0_i32_1, %c0_i32_2 : i32, i32, i32, i32, i32
  }
  func.func @transform_2(%arg0: i32, %arg1: i32, %arg2: i32) -> (i32, i32, i32, i32, i32) {
    %c0_i32 = arith.constant 0 : i32
    %c0_i32_0 = arith.constant 0 : i32
    %c0_i32_1 = arith.constant 0 : i32
    %c0_i32_2 = arith.constant 0 : i32
    return %arg0, %arg1, %c0_i32, %c0_i32_0, %c0_i32_1 : i32, i32, i32, i32, i32
  }
  func.func @transform_3(%arg0: i32, %arg1: i32, %arg2: i32) -> (i32, i32, i32) {
    %c0_i32 = arith.constant 0 : i32
    %c0_i32_0 = arith.constant 0 : i32
    %c0_i32_1 = arith.constant 0 : i32
    return %arg0, %c0_i32, %c0_i32_0 : i32, i32, i32
  }
  func.func @transform_4(%arg0: i32, %arg1: i32, %arg2: i32) -> (i32, i32, i32) {
    %c0_i32 = arith.constant 0 : i32
    %c0_i32_0 = arith.constant 0 : i32
    %c0_i32_1 = arith.constant 0 : i32
    return %arg0, %c0_i32, %c0_i32_0 : i32, i32, i32
  }
}

</mosaic_0001>

<llo_original>
// kernel: tpu_custom_call.1
$region0: #{tpu_custom_call.1}
  #allocation0 [shape = 'u32[]', space=smem, size = 0x4, offset = 0x4, fixed_abs, tag = 'smem constant byte address 0x4 - core index']
  #allocation1 [shape = 'u32[144,128]{1,0:T(1,128)}', space=vmem, size = 0x12000, scoped, tag = 'internal scratch']
  #allocation2 [shape = 'f32[256,8]{1,0:T(8,128)}', space=vmem, size = 0x20000, scoped, tag = 'scratch operand']
  %s0 = inlined_call_operand.vmem [shape: bf16[2,10,18,18,8], index: 0, kind: input, shape index: {}]
  %s1 = inlined_call_operand.vmem [shape: bf16[3,3,3,8,8], index: 1, kind: input, shape index: {}]
  %s2 = inlined_call_operand.vmem [shape: f32[2,8,16,16,8], index: 2, kind: output, shape index: {0}]
  %s3 = inlined_call_operand.hbm [shape: f32[2,1,8], index: 3, kind: output, shape index: {1}]
  %s4 = inlined_call_operand.hbm [shape: f32[2,1,8], index: 4, kind: output, shape index: {2}]
  %5 = xla_tuple %s2, %s3, %s4
  %s6 = sld [smem:[#allocation0]]
  $region69: #{tpu_custom_call.1} parent=0
    _
  %s8 = ssub.s32 1, %s6
  %s9 = scalar_select 0, %s8, %s6
  $region1: #{tpu_custom_call.1} parent=0
    #allocation3 [shape = 'u8[1024]{0}', space=vmem, size = 0x400, scoped, tag = 'output window, operand 1']
    #allocation4 [shape = 's32[2]{0}', space=sflag, size = 0x8, scoped, tag = 'scoped memory for tpu_custom_call.1']
    #allocation5 [shape = 'u8[1024]{0}', space=vmem, size = 0x400, scoped, tag = 'output window, operand 2']
    #allocation6 [shape = 's32[2]{0}', space=sflag, size = 0x8, scoped, tag = 'scoped memory for tpu_custom_call.1']
    %10 = vsyncpa [#allocation4], 0
    %s11 = scalar_lea.sflag [#allocation4], 1
    %12 = vsyncpa %s11, 0
    %13 = vsyncpa [#allocation6], 0
    %s14 = scalar_lea.sflag [#allocation6], 1
    %15 = vsyncpa %s14, 0
    loop: start=0, step=1, limit=50
    $region2: #{tpu_custom_call.1} parent=1 // loop_pre_header
      _
    $region3: #{tpu_custom_call.1} parent=1 // loop_header
      %s17 = sphi 0, %s21
      %p18 = scmp.ge.s32.totalorder %s17, 50
      %s24 = sphi 0, %s43
      %s25 = sphi 0, %s39
      %s26 = sphi 0, %s35
      %s27 = sphi 0, %s24
      %s28 = sphi 0, %s25
      %s29 = sphi 0, %s26
      %s30 = sphi 0, %s27
      %s31 = sphi 0, %s28
      %s32 = sphi 0, %s29
      %s50 = sphi 0, %s52
      %s53 = sphi 0, %s50
      %s54 = sphi 0, %s53
      %s70 = sphi 0, %s54
      %s76 = sphi 0, %s78
      %s79 = sphi 0, %s76
      %s80 = sphi 0, %s79
      %s96 = sphi 0, %s80
      %s104 = sphi 0, %s106
      %s107 = sphi 0, %s104
      %s108 = sphi 0, %s107
      %s124 = sphi 0, %s108
      %s130 = sphi 0, %s132
      %s133 = sphi 0, %s130
      %s134 = sphi 0, %s133
      %s150 = sphi 0, %s134
      %s156 = sphi 0, %s158
      %s159 = sphi 0, %s156
      %s160 = sphi 0, %s159
      %s176 = sphi 0, %s160
    $region4: #{tpu_custom_call.1} parent=1 // loop_header_branch
      %20 = sbr.rel (%p18) target = $region8
    $region5: #{tpu_custom_call.1} parent=1 // loop_body
      %s22 = ssub.s32 %s17, 1
      %s23 = ssub.s32 %s17, 2
      %s33 = sadd.s32 1, %s26
      %p34 = scmp.ge.s32.totalorder %s33, 3
      %s35 = scalar_select %p34, 0, %s33
      %s36 = sadd.s32 1, %s25
      %s37 = scalar_select %p34, %s36, %s25
      %p38 = scmp.ge.s32.totalorder %s37, 8
      %s39 = scalar_select %p38, 0, %s37
      %s40 = sadd.s32 1, %s24
      %s41 = scalar_select %p38, %s40, %s24
      %p42 = scmp.ge.s32.totalorder %s41, 2
      %s43 = scalar_select %p42, 0, %s41
      %s44 = sadd.s32 %s25, %s26
      %s45 = sadd.s32 %s39, %s35
      %s46 = ssub.s32 %s24, %s43
      %s47 = ssub.s32 %s44, %s45
      %s48 = sor.u32 %s46, %s47
      %p49 = scmp.eq.s32.totalorder %s48, 0
      %s51 = sadd.s32 %s50, 1
      %s52 = scalar_select %p49, %s50, %s51
      %p55 = pneg %p49
      %p56 = scmp.eq.s32.totalorder %s17, 47
      %p57 = por %p55, %p56
      %p58 = scmp.ne.s32.totalorder %s50, %s53
      %p59 = scmp.eq.s32.totalorder %s17, 0
      %p60 = por %p58, %p59
      %p61 = scmp.ne.s32.totalorder %s50, %s53
      %p62 = scmp.eq.s32.totalorder %s22, 47
      %p63 = por %p61, %p62
      %p64 = scmp.ne.s32.totalorder %s53, %s54
      %p65 = scmp.eq.s32.totalorder %s22, 0
      %p66 = por %p64, %p65
      %p67 = scmp.ne.s32.totalorder %s53, %s54
      %p68 = scmp.eq.s32.totalorder %s23, 47
      %p69 = por %p67, %p68
      %p71 = scmp.ne.s32.totalorder %s54, %s70
      %p72 = scmp.eq.s32.totalorder %s23, 0
      %p73 = por %p71, %p72
      %s74 = ssub.s32 %s26, %s35
      %p75 = scmp.eq.s32.totalorder %s74, 0
      %s77 = sadd.s32 %s76, 1
      %s78 = scalar_select %p75, %s76, %s77
      %p81 = pneg %p75
      %p82 = scmp.eq.s32.totalorder %s17, 47
      %p83 = por %p81, %p82
      %p84 = scmp.ne.s32.totalorder %s76, %s79
      %p85 = scmp.eq.s32.totalorder %s17, 0
      %p86 = por %p84, %p85
      %p87 = scmp.ne.s32.totalorder %s76, %s79
      %p88 = scmp.eq.s32.totalorder %s22, 47
      %p89 = por %p87, %p88
      %p90 = scmp.ne.s32.totalorder %s79, %s80
      %p91 = scmp.eq.s32.totalorder %s22, 0
      %p92 = por %p90, %p91
      %p93 = scmp.ne.s32.totalorder %s79, %s80
      %p94 = scmp.eq.s32.totalorder %s23, 47
      %p95 = por %p93, %p94
      %p97 = scmp.ne.s32.totalorder %s80, %s96
      %p98 = scmp.eq.s32.totalorder %s23, 0
      %p99 = por %p97, %p98
      %s100 = ssub.s32 %s24, %s43
      %s101 = ssub.s32 %s25, %s39
      %s102 = sor.u32 %s100, %s101
      %p103 = scmp.eq.s32.totalorder %s102, 0
      %s105 = sadd.s32 %s104, 1
      %s106 = scalar_select %p103, %s104, %s105
      %p109 = pneg %p103
      %p110 = scmp.eq.s32.totalorder %s17, 47
      %p111 = por %p109, %p110
      %p112 = scmp.ne.s32.totalorder %s104, %s107
      %p113 = scmp.eq.s32.totalorder %s17, 0
      %p114 = por %p112, %p113
      %p115 = scmp.ne.s32.totalorder %s104, %s107
      %p116 = scmp.eq.s32.totalorder %s22, 47
      %p117 = por %p115, %p116
      %p118 = scmp.ne.s32.totalorder %s107, %s108
      %p119 = scmp.eq.s32.totalorder %s22, 0
      %p120 = por %p118, %p119
      %p121 = scmp.ne.s32.totalorder %s107, %s108
      %p122 = scmp.eq.s32.totalorder %s23, 47
      %p123 = por %p121, %p122
      %p125 = scmp.ne.s32.totalorder %s108, %s124
      %p126 = scmp.eq.s32.totalorder %s23, 0
      %p127 = por %p125, %p126
      %s128 = ssub.s32 %s24, %s43
      %p129 = scmp.eq.s32.totalorder %s128, 0
      %s131 = sadd.s32 %s130, 1
      %s132 = scalar_select %p129, %s130, %s131
      %p135 = pneg %p129
      %p136 = scmp.eq.s32.totalorder %s17, 47
      %p137 = por %p135, %p136
      %p138 = scmp.ne.s32.totalorder %s130, %s133
      %p139 = scmp.eq.s32.totalorder %s17, 0
      %p140 = por %p138, %p139
      %p141 = scmp.ne.s32.totalorder %s130, %s133
      %p142 = scmp.eq.s32.totalorder %s22, 47
      %p143 = por %p141, %p142
      %p144 = scmp.ne.s32.totalorder %s133, %s134
      %p145 = scmp.eq.s32.totalorder %s22, 0
      %p146 = por %p144, %p145
      %p147 = scmp.ne.s32.totalorder %s133, %s134
      %p148 = scmp.eq.s32.totalorder %s23, 47
      %p149 = por %p147, %p148
      %p151 = scmp.ne.s32.totalorder %s134, %s150
      %p152 = scmp.eq.s32.totalorder %s23, 0
      %p153 = por %p151, %p152
      %s154 = ssub.s32 %s24, %s43
      %p155 = scmp.eq.s32.totalorder %s154, 0
      %s157 = sadd.s32 %s156, 1
      %s158 = scalar_select %p155, %s156, %s157
      %p161 = pneg %p155
      %p162 = scmp.eq.s32.totalorder %s17, 47
      %p163 = por %p161, %p162
      %p164 = scmp.ne.s32.totalorder %s156, %s159
      %p165 = scmp.eq.s32.totalorder %s17, 0
      %p166 = por %p164, %p165
      %p167 = scmp.ne.s32.totalorder %s156, %s159
      %p168 = scmp.eq.s32.totalorder %s22, 47
      %p169 = por %p167, %p168
      %p170 = scmp.ne.s32.totalorder %s159, %s160
      %p171 = scmp.eq.s32.totalorder %s22, 0
      %p172 = por %p170, %p171
      %p173 = scmp.ne.s32.totalorder %s159, %s160
      %p174 = scmp.eq.s32.totalorder %s23, 47
      %p175 = por %p173, %p174
      %p177 = scmp.ne.s32.totalorder %s160, %s176
      %p178 = scmp.eq.s32.totalorder %s23, 0
      %p179 = por %p177, %p178
      %p180 = scmp.le.s32.totalorder 1, %s17
      %p181 = scmp.lt.s32.totalorder %s17, 49
      %p182 = pnand %p180, %p181
      %p183 = pneg %p182
      // Predicated region
      $region9: #{tpu_custom_call.1} parent=5 // pred_check
        _
      $region10: #{tpu_custom_call.1} parent=5 // pred_check_branch
        %185 = sbr.rel (%p182) target = $region12
      $region11: #{tpu_custom_call.1} parent=5 // pred_region
        %s186 = ssub.s32 %s17, 1
      $region12: #{tpu_custom_call.1} parent=5 // pred_fallthru
        _
      %p187 = scmp.lt.s32.totalorder %s17, 48
      // Predicated region
      $region13: #{tpu_custom_call.1} parent=5 // pred_check
        %p188 = pneg %p187
      $region14: #{tpu_custom_call.1} parent=5 // pred_check_branch
        %190 = sbr.rel (%p188) target = $region16
      $region15: #{tpu_custom_call.1} parent=5 // pred_region
        // Predicated region
        $region17: #{tpu_custom_call.1} parent=15 // pred_check
          %p191 = pneg %p60
        $region18: #{tpu_custom_call.1} parent=15 // pred_check_branch
          %193 = sbr.rel (%p191) target = $region20
        $region19: #{tpu_custom_call.1} parent=15 // pred_region
          %s194 = sadd.s32 %s25, %s26
          %p195 = scmp.lt.s32.totalorder %s24, 1
          %s196 = scalar_select %p195, %s24, 1
          %p197 = scmp.lt.s32.totalorder %s194, 9
          %s198 = scalar_select %p197, %s194, 9
          %s199 = smul.addr %s198, 54
          %s200 = smul.addr %s196, 540
          %s201 = sadd.s32 %s199, %s200
          %s202 = smul.addr %s201, 4
          %s203 = scalar_lea.vmem %s0, %s202
          %s204 = sadd.s32 %s25, %s26
        $region20: #{tpu_custom_call.1} parent=15 // pred_fallthru
          _
        // Predicated region
        $region21: #{tpu_custom_call.1} parent=15 // pred_check
          %p205 = pneg %p86
        $region22: #{tpu_custom_call.1} parent=15 // pred_check_branch
          %207 = sbr.rel (%p205) target = $region24
        $region23: #{tpu_custom_call.1} parent=15 // pred_region
          %p208 = scmp.lt.s32.totalorder %s26, 2
          %s209 = scalar_select %p208, %s26, 2
          %s210 = smul.addr %s209, 9
          %s211 = smul.addr %s210, 4
          %s212 = scalar_lea.vmem %s1, %s211
        $region24: #{tpu_custom_call.1} parent=15 // pred_fallthru
          _
      $region16: #{tpu_custom_call.1} parent=5 // pred_fallthru
        _
      %p213 = scmp.le.s32.totalorder 1, %s17
      %p214 = scmp.lt.s32.totalorder %s17, 49
      %p215 = pnand %p213, %p214
      %p216 = pneg %p215
      // Predicated region
      $region25: #{tpu_custom_call.1} parent=5 // pred_check
        _
      $region26: #{tpu_custom_call.1} parent=5 // pred_check_branch
        %218 = sbr.rel (%p215) target = $region28
      $region27: #{tpu_custom_call.1} parent=5 // pred_region
        %s219 = ssub.s32 %s17, 1
        %s220 = sadd.s32 %s28, %s29
        %p221 = scmp.lt.s32.totalorder %s27, 1
        %s222 = scalar_select %p221, %s27, 1
        %p223 = scmp.lt.s32.totalorder %s220, 9
        %s224 = scalar_select %p223, %s220, 9
        %s225 = smul.addr %s224, 54
        %s226 = smul.addr %s222, 540
        %s227 = sadd.s32 %s225, %s226
        %s228 = smul.addr %s227, 4
        %s229 = scalar_lea.vmem %s0, %s228
        %p230 = pneg %p66
        %p231 = pneg %p63
        %p232 = scmp.lt.s32.totalorder %s29, 2
        %s233 = scalar_select %p232, %s29, 2
        %s234 = smul.addr %s233, 9
        %s235 = smul.addr %s234, 4
        %s236 = scalar_lea.vmem %s1, %s235
        %p237 = pneg %p92
        %p238 = pneg %p89
        %p239 = pneg %p120
        %p240 = pneg %p117
        %p241 = scmp.lt.s32.totalorder %s27, 1
        %s242 = scalar_select %p241, %s27, 1
        %p243 = scmp.lt.s32.totalorder %s28, 7
        %s244 = scalar_select %p243, %s28, 7
        %s245 = smul.addr %s244, 32
        %s246 = smul.addr %s242, 256
        %s247 = sadd.s32 %s245, %s246
        %s248 = smul.addr %s247, 8
        %s249 = scalar_lea.vmem %s2, %s248
        %p250 = pneg %p146
        %p251 = pneg %p143
        %s252 = sand.u32 %s133, 1
        %s253 = scalar_lea.sflag [#allocation4], %s252
        %s254 = sand.u32 %s133, 1
        %s255 = scalar_lea.vmem [#allocation3], %s254
        %p256 = pneg %p172
        %p257 = pneg %p169
        %s258 = sand.u32 %s159, 1
        %s259 = scalar_lea.sflag [#allocation6], %s258
        %s260 = sand.u32 %s159, 1
        %s261 = scalar_lea.vmem [#allocation5], %s260
        %s262 = sadd.s32 %s28, %s29
        %p263 = scmp.lt.s32.totalorder %s27, 1
        %s264 = scalar_select %p263, %s27, 1
        %p265 = scmp.lt.s32.totalorder %s262, 9
        %s266 = scalar_select %p265, %s262, 9
        %s267 = smul.addr %s266, 54
        %s268 = smul.addr %s264, 540
        %s269 = sadd.s32 %s267, %s268
        %s270 = smul.addr %s269, 4
        %s271 = scalar_lea.vmem %s0, %s270
        %s272 = sadd.s32 %s28, %s29
        %p273 = scmp.lt.s32.totalorder %s29, 2
        %s274 = scalar_select %p273, %s29, 2
        %s275 = smul.addr %s274, 9
        %s276 = smul.addr %s275, 4
        %s277 = scalar_lea.vmem %s1, %s276
        %p278 = scmp.lt.s32.totalorder %s27, 1
        %s279 = scalar_select %p278, %s27, 1
        %p280 = scmp.lt.s32.totalorder %s28, 7
        %s281 = scalar_select %p280, %s28, 7
        %s282 = smul.addr %s281, 32
        %s283 = smul.addr %s279, 256
        %s284 = sadd.s32 %s282, %s283
        %s285 = smul.addr %s284, 8
        %s286 = scalar_lea.vmem %s2, %s285
        %p288 = scmp.eq.s32.totalorder %s28, 0
        %p289 = scmp.eq.s32.totalorder %s29, 0
        %p290 = pnand %p288, %p289
        %p291 = pneg %p290
        // Predicated region
        $region29: #{tpu_custom_call.1} parent=27 // pred_check
          _
        $region30: #{tpu_custom_call.1} parent=27 // pred_check_branch
          %293 = sbr.rel (%p290) target = $region32
        $region31: #{tpu_custom_call.1} parent=27 // pred_region
          %vm294 = vcmask 57344
          %295 = vst.msk [vmem:[%s255] sm:$0x1] %vm294, 0.0
          %296 = vst.msk [vmem:[%s261] sm:$0x1] %vm294, 0.0
        $region32: #{tpu_custom_call.1} parent=27 // pred_fallthru
          _
        // Predicated region
        $region33: #{tpu_custom_call.1} parent=27 // pred_check
          %p297 = pneg %p289
        $region34: #{tpu_custom_call.1} parent=27 // pred_check_branch
          %299 = sbr.rel (%p297) target = $region36
        $region35: #{tpu_custom_call.1} parent=27 // pred_region
          %vm300 = vcmask 64512
          %301 = vst.msk [vmem:[#allocation2] sm:$0xff] %vm300, 0.0
          %302 = vst.msk [vmem:[#allocation2 + $0x8] sm:$0xff] %vm300, 0.0
          %303 = vst.msk [vmem:[#allocation2 + $0x10] sm:$0xff] %vm300, 0.0
          %304 = vst.msk [vmem:[#allocation2 + $0x18] sm:$0xff] %vm300, 0.0
          %305 = vst.msk [vmem:[#allocation2 + $0x20] sm:$0xff] %vm300, 0.0
          %306 = vst.msk [vmem:[#allocation2 + $0x28] sm:$0xff] %vm300, 0.0
          %307 = vst.msk [vmem:[#allocation2 + $0x30] sm:$0xff] %vm300, 0.0
          %308 = vst.msk [vmem:[#allocation2 + $0x38] sm:$0xff] %vm300, 0.0
          %309 = vst.msk [vmem:[#allocation2 + $0x40] sm:$0xff] %vm300, 0.0
          %310 = vst.msk [vmem:[#allocation2 + $0x48] sm:$0xff] %vm300, 0.0
          %311 = vst.msk [vmem:[#allocation2 + $0x50] sm:$0xff] %vm300, 0.0
          %312 = vst.msk [vmem:[#allocation2 + $0x58] sm:$0xff] %vm300, 0.0
          %313 = vst.msk [vmem:[#allocation2 + $0x60] sm:$0xff] %vm300, 0.0
          %314 = vst.msk [vmem:[#allocation2 + $0x68] sm:$0xff] %vm300, 0.0
          %315 = vst.msk [vmem:[#allocation2 + $0x70] sm:$0xff] %vm300, 0.0
          %316 = vst.msk [vmem:[#allocation2 + $0x78] sm:$0xff] %vm300, 0.0
          %317 = vst.msk [vmem:[#allocation2 + $0x80] sm:$0xff] %vm300, 0.0
          %318 = vst.msk [vmem:[#allocation2 + $0x88] sm:$0xff] %vm300, 0.0
          %319 = vst.msk [vmem:[#allocation2 + $0x90] sm:$0xff] %vm300, 0.0
          %320 = vst.msk [vmem:[#allocation2 + $0x98] sm:$0xff] %vm300, 0.0
          %321 = vst.msk [vmem:[#allocation2 + $0xa0] sm:$0xff] %vm300, 0.0
          %322 = vst.msk [vmem:[#allocation2 + $0xa8] sm:$0xff] %vm300, 0.0
          %323 = vst.msk [vmem:[#allocation2 + $0xb0] sm:$0xff] %vm300, 0.0
          %324 = vst.msk [vmem:[#allocation2 + $0xb8] sm:$0xff] %vm300, 0.0
          %325 = vst.msk [vmem:[#allocation2 + $0xc0] sm:$0xff] %vm300, 0.0
          %326 = vst.msk [vmem:[#allocation2 + $0xc8] sm:$0xff] %vm300, 0.0
          %327 = vst.msk [vmem:[#allocation2 + $0xd0] sm:$0xff] %vm300, 0.0
          %328 = vst.msk [vmem:[#allocation2 + $0xd8] sm:$0xff] %vm300, 0.0
          %329 = vst.msk [vmem:[#allocation2 + $0xe0] sm:$0xff] %vm300, 0.0
          %330 = vst.msk [vmem:[#allocation2 + $0xe8] sm:$0xff] %vm300, 0.0
          %331 = vst.msk [vmem:[#allocation2 + $0xf0] sm:$0xff] %vm300, 0.0
          %332 = vst.msk [vmem:[#allocation2 + $0xf8] sm:$0xff] %vm300, 0.0
        $region36: #{tpu_custom_call.1} parent=27 // pred_fallthru
          _
        %v333 = vld [vmem:[#allocation2] sm:$0xff]
        %v334 = vld [vmem:[#allocation2 + $0x8] sm:$0xff]
        %v335 = vld [vmem:[#allocation2 + $0x10] sm:$0xff]
        %v336 = vld [vmem:[#allocation2 + $0x18] sm:$0xff]
        %v337 = vld [vmem:[#allocation2 + $0x20] sm:$0xff]
        %v338 = vld [vmem:[#allocation2 + $0x28] sm:$0xff]
        %v339 = vld [vmem:[#allocation2 + $0x30] sm:$0xff]
        %v340 = vld [vmem:[#allocation2 + $0x38] sm:$0xff]
        %v341 = vld [vmem:[#allocation2 + $0x40] sm:$0xff]
        %v342 = vld [vmem:[#allocation2 + $0x48] sm:$0xff]
        %v343 = vld [vmem:[#allocation2 + $0x50] sm:$0xff]
        %v344 = vld [vmem:[#allocation2 + $0x58] sm:$0xff]
        %v345 = vld [vmem:[#allocation2 + $0x60] sm:$0xff]
        %v346 = vld [vmem:[#allocation2 + $0x68] sm:$0xff]
        %v347 = vld [vmem:[#allocation2 + $0x70] sm:$0xff]
        %v348 = vld [vmem:[#allocation2 + $0x78] sm:$0xff]
        %v349 = vld [vmem:[#allocation2 + $0x80] sm:$0xff]
        %v350 = vld [vmem:[#allocation2 + $0x88] sm:$0xff]
        %v351 = vld [vmem:[#allocation2 + $0x90] sm:$0xff]
        %v352 = vld [vmem:[#allocation2 + $0x98] sm:$0xff]
        %v353 = vld [vmem:[#allocation2 + $0xa0] sm:$0xff]
        %v354 = vld [vmem:[#allocation2 + $0xa8] sm:$0xff]
        %v355 = vld [vmem:[#allocation2 + $0xb0] sm:$0xff]
        %v356 = vld [vmem:[#allocation2 + $0xb8] sm:$0xff]
        %v357 = vld [vmem:[#allocation2 + $0xc0] sm:$0xff]
        %v358 = vld [vmem:[#allocation2 + $0xc8] sm:$0xff]
        %v359 = vld [vmem:[#allocation2 + $0xd0] sm:$0xff]
        %v360 = vld [vmem:[#allocation2 + $0xd8] sm:$0xff]
        %v361 = vld [vmem:[#allocation2 + $0xe0] sm:$0xff]
        %v362 = vld [vmem:[#allocation2 + $0xe8] sm:$0xff]
        %v363 = vld [vmem:[#allocation2 + $0xf0] sm:$0xff]
        %v364 = vld [vmem:[#allocation2 + $0xf8] sm:$0xff]
        %v365 = vld [vmem:[%s271] sm:$0xf]
        %v366 = vld [vmem:[%s271 + $0x4] sm:$0xf]
        %v367 = vld [vmem:[%s271 + $0xc] sm:$0xf]
        %v368 = vld [vmem:[%s271 + $0x10] sm:$0xf]
        %v369 = vld [vmem:[%s271 + $0x18] sm:$0xf]
        %v370 = vld [vmem:[%s271 + $0x1c] sm:$0xf]
        %v371 = vld [vmem:[%s271 + $0x24] sm:$0xf]
        %v372 = vld [vmem:[%s271 + $0x28] sm:$0xf]
        %v373 = vld [vmem:[%s271 + $0x30] sm:$0xf]
        %v374 = vld [vmem:[%s271 + $0x34] sm:$0xf]
        %v375 = vld [vmem:[%s271 + $0x3c] sm:$0xf]
        %v376 = vld [vmem:[%s271 + $0x40] sm:$0xf]
        %v377 = vld [vmem:[%s271 + $0x48] sm:$0xf]
        %v378 = vld [vmem:[%s271 + $0x4c] sm:$0xf]
        %v379 = vld [vmem:[%s271 + $0x54] sm:$0xf]
        %v380 = vld [vmem:[%s271 + $0x58] sm:$0xf]
        %v381 = vld [vmem:[%s271 + $0x60] sm:$0xf]
        %v382 = vld [vmem:[%s271 + $0x64] sm:$0xf]
        %v383 = vld [vmem:[%s271 + $0x6c] sm:$0xf]
        %v384 = vld [vmem:[%s271 + $0x70] sm:$0xf]
        %v385 = vld [vmem:[%s271 + $0x78] sm:$0xf]
        %v386 = vld [vmem:[%s271 + $0x7c] sm:$0xf]
        %v387 = vld [vmem:[%s271 + $0x84] sm:$0xf]
        %v388 = vld [vmem:[%s271 + $0x88] sm:$0xf]
        %v389 = vld [vmem:[%s271 + $0x90] sm:$0xf]
        %v390 = vld [vmem:[%s271 + $0x94] sm:$0xf]
        %v391 = vld [vmem:[%s271 + $0x9c] sm:$0xf]
        %v392 = vld [vmem:[%s271 + $0xa0] sm:$0xf]
        %v393 = vld [vmem:[%s271 + $0xa8] sm:$0xf]
        %v394 = vld [vmem:[%s271 + $0xac] sm:$0xf]
        %v395 = vld [vmem:[%s271 + $0xb4] sm:$0xf]
        %v396 = vld [vmem:[%s271 + $0xb8] sm:$0xf]
        %v397 = vld [vmem:[%s277] sm:$0xf]
        %v430 = vunpack.c.l.b16 %v365
        %v431 = vunpack.c.l.b16 %v366
        %v432 = vunpack.c.l.b16 %v367
        %v433 = vunpack.c.l.b16 %v368
        %v434 = vunpack.c.l.b16 %v369
        %v435 = vunpack.c.l.b16 %v370
        %v436 = vunpack.c.l.b16 %v371
        %v437 = vunpack.c.l.b16 %v372
        %v438 = vunpack.c.l.b16 %v373
        %v439 = vunpack.c.l.b16 %v374
        %v440 = vunpack.c.l.b16 %v375
        %v441 = vunpack.c.l.b16 %v376
        %v442 = vunpack.c.l.b16 %v377
        %v443 = vunpack.c.l.b16 %v378
        %v444 = vunpack.c.l.b16 %v379
        %v445 = vunpack.c.l.b16 %v380
        %v446 = vunpack.c.l.b16 %v381
        %v447 = vunpack.c.l.b16 %v382
        %v448 = vunpack.c.l.b16 %v383
        %v449 = vunpack.c.l.b16 %v384
        %v450 = vunpack.c.l.b16 %v385
        %v451 = vunpack.c.l.b16 %v386
        %v452 = vunpack.c.l.b16 %v387
        %v453 = vunpack.c.l.b16 %v388
        %v454 = vunpack.c.l.b16 %v389
        %v455 = vunpack.c.l.b16 %v390
        %v456 = vunpack.c.l.b16 %v391
        %v457 = vunpack.c.l.b16 %v392
        %v458 = vunpack.c.l.b16 %v393
        %v459 = vunpack.c.l.b16 %v394
        %v460 = vunpack.c.l.b16 %v395
        %v461 = vunpack.c.l.b16 %v396
        %v462 = vpack.c.b16 %v431, %v430
        %v463 = vpack.c.b16 %v433, %v432
        %v464 = vpack.c.b16 %v435, %v434
        %v465 = vpack.c.b16 %v437, %v436
        %v466 = vpack.c.b16 %v439, %v438
        %v467 = vpack.c.b16 %v441, %v440
        %v468 = vpack.c.b16 %v443, %v442
        %v469 = vpack.c.b16 %v445, %v444
        %v470 = vpack.c.b16 %v447, %v446
        %v471 = vpack.c.b16 %v449, %v448
        %v472 = vpack.c.b16 %v451, %v450
        %v473 = vpack.c.b16 %v453, %v452
        %v474 = vpack.c.b16 %v455, %v454
        %v475 = vpack.c.b16 %v457, %v456
        %v476 = vpack.c.b16 %v459, %v458
        %v477 = vpack.c.b16 %v461, %v460
        %vm478 = vcmask 64512
        %v480 = vsel %vm478, %v462, 0
        %v483 = vsel %vm478, %v463, 0
        %v486 = vsel %vm478, %v464, 0
        %v489 = vsel %vm478, %v465, 0
        %v492 = vsel %vm478, %v466, 0
        %v495 = vsel %vm478, %v467, 0
        %v498 = vsel %vm478, %v468, 0
        %v501 = vsel %vm478, %v469, 0
        %v504 = vsel %vm478, %v470, 0
        %v507 = vsel %vm478, %v471, 0
        %v510 = vsel %vm478, %v472, 0
        %v513 = vsel %vm478, %v473, 0
        %v516 = vsel %vm478, %v474, 0
        %v519 = vsel %vm478, %v475, 0
        %v522 = vsel %vm478, %v476, 0
        %v525 = vsel %vm478, %v477, 0
        %vm527 = vcmask 1043456
        %v529 = vsel %vm527, %v397, 0
        %531 = vmatprep.subr.bf16.mxu0 0
        %532 = vmatpush1.bf16.msra.mxu0 %v529
        %533 = vmatprep.subr.bf16.mxu0 0
        %534 = vmatpush1.bf16.msra.mxu0 0
        %535 = vmatprep.subr.bf16.mxu0 0
        %536 = vmatpush1.bf16.msra.mxu0 0
        %537 = vmatprep.subr.bf16.mxu0 0
        %538 = vmatpush1.bf16.msra.mxu0 0
        %539 = vmatprep.subr.bf16.mxu0 0
        %540 = vmatpush1.bf16.msra.mxu0 0
        %541 = vmatprep.subr.bf16.mxu0 0
        %542 = vmatpush1.bf16.msra.mxu0 0
        %543 = vmatprep.subr.bf16.mxu0 0
        %544 = vmatpush1.bf16.msra.mxu0 0
        %545 = vmatprep.subr.bf16.mxu0 0
        %546 = vmatpush1.bf16.msra.mxu0 0
        %547 = vmatprep.subr.bf16.mxu0 0
        %548 = vmatpush1.bf16.msra.mxu0 0
        %549 = vmatprep.subr.bf16.mxu0 0
        %550 = vmatpush1.bf16.msra.mxu0 0
        %551 = vmatprep.subr.bf16.mxu0 0
        %552 = vmatpush1.bf16.msra.mxu0 0
        %553 = vmatprep.subr.bf16.mxu0 0
        %554 = vmatpush1.bf16.msra.mxu0 0
        %555 = vmatprep.subr.bf16.mxu0 0
        %556 = vmatpush1.bf16.msra.mxu0 0
        %557 = vmatprep.subr.bf16.mxu0 0
        %558 = vmatpush1.bf16.msra.mxu0 0
        %559 = vmatprep.subr.bf16.mxu0 0
        %560 = vmatpush1.bf16.msra.mxu0 0
        %561 = vmatprep.subr.bf16.mxu0 0
        %562 = vmatpush1.bf16.msra.mxu0 0
        %563 = vmatprep.mubr.bf16.mxu0 0
        %564 = vmatmul.mubr.bf16.gmra.mrb[0].mxu0 %v480
        %v565 = vpop.f32.mrb[0].mxu0
        %v566 = vadd.f32 0.0, %v565
        %v567 = vpop.f32.mrb[0].mxu0
        %v568 = vpop.f32.mrb[0].mxu0
        %v569 = vadd.f32 0.0, %v568
        %v570 = vpop.f32.mrb[0].mxu0
        %571 = vmatprep.mubr.bf16.mxu0 0
        %572 = vmatmul.mubr.bf16.gmra.mrb[0].mxu0 %v483
        %v573 = vpop.f32.mrb[0].mxu0
        %v574 = vadd.f32 0.0, %v573
        %v575 = vpop.f32.mrb[0].mxu0
        %v576 = vpop.f32.mrb[0].mxu0
        %v577 = vadd.f32 0.0, %v576
        %v578 = vpop.f32.mrb[0].mxu0
        %579 = vmatprep.mubr.bf16.mxu0 0
        %580 = vmatmul.mubr.bf16.gmra.mrb[0].mxu0 %v486
        %v581 = vpop.f32.mrb[0].mxu0
        %v582 = vadd.f32 0.0, %v581
        %v583 = vpop.f32.mrb[0].mxu0
        %v584 = vpop.f32.mrb[0].mxu0
        %v585 = vadd.f32 0.0, %v584
        %v586 = vpop.f32.mrb[0].mxu0
        %587 = vmatprep.mubr.bf16.mxu0 0
        %588 = vmatmul.mubr.bf16.gmra.mrb[0].mxu0 %v489
        %v589 = vpop.f32.mrb[0].mxu0
        %v590 = vadd.f32 0.0, %v589
        %v591 = vpop.f32.mrb[0].mxu0
        %v592 = vpop.f32.mrb[0].mxu0
        %v593 = vadd.f32 0.0, %v592
        %v594 = vpop.f32.mrb[0].mxu0
        %595 = vmatprep.mubr.bf16.mxu0 0
        %596 = vmatmul.mubr.bf16.gmra.mrb[0].mxu0 %v492
        %v597 = vpop.f32.mrb[0].mxu0
        %v598 = vadd.f32 0.0, %v597
        %v599 = vpop.f32.mrb[0].mxu0
        %v600 = vpop.f32.mrb[0].mxu0
        %v601 = vadd.f32 0.0, %v600
        %v602 = vpop.f32.mrb[0].mxu0
        %603 = vmatprep.mubr.bf16.mxu0 0
        %604 = vmatmul.mubr.bf16.gmra.mrb[0].mxu0 %v495
        %v605 = vpop.f32.mrb[0].mxu0
        %v606 = vadd.f32 0.0, %v605
        %v607 = vpop.f32.mrb[0].mxu0
        %v608 = vpop.f32.mrb[0].mxu0
        %v609 = vadd.f32 0.0, %v608
        %v610 = vpop.f32.mrb[0].mxu0
        %611 = vmatprep.mubr.bf16.mxu0 0
        %612 = vmatmul.mubr.bf16.gmra.mrb[0].mxu0 %v498
        %v613 = vpop.f32.mrb[0].mxu0
        %v614 = vadd.f32 0.0, %v613
        %v615 = vpop.f32.mrb[0].mxu0
        %v616 = vpop.f32.mrb[0].mxu0
        %v617 = vadd.f32 0.0, %v616
        %v618 = vpop.f32.mrb[0].mxu0
        %619 = vmatprep.mubr.bf16.mxu0 0
        %620 = vmatmul.mubr.bf16.gmra.mrb[0].mxu0 %v501
        %v621 = vpop.f32.mrb[0].mxu0
        %v622 = vadd.f32 0.0, %v621
        %v623 = vpop.f32.mrb[0].mxu0
        %v624 = vpop.f32.mrb[0].mxu0
        %v625 = vadd.f32 0.0, %v624
        %v626 = vpop.f32.mrb[0].mxu0
        %627 = vmatprep.mubr.bf16.mxu0 0
        %628 = vmatmul.mubr.bf16.gmra.mrb[0].mxu0 %v504
        %v629 = vpop.f32.mrb[0].mxu0
        %v630 = vadd.f32 0.0, %v629
        %v631 = vpop.f32.mrb[0].mxu0
        %v632 = vpop.f32.mrb[0].mxu0
        %v633 = vadd.f32 0.0, %v632
        %v634 = vpop.f32.mrb[0].mxu0
        %635 = vmatprep.mubr.bf16.mxu0 0
        %636 = vmatmul.mubr.bf16.gmra.mrb[0].mxu0 %v507
        %v637 = vpop.f32.mrb[0].mxu0
        %v638 = vadd.f32 0.0, %v637
        %v639 = vpop.f32.mrb[0].mxu0
        %v640 = vpop.f32.mrb[0].mxu0
        %v641 = vadd.f32 0.0, %v640
        %v642 = vpop.f32.mrb[0].mxu0
        %643 = vmatprep.mubr.bf16.mxu0 0
        %644 = vmatmul.mubr.bf16.gmra.mrb[0].mxu0 %v510
        %v645 = vpop.f32.mrb[0].mxu0
        %v646 = vadd.f32 0.0, %v645
        %v647 = vpop.f32.mrb[0].mxu0
        %v648 = vpop.f32.mrb[0].mxu0
        %v649 = vadd.f32 0.0, %v648
        %v650 = vpop.f32.mrb[0].mxu0
        %651 = vmatprep.mubr.bf16.mxu0 0
        %652 = vmatmul.mubr.bf16.gmra.mrb[0].mxu0 %v513
        %v653 = vpop.f32.mrb[0].mxu0
        %v654 = vadd.f32 0.0, %v653
        %v655 = vpop.f32.mrb[0].mxu0
        %v656 = vpop.f32.mrb[0].mxu0
        %v657 = vadd.f32 0.0, %v656
        %v658 = vpop.f32.mrb[0].mxu0
        %659 = vmatprep.mubr.bf16.mxu0 0
        %660 = vmatmul.mubr.bf16.gmra.mrb[0].mxu0 %v516
        %v661 = vpop.f32.mrb[0].mxu0
        %v662 = vadd.f32 0.0, %v661
        %v663 = vpop.f32.mrb[0].mxu0
        %v664 = vpop.f32.mrb[0].mxu0
        %v665 = vadd.f32 0.0, %v664
        %v666 = vpop.f32.mrb[0].mxu0
        %667 = vmatprep.mubr.bf16.mxu0 0
        %668 = vmatmul.mubr.bf16.gmra.mrb[0].mxu0 %v519
        %v669 = vpop.f32.mrb[0].mxu0
        %v670 = vadd.f32 0.0, %v669
        %v671 = vpop.f32.mrb[0].mxu0
        %v672 = vpop.f32.mrb[0].mxu0
        %v673 = vadd.f32 0.0, %v672
        %v674 = vpop.f32.mrb[0].mxu0
        %675 = vmatprep.mubr.bf16.mxu0 0
        %676 = vmatmul.mubr.bf16.gmra.mrb[0].mxu0 %v522
        %v677 = vpop.f32.mrb[0].mxu0
        %v678 = vadd.f32 0.0, %v677
        %v679 = vpop.f32.mrb[0].mxu0
        %v680 = vpop.f32.mrb[0].mxu0
        %v681 = vadd.f32 0.0, %v680
        %v682 = vpop.f32.mrb[0].mxu0
        %683 = vmatprep.mubr.bf16.mxu0 0
        %684 = vmatmul.mubr.bf16.gmra.mrb[0].mxu0 %v525
        %v685 = vpop.f32.mrb[0].mxu0
        %v686 = vadd.f32 0.0, %v685
        %v687 = vpop.f32.mrb[0].mxu0
        %v688 = vpop.f32.mrb[0].mxu0
        %v689 = vadd.f32 0.0, %v688
        %v690 = vpop.f32.mrb[0].mxu0
        %691 = vdwg.mxu0
        %v692 = vadd.f32 %v333, %v566
        %v693 = vadd.f32 %v334, %v569
        %v694 = vadd.f32 %v335, %v574
        %v695 = vadd.f32 %v336, %v577
        %v696 = vadd.f32 %v337, %v582
        %v697 = vadd.f32 %v338, %v585
        %v698 = vadd.f32 %v339, %v590
        %v699 = vadd.f32 %v340, %v593
        %v700 = vadd.f32 %v341, %v598
        %v701 = vadd.f32 %v342, %v601
        %v702 = vadd.f32 %v343, %v606
        %v703 = vadd.f32 %v344, %v609
        %v704 = vadd.f32 %v345, %v614
        %v705 = vadd.f32 %v346, %v617
        %v706 = vadd.f32 %v347, %v622
        %v707 = vadd.f32 %v348, %v625
        %v708 = vadd.f32 %v349, %v630
        %v709 = vadd.f32 %v350, %v633
        %v710 = vadd.f32 %v351, %v638
        %v711 = vadd.f32 %v352, %v641
        %v712 = vadd.f32 %v353, %v646
        %v713 = vadd.f32 %v354, %v649
        %v714 = vadd.f32 %v355, %v654
        %v715 = vadd.f32 %v356, %v657
        %v716 = vadd.f32 %v357, %v662
        %v717 = vadd.f32 %v358, %v665
        %v718 = vadd.f32 %v359, %v670
        %v719 = vadd.f32 %v360, %v673
        %v720 = vadd.f32 %v361, %v678
        %v721 = vadd.f32 %v362, %v681
        %v722 = vadd.f32 %v363, %v686
        %v723 = vadd.f32 %v364, %v689
        %v724 = vld [vmem:[%s271] sm:$0xf]
        %v725 = vld [vmem:[%s271 + $0x4] sm:$0xf]
        %v726 = vld [vmem:[%s271 + $0x8] sm:$0x1]
        %v727 = vld [vmem:[%s271 + $0xc] sm:$0xf]
        %v728 = vld [vmem:[%s271 + $0x10] sm:$0xf]
        %v729 = vld [vmem:[%s271 + $0x14] sm:$0x1]
        %v730 = vld [vmem:[%s271 + $0x18] sm:$0xf]
        %v731 = vld [vmem:[%s271 + $0x1c] sm:$0xf]
        %v732 = vld [vmem:[%s271 + $0x20] sm:$0x1]
        %v733 = vld [vmem:[%s271 + $0x24] sm:$0xf]
        %v734 = vld [vmem:[%s271 + $0x28] sm:$0xf]
        %v735 = vld [vmem:[%s271 + $0x2c] sm:$0x1]
        %v736 = vld [vmem:[%s271 + $0x30] sm:$0xf]
        %v737 = vld [vmem:[%s271 + $0x34] sm:$0xf]
        %v738 = vld [vmem:[%s271 + $0x38] sm:$0x1]
        %v739 = vld [vmem:[%s271 + $0x3c] sm:$0xf]
        %v740 = vld [vmem:[%s271 + $0x40] sm:$0xf]
        %v741 = vld [vmem:[%s271 + $0x44] sm:$0x1]
        %v742 = vld [vmem:[%s271 + $0x48] sm:$0xf]
        %v743 = vld [vmem:[%s271 + $0x4c] sm:$0xf]
        %v744 = vld [vmem:[%s271 + $0x50] sm:$0x1]
        %v745 = vld [vmem:[%s271 + $0x54] sm:$0xf]
        %v746 = vld [vmem:[%s271 + $0x58] sm:$0xf]
        %v747 = vld [vmem:[%s271 + $0x5c] sm:$0x1]
        %v748 = vld [vmem:[%s271 + $0x60] sm:$0xf]
        %v749 = vld [vmem:[%s271 + $0x64] sm:$0xf]
        %v750 = vld [vmem:[%s271 + $0x68] sm:$0x1]
        %v751 = vld [vmem:[%s271 + $0x6c] sm:$0xf]
        %v752 = vld [vmem:[%s271 + $0x70] sm:$0xf]
        %v753 = vld [vmem:[%s271 + $0x74] sm:$0x1]
        %v754 = vld [vmem:[%s271 + $0x78] sm:$0xf]
        %v755 = vld [vmem:[%s271 + $0x7c] sm:$0xf]
        %v756 = vld [vmem:[%s271 + $0x80] sm:$0x1]
        %v757 = vld [vmem:[%s271 + $0x84] sm:$0xf]
        %v758 = vld [vmem:[%s271 + $0x88] sm:$0xf]
        %v759 = vld [vmem:[%s271 + $0x8c] sm:$0x1]
        %v760 = vld [vmem:[%s271 + $0x90] sm:$0xf]
        %v761 = vld [vmem:[%s271 + $0x94] sm:$0xf]
        %v762 = vld [vmem:[%s271 + $0x98] sm:$0x1]
        %v763 = vld [vmem:[%s271 + $0x9c] sm:$0xf]
        %v764 = vld [vmem:[%s271 + $0xa0] sm:$0xf]
        %v765 = vld [vmem:[%s271 + $0xa4] sm:$0x1]
        %v766 = vld [vmem:[%s271 + $0xa8] sm:$0xf]
        %v767 = vld [vmem:[%s271 + $0xac] sm:$0xf]
        %v768 = vld [vmem:[%s271 + $0xb0] sm:$0x1]
        %v769 = vld [vmem:[%s271 + $0xb4] sm:$0xf]
        %v770 = vld [vmem:[%s271 + $0xb8] sm:$0xf]
        %v771 = vld [vmem:[%s271 + $0xbc] sm:$0x1]
        %vm772 = vsmask.f32 3328
        %vm773 = vsmask.f32 7440
        %vm774 = vmor %vm772, %vm773
        %v776 = vshrl.u32 %v724, 16
        %v778 = vrot.slane %v776, 4
        %v779 = vshll.u32 %v724, 16
        %v781 = vrot.slane %v779, 5
        %v782 = vor.u32 %v778, %v781
        %v783 = vrot.slane %v782, 4
        %v785 = vshll.u32 %v725, 16
        %v787 = vrot.slane %v785, 5
        %v788 = vsel %vm774, %v783, %v787
        %v789 = vshrl.u32 %v725, 16
        %v791 = vrot.slane %v789, 4
        %v792 = vor.u32 %v791, %v787
        %v793 = vrot.slane %v792, 4
        %v795 = vshll.u32 %v726, 16
        %v797 = vrot.slane %v795, 5
        %v798 = vsel %vm774, %v793, %v797
        %v800 = vshrl.u32 %v727, 16
        %v802 = vrot.slane %v800, 4
        %v803 = vshll.u32 %v727, 16
        %v805 = vrot.slane %v803, 5
        %v806 = vor.u32 %v802, %v805
        %v807 = vrot.slane %v806, 4
        %v809 = vshll.u32 %v728, 16
        %v811 = vrot.slane %v809, 5
        %v812 = vsel %vm774, %v807, %v811
        %v813 = vshrl.u32 %v728, 16
        %v815 = vrot.slane %v813, 4
        %v816 = vor.u32 %v815, %v811
        %v817 = vrot.slane %v816, 4
        %v819 = vshll.u32 %v729, 16
        %v821 = vrot.slane %v819, 5
        %v822 = vsel %vm774, %v817, %v821
        %v824 = vshrl.u32 %v730, 16
        %v826 = vrot.slane %v824, 4
        %v827 = vshll.u32 %v730, 16
        %v829 = vrot.slane %v827, 5
        %v830 = vor.u32 %v826, %v829
        %v831 = vrot.slane %v830, 4
        %v833 = vshll.u32 %v731, 16
        %v835 = vrot.slane %v833, 5
        %v836 = vsel %vm774, %v831, %v835
        %v837 = vshrl.u32 %v731, 16
        %v839 = vrot.slane %v837, 4
        %v840 = vor.u32 %v839, %v835
        %v841 = vrot.slane %v840, 4
        %v843 = vshll.u32 %v732, 16
        %v845 = vrot.slane %v843, 5
        %v846 = vsel %vm774, %v841, %v845
        %v848 = vshrl.u32 %v733, 16
        %v850 = vrot.slane %v848, 4
        %v851 = vshll.u32 %v733, 16
        %v853 = vrot.slane %v851, 5
        %v854 = vor.u32 %v850, %v853
        %v855 = vrot.slane %v854, 4
        %v857 = vshll.u32 %v734, 16
        %v859 = vrot.slane %v857, 5
        %v860 = vsel %vm774, %v855, %v859
        %v861 = vshrl.u32 %v734, 16
        %v863 = vrot.slane %v861, 4
        %v864 = vor.u32 %v863, %v859
        %v865 = vrot.slane %v864, 4
        %v867 = vshll.u32 %v735, 16
        %v869 = vrot.slane %v867, 5
        %v870 = vsel %vm774, %v865, %v869
        %v872 = vshrl.u32 %v736, 16
        %v874 = vrot.slane %v872, 4
        %v875 = vshll.u32 %v736, 16
        %v877 = vrot.slane %v875, 5
        %v878 = vor.u32 %v874, %v877
        %v879 = vrot.slane %v878, 4
        %v881 = vshll.u32 %v737, 16
        %v883 = vrot.slane %v881, 5
        %v884 = vsel %vm774, %v879, %v883
        %v885 = vshrl.u32 %v737, 16
        %v887 = vrot.slane %v885, 4
        %v888 = vor.u32 %v887, %v883
        %v889 = vrot.slane %v888, 4
        %v891 = vshll.u32 %v738, 16
        %v893 = vrot.slane %v891, 5
        %v894 = vsel %vm774, %v889, %v893
        %v896 = vshrl.u32 %v739, 16
        %v898 = vrot.slane %v896, 4
        %v899 = vshll.u32 %v739, 16
        %v901 = vrot.slane %v899, 5
        %v902 = vor.u32 %v898, %v901
        %v903 = vrot.slane %v902, 4
        %v905 = vshll.u32 %v740, 16
        %v907 = vrot.slane %v905, 5
        %v908 = vsel %vm774, %v903, %v907
        %v909 = vshrl.u32 %v740, 16
        %v911 = vrot.slane %v909, 4
        %v912 = vor.u32 %v911, %v907
        %v913 = vrot.slane %v912, 4
        %v915 = vshll.u32 %v741, 16
        %v917 = vrot.slane %v915, 5
        %v918 = vsel %vm774, %v913, %v917
        %v920 = vshrl.u32 %v742, 16
        %v922 = vrot.slane %v920, 4
        %v923 = vshll.u32 %v742, 16
        %v925 = vrot.slane %v923, 5
        %v926 = vor.u32 %v922, %v925
        %v927 = vrot.slane %v926, 4
        %v929 = vshll.u32 %v743, 16
        %v931 = vrot.slane %v929, 5
        %v932 = vsel %vm774, %v927, %v931
        %v933 = vshrl.u32 %v743, 16
        %v935 = vrot.slane %v933, 4
        %v936 = vor.u32 %v935, %v931
        %v937 = vrot.slane %v936, 4
        %v939 = vshll.u32 %v744, 16
        %v941 = vrot.slane %v939, 5
        %v942 = vsel %vm774, %v937, %v941
        %v944 = vshrl.u32 %v745, 16
        %v946 = vrot.slane %v944, 4
        %v947 = vshll.u32 %v745, 16
        %v949 = vrot.slane %v947, 5
        %v950 = vor.u32 %v946, %v949
        %v951 = vrot.slane %v950, 4
        %v953 = vshll.u32 %v746, 16
        %v955 = vrot.slane %v953, 5
        %v956 = vsel %vm774, %v951, %v955
        %v957 = vshrl.u32 %v746, 16
        %v959 = vrot.slane %v957, 4
        %v960 = vor.u32 %v959, %v955
        %v961 = vrot.slane %v960, 4
        %v963 = vshll.u32 %v747, 16
        %v965 = vrot.slane %v963, 5
        %v966 = vsel %vm774, %v961, %v965
        %v968 = vshrl.u32 %v748, 16
        %v970 = vrot.slane %v968, 4
        %v971 = vshll.u32 %v748, 16
        %v973 = vrot.slane %v971, 5
        %v974 = vor.u32 %v970, %v973
        %v975 = vrot.slane %v974, 4
        %v977 = vshll.u32 %v749, 16
        %v979 = vrot.slane %v977, 5
        %v980 = vsel %vm774, %v975, %v979
        %v981 = vshrl.u32 %v749, 16
        %v983 = vrot.slane %v981, 4
        %v984 = vor.u32 %v983, %v979
        %v985 = vrot.slane %v984, 4
        %v987 = vshll.u32 %v750, 16
        %v989 = vrot.slane %v987, 5
        %v990 = vsel %vm774, %v985, %v989
        %v992 = vshrl.u32 %v751, 16
        %v994 = vrot.slane %v992, 4
        %v995 = vshll.u32 %v751, 16
        %v997 = vrot.slane %v995, 5
        %v998 = vor.u32 %v994, %v997
        %v999 = vrot.slane %v998, 4
        %v1001 = vshll.u32 %v752, 16
        %v1003 = vrot.slane %v1001, 5
        %v1004 = vsel %vm774, %v999, %v1003
        %v1005 = vshrl.u32 %v752, 16
        %v1007 = vrot.slane %v1005, 4
        %v1008 = vor.u32 %v1007, %v1003
        %v1009 = vrot.slane %v1008, 4
        %v1011 = vshll.u32 %v753, 16
        %v1013 = vrot.slane %v1011, 5
        %v1014 = vsel %vm774, %v1009, %v1013
        %v1016 = vshrl.u32 %v754, 16
        %v1018 = vrot.slane %v1016, 4
        %v1019 = vshll.u32 %v754, 16
        %v1021 = vrot.slane %v1019, 5
        %v1022 = vor.u32 %v1018, %v1021
        %v1023 = vrot.slane %v1022, 4
        %v1025 = vshll.u32 %v755, 16
        %v1027 = vrot.slane %v1025, 5
        %v1028 = vsel %vm774, %v1023, %v1027
        %v1029 = vshrl.u32 %v755, 16
        %v1031 = vrot.slane %v1029, 4
        %v1032 = vor.u32 %v1031, %v1027
        %v1033 = vrot.slane %v1032, 4
        %v1035 = vshll.u32 %v756, 16
        %v1037 = vrot.slane %v1035, 5
        %v1038 = vsel %vm774, %v1033, %v1037
        %v1040 = vshrl.u32 %v757, 16
        %v1042 = vrot.slane %v1040, 4
        %v1043 = vshll.u32 %v757, 16
        %v1045 = vrot.slane %v1043, 5
        %v1046 = vor.u32 %v1042, %v1045
        %v1047 = vrot.slane %v1046, 4
        %v1049 = vshll.u32 %v758, 16
        %v1051 = vrot.slane %v1049, 5
        %v1052 = vsel %vm774, %v1047, %v1051
        %v1053 = vshrl.u32 %v758, 16
        %v1055 = vrot.slane %v1053, 4
        %v1056 = vor.u32 %v1055, %v1051
        %v1057 = vrot.slane %v1056, 4
        %v1059 = vshll.u32 %v759, 16
        %v1061 = vrot.slane %v1059, 5
        %v1062 = vsel %vm774, %v1057, %v1061
        %v1064 = vshrl.u32 %v760, 16
        %v1066 = vrot.slane %v1064, 4
        %v1067 = vshll.u32 %v760, 16
        %v1069 = vrot.slane %v1067, 5
        %v1070 = vor.u32 %v1066, %v1069
        %v1071 = vrot.slane %v1070, 4
        %v1073 = vshll.u32 %v761, 16
        %v1075 = vrot.slane %v1073, 5
        %v1076 = vsel %vm774, %v1071, %v1075
        %v1077 = vshrl.u32 %v761, 16
        %v1079 = vrot.slane %v1077, 4
        %v1080 = vor.u32 %v1079, %v1075
        %v1081 = vrot.slane %v1080, 4
        %v1083 = vshll.u32 %v762, 16
        %v1085 = vrot.slane %v1083, 5
        %v1086 = vsel %vm774, %v1081, %v1085
        %v1088 = vshrl.u32 %v763, 16
        %v1090 = vrot.slane %v1088, 4
        %v1091 = vshll.u32 %v763, 16
        %v1093 = vrot.slane %v1091, 5
        %v1094 = vor.u32 %v1090, %v1093
        %v1095 = vrot.slane %v1094, 4
        %v1097 = vshll.u32 %v764, 16
        %v1099 = vrot.slane %v1097, 5
        %v1100 = vsel %vm774, %v1095, %v1099
        %v1101 = vshrl.u32 %v764, 16
        %v1103 = vrot.slane %v1101, 4
        %v1104 = vor.u32 %v1103, %v1099
        %v1105 = vrot.slane %v1104, 4
        %v1107 = vshll.u32 %v765, 16
        %v1109 = vrot.slane %v1107, 5
        %v1110 = vsel %vm774, %v1105, %v1109
        %v1112 = vshrl.u32 %v766, 16
        %v1114 = vrot.slane %v1112, 4
        %v1115 = vshll.u32 %v766, 16
        %v1117 = vrot.slane %v1115, 5
        %v1118 = vor.u32 %v1114, %v1117
        %v1119 = vrot.slane %v1118, 4
        %v1121 = vshll.u32 %v767, 16
        %v1123 = vrot.slane %v1121, 5
        %v1124 = vsel %vm774, %v1119, %v1123
        %v1125 = vshrl.u32 %v767, 16
        %v1127 = vrot.slane %v1125, 4
        %v1128 = vor.u32 %v1127, %v1123
        %v1129 = vrot.slane %v1128, 4
        %v1131 = vshll.u32 %v768, 16
        %v1133 = vrot.slane %v1131, 5
        %v1134 = vsel %vm774, %v1129, %v1133
        %v1136 = vshrl.u32 %v769, 16
        %v1138 = vrot.slane %v1136, 4
        %v1139 = vshll.u32 %v769, 16
        %v1141 = vrot.slane %v1139, 5
        %v1142 = vor.u32 %v1138, %v1141
        %v1143 = vrot.slane %v1142, 4
        %v1145 = vshll.u32 %v770, 16
        %v1147 = vrot.slane %v1145, 5
        %v1148 = vsel %vm774, %v1143, %v1147
        %v1149 = vshrl.u32 %v770, 16
        %v1151 = vrot.slane %v1149, 4
        %v1152 = vor.u32 %v1151, %v1147
        %v1153 = vrot.slane %v1152, 4
        %v1155 = vshll.u32 %v771, 16
        %v1157 = vrot.slane %v1155, 5
        %v1158 = vsel %vm774, %v1153, %v1157
        %s1159 = scalar_lea.vmem %s277, 4
        %v1160 = vld [vmem:[%s1159] sm:$0xf]
        %v1161 = vunpack.c.l.b16 %v788
        %v1162 = vunpack.c.l.b16 %v798
        %v1163 = vunpack.c.l.b16 %v812
        %v1164 = vunpack.c.l.b16 %v822
        %v1165 = vunpack.c.l.b16 %v836
        %v1166 = vunpack.c.l.b16 %v846
        %v1167 = vunpack.c.l.b16 %v860
        %v1168 = vunpack.c.l.b16 %v870
        %v1169 = vunpack.c.l.b16 %v884
        %v1170 = vunpack.c.l.b16 %v894
        %v1171 = vunpack.c.l.b16 %v908
        %v1172 = vunpack.c.l.b16 %v918
        %v1173 = vunpack.c.l.b16 %v932
        %v1174 = vunpack.c.l.b16 %v942
        %v1175 = vunpack.c.l.b16 %v956
        %v1176 = vunpack.c.l.b16 %v966
        %v1177 = vunpack.c.l.b16 %v980
        %v1178 = vunpack.c.l.b16 %v990
        %v1179 = vunpack.c.l.b16 %v1004
        %v1180 = vunpack.c.l.b16 %v1014
        %v1181 = vunpack.c.l.b16 %v1028
        %v1182 = vunpack.c.l.b16 %v1038
        %v1183 = vunpack.c.l.b16 %v1052
        %v1184 = vunpack.c.l.b16 %v1062
        %v1185 = vunpack.c.l.b16 %v1076
        %v1186 = vunpack.c.l.b16 %v1086
        %v1187 = vunpack.c.l.b16 %v1100
        %v1188 = vunpack.c.l.b16 %v1110
        %v1189 = vunpack.c.l.b16 %v1124
        %v1190 = vunpack.c.l.b16 %v1134
        %v1191 = vunpack.c.l.b16 %v1148
        %v1192 = vunpack.c.l.b16 %v1158
        %v1193 = vpack.c.b16 %v1162, %v1161
        %v1194 = vpack.c.b16 %v1164, %v1163
        %v1195 = vpack.c.b16 %v1166, %v1165
        %v1196 = vpack.c.b16 %v1168, %v1167
        %v1197 = vpack.c.b16 %v1170, %v1169
        %v1198 = vpack.c.b16 %v1172, %v1171
        %v1199 = vpack.c.b16 %v1174, %v1173
        %v1200 = vpack.c.b16 %v1176, %v1175
        %v1201 = vpack.c.b16 %v1178, %v1177
        %v1202 = vpack.c.b16 %v1180, %v1179
        %v1203 = vpack.c.b16 %v1182, %v1181
        %v1204 = vpack.c.b16 %v1184, %v1183
        %v1205 = vpack.c.b16 %v1186, %v1185
        %v1206 = vpack.c.b16 %v1188, %v1187
        %v1207 = vpack.c.b16 %v1190, %v1189
        %v1208 = vpack.c.b16 %v1192, %v1191
        %v1210 = vsel %vm478, %v1193, 0
        %v1213 = vsel %vm478, %v1194, 0
        %v1216 = vsel %vm478, %v1195, 0
        %v1219 = vsel %vm478, %v1196, 0
        %v1222 = vsel %vm478, %v1197, 0
        %v1225 = vsel %vm478, %v1198, 0
        %v1228 = vsel %vm478, %v1199, 0
        %v1231 = vsel %vm478, %v1200, 0
        %v1234 = vsel %vm478, %v1201, 0
        %v1237 = vsel %vm478, %v1202, 0
        %v1240 = vsel %vm478, %v1203, 0
        %v1243 = vsel %vm478, %v1204, 0
        %v1246 = vsel %vm478, %v1205, 0
        %v1249 = vsel %vm478, %v1206, 0
        %v1252 = vsel %vm478, %v1207, 0
        %v1255 = vsel %vm478, %v1208, 0
        %v1258 = vsel %vm527, %v1160, 0
        %1260 = vmatprep.subr.bf16.mxu0 0
        %1261 = vmatpush1.bf16.msra.mxu0 %v1258
        %1262 = vmatprep.subr.bf16.mxu0 0
        %1263 = vmatpush1.bf16.msra.mxu0 0
        %1264 = vmatprep.subr.bf16.mxu0 0
        %1265 = vmatpush1.bf16.msra.mxu0 0
        %1266 = vmatprep.subr.bf16.mxu0 0
        %1267 = vmatpush1.bf16.msra.mxu0 0
        %1268 = vmatprep.subr.bf16.mxu0 0
        %1269 = vmatpush1.bf16.msra.mxu0 0
        %1270 = vmatprep.subr.bf16.mxu0 0
        %1271 = vmatpush1.bf16.msra.mxu0 0
        %1272 = vmatprep.subr.bf16.mxu0 0
        %1273 = vmatpush1.bf16.msra.mxu0 0
        %1274 = vmatprep.subr.bf16.mxu0 0
        %1275 = vmatpush1.bf16.msra.mxu0 0
        %1276 = vmatprep.subr.bf16.mxu0 0
        %1277 = vmatpush1.bf16.msra.mxu0 0
        %1278 = vmatprep.subr.bf16.mxu0 0
        %1279 = vmatpush1.bf16.msra.mxu0 0
        %1280 = vmatprep.subr.bf16.mxu0 0
        %1281 = vmatpush1.bf16.msra.mxu0 0
        %1282 = vmatprep.subr.bf16.mxu0 0
        %1283 = vmatpush1.bf16.msra.mxu0 0
        %1284 = vmatprep.subr.bf16.mxu0 0
        %1285 = vmatpush1.bf16.msra.mxu0 0
        %1286 = vmatprep.subr.bf16.mxu0 0
        %1287 = vmatpush1.bf16.msra.mxu0 0
        %1288 = vmatprep.subr.bf16.mxu0 0
        %1289 = vmatpush1.bf16.msra.mxu0 0
        %1290 = vmatprep.subr.bf16.mxu0 0
        %1291 = vmatpush1.bf16.msra.mxu0 0
        %1292 = vmatprep.mubr.bf16.mxu0 0
        %1293 = vmatmul.mubr.bf16.gmra.mrb[0].mxu0 %v1210
        %v1294 = vpop.f32.mrb[0].mxu0
        %v1295 = vadd.f32 0.0, %v1294
        %v1296 = vpop.f32.mrb[0].mxu0
        %v1297 = vpop.f32.mrb[0].mxu0
        %v1298 = vadd.f32 0.0, %v1297
        %v1299 = vpop.f32.mrb[0].mxu0
        %1300 = vmatprep.mubr.bf16.mxu0 0
        %1301 = vmatmul.mubr.bf16.gmra.mrb[0].mxu0 %v1213
        %v1302 = vpop.f32.mrb[0].mxu0
        %v1303 = vadd.f32 0.0, %v1302
        %v1304 = vpop.f32.mrb[0].mxu0
        %v1305 = vpop.f32.mrb[0].mxu0
        %v1306 = vadd.f32 0.0, %v1305
        %v1307 = vpop.f32.mrb[0].mxu0
        %1308 = vmatprep.mubr.bf16.mxu0 0
        %1309 = vmatmul.mubr.bf16.gmra.mrb[0].mxu0 %v1216
        %v1310 = vpop.f32.mrb[0].mxu0
        %v1311 = vadd.f32 0.0, %v1310
        %v1312 = vpop.f32.mrb[0].mxu0
        %v1313 = vpop.f32.mrb[0].mxu0
        %v1314 = vadd.f32 0.0, %v1313
        %v1315 = vpop.f32.mrb[0].mxu0
        %1316 = vmatprep.mubr.bf16.mxu0 0
        %1317 = vmatmul.mubr.bf16.gmra.mrb[0].mxu0 %v1219
        %v1318 = vpop.f32.mrb[0].mxu0
        %v1319 = vadd.f32 0.0, %v1318
        %v1320 = vpop.f32.mrb[0].mxu0
        %v1321 = vpop.f32.mrb[0].mxu0
        %v1322 = vadd.f32 0.0, %v1321
        %v1323 = vpop.f32.mrb[0].mxu0
        %1324 = vmatprep.mubr.bf16.mxu0 0
        %1325 = vmatmul.mubr.bf16.gmra.mrb[0].mxu0 %v1222
        %v1326 = vpop.f32.mrb[0].mxu0
        %v1327 = vadd.f32 0.0, %v1326
        %v1328 = vpop.f32.mrb[0].mxu0
        %v1329 = vpop.f32.mrb[0].mxu0
        %v1330 = vadd.f32 0.0, %v1329
        %v1331 = vpop.f32.mrb[0].mxu0
        %1332 = vmatprep.mubr.bf16.mxu0 0
        %1333 = vmatmul.mubr.bf16.gmra.mrb[0].mxu0 %v1225
        %v1334 = vpop.f32.mrb[0].mxu0
        %v1335 = vadd.f32 0.0, %v1334
        %v1336 = vpop.f32.mrb[0].mxu0
        %v1337 = vpop.f32.mrb[0].mxu0
        %v1338 = vadd.f32 0.0, %v1337
        %v1339 = vpop.f32.mrb[0].mxu0
        %1340 = vmatprep.mubr.bf16.mxu0 0
        %1341 = vmatmul.mubr.bf16.gmra.mrb[0].mxu0 %v1228
        %v1342 = vpop.f32.mrb[0].mxu0
        %v1343 = vadd.f32 0.0, %v1342
        %v1344 = vpop.f32.mrb[0].mxu0
        %v1345 = vpop.f32.mrb[0].mxu0
        %v1346 = vadd.f32 0.0, %v1345
        %v1347 = vpop.f32.mrb[0].mxu0
        %1348 = vmatprep.mubr.bf16.mxu0 0
        %1349 = vmatmul.mubr.bf16.gmra.mrb[0].mxu0 %v1231
        %v1350 = vpop.f32.mrb[0].mxu0
        %v1351 = vadd.f32 0.0, %v1350
        %v1352 = vpop.f32.mrb[0].mxu0
        %v1353 = vpop.f32.mrb[0].mxu0
        %v1354 = vadd.f32 0.0, %v1353
        %v1355 = vpop.f32.mrb[0].mxu0
        %1356 = vmatprep.mubr.bf16.mxu0 0
        %1357 = vmatmul.mubr.bf16.gmra.mrb[0].mxu0 %v1234
        %v1358 = vpop.f32.mrb[0].mxu0
        %v1359 = vadd.f32 0.0, %v1358
        %v1360 = vpop.f32.mrb[0].mxu0
        %v1361 = vpop.f32.mrb[0].mxu0
        %v1362 = vadd.f32 0.0, %v1361
        %v1363 = vpop.f32.mrb[0].mxu0
        %1364 = vmatprep.mubr.bf16.mxu0 0
        %1365 = vmatmul.mubr.bf16.gmra.mrb[0].mxu0 %v1237
        %v1366 = vpop.f32.mrb[0].mxu0
        %v1367 = vadd.f32 0.0, %v1366
        %v1368 = vpop.f32.mrb[0].mxu0
        %v1369 = vpop.f32.mrb[0].mxu0
        %v1370 = vadd.f32 0.0, %v1369
        %v1371 = vpop.f32.mrb[0].mxu0
        %1372 = vmatprep.mubr.bf16.mxu0 0
        %1373 = vmatmul.mubr.bf16.gmra.mrb[0].mxu0 %v1240
        %v1374 = vpop.f32.mrb[0].mxu0
        %v1375 = vadd.f32 0.0, %v1374
        %v1376 = vpop.f32.mrb[0].mxu0
        %v1377 = vpop.f32.mrb[0].mxu0
        %v1378 = vadd.f32 0.0, %v1377
        %v1379 = vpop.f32.mrb[0].mxu0
        %1380 = vmatprep.mubr.bf16.mxu0 0
        %1381 = vmatmul.mubr.bf16.gmra.mrb[0].mxu0 %v1243
        %v1382 = vpop.f32.mrb[0].mxu0
        %v1383 = vadd.f32 0.0, %v1382
        %v1384 = vpop.f32.mrb[0].mxu0
        %v1385 = vpop.f32.mrb[0].mxu0
        %v1386 = vadd.f32 0.0, %v1385
        %v1387 = vpop.f32.mrb[0].mxu0
        %1388 = vmatprep.mubr.bf16.mxu0 0
        %1389 = vmatmul.mubr.bf16.gmra.mrb[0].mxu0 %v1246
        %v1390 = vpop.f32.mrb[0].mxu0
        %v1391 = vadd.f32 0.0, %v1390
        %v1392 = vpop.f32.mrb[0].mxu0
        %v1393 = vpop.f32.mrb[0].mxu0
        %v1394 = vadd.f32 0.0, %v1393
        %v1395 = vpop.f32.mrb[0].mxu0
        %1396 = vmatprep.mubr.bf16.mxu0 0
        %1397 = vmatmul.mubr.bf16.gmra.mrb[0].mxu0 %v1249
        %v1398 = vpop.f32.mrb[0].mxu0
        %v1399 = vadd.f32 0.0, %v1398
        %v1400 = vpop.f32.mrb[0].mxu0
        %v1401 = vpop.f32.mrb[0].mxu0
        %v1402 = vadd.f32 0.0, %v1401
        %v1403 = vpop.f32.mrb[0].mxu0
        %1404 = vmatprep.mubr.bf16.mxu0 0
        %1405 = vmatmul.mubr.bf16.gmra.mrb[0].mxu0 %v1252
        %v1406 = vpop.f32.mrb[0].mxu0
        %v1407 = vadd.f32 0.0, %v1406
        %v1408 = vpop.f32.mrb[0].mxu0
        %v1409 = vpop.f32.mrb[0].mxu0
        %v1410 = vadd.f32 0.0, %v1409
        %v1411 = vpop.f32.mrb[0].mxu0
        %1412 = vmatprep.mubr.bf16.mxu0 0
        %1413 = vmatmul.mubr.bf16.gmra.mrb[0].mxu0 %v1255
        %v1414 = vpop.f32.mrb[0].mxu0
        %v1415 = vadd.f32 0.0, %v1414
        %v1416 = vpop.f32.mrb[0].mxu0
        %v1417 = vpop.f32.mrb[0].mxu0
        %v1418 = vadd.f32 0.0, %v1417
        %v1419 = vpop.f32.mrb[0].mxu0
        %1420 = vdwg.mxu0
        %v1421 = vadd.f32 %v692, %v1295
        %v1422 = vadd.f32 %v693, %v1298
        %v1423 = vadd.f32 %v694, %v1303
        %v1424 = vadd.f32 %v695, %v1306
        %v1425 = vadd.f32 %v696, %v1311
        %v1426 = vadd.f32 %v697, %v1314
        %v1427 = vadd.f32 %v698, %v1319
        %v1428 = vadd.f32 %v699, %v1322
        %v1429 = vadd.f32 %v700, %v1327
        %v1430 = vadd.f32 %v701, %v1330
        %v1431 = vadd.f32 %v702, %v1335
        %v1432 = vadd.f32 %v703, %v1338
        %v1433 = vadd.f32 %v704, %v1343
        %v1434 = vadd.f32 %v705, %v1346
        %v1435 = vadd.f32 %v706, %v1351
        %v1436 = vadd.f32 %v707, %v1354
        %v1437 = vadd.f32 %v708, %v1359
        %v1438 = vadd.f32 %v709, %v1362
        %v1439 = vadd.f32 %v710, %v1367
        %v1440 = vadd.f32 %v711, %v1370
        %v1441 = vadd.f32 %v712, %v1375
        %v1442 = vadd.f32 %v713, %v1378
        %v1443 = vadd.f32 %v714, %v1383
        %v1444 = vadd.f32 %v715, %v1386
        %v1445 = vadd.f32 %v716, %v1391
        %v1446 = vadd.f32 %v717, %v1394
        %v1447 = vadd.f32 %v718, %v1399
        %v1448 = vadd.f32 %v719, %v1402
        %v1449 = vadd.f32 %v720, %v1407
        %v1450 = vadd.f32 %v721, %v1410
        %v1451 = vadd.f32 %v722, %v1415
        %v1452 = vadd.f32 %v723, %v1418
        %v1453 = vld [vmem:[%s271] sm:$0xe]
        %v1454 = vld [vmem:[%s271 + $0xc] sm:$0xe]
        %v1455 = vld [vmem:[%s271 + $0x18] sm:$0xe]
        %v1456 = vld [vmem:[%s271 + $0x24] sm:$0xe]
        %v1457 = vld [vmem:[%s271 + $0x30] sm:$0xe]
        %v1458 = vld [vmem:[%s271 + $0x3c] sm:$0xe]
        %v1459 = vld [vmem:[%s271 + $0x48] sm:$0xe]
        %v1460 = vld [vmem:[%s271 + $0x54] sm:$0xe]
        %v1461 = vld [vmem:[%s271 + $0x60] sm:$0xe]
        %v1462 = vld [vmem:[%s271 + $0x6c] sm:$0xe]
        %v1463 = vld [vmem:[%s271 + $0x78] sm:$0xe]
        %v1464 = vld [vmem:[%s271 + $0x84] sm:$0xe]
        %v1465 = vld [vmem:[%s271 + $0x90] sm:$0xe]
        %v1466 = vld [vmem:[%s271 + $0x9c] sm:$0xe]
        %v1467 = vld [vmem:[%s271 + $0xa8] sm:$0xe]
        %v1468 = vld [vmem:[%s271 + $0xb4] sm:$0xe]
        %vm1517 = vcmask 1042432
        %vm1518 = vcmask 1046532
        %vm1519 = vmor %vm1517, %vm1518
        %v1520 = vrot.slane %v1453, 5
        %v1521 = vrot.slane %v1520, 4
        %v1522 = vrot.slane %v725, 5
        %v1523 = vsel %vm1519, %v1521, %v1522
        %v1524 = vrot.slane %v1522, 4
        %v1525 = vrot.slane %v726, 5
        %v1526 = vsel %vm1519, %v1524, %v1525
        %v1527 = vrot.slane %v1454, 5
        %v1528 = vrot.slane %v1527, 4
        %v1529 = vrot.slane %v728, 5
        %v1530 = vsel %vm1519, %v1528, %v1529
        %v1531 = vrot.slane %v1529, 4
        %v1532 = vrot.slane %v729, 5
        %v1533 = vsel %vm1519, %v1531, %v1532
        %v1534 = vrot.slane %v1455, 5
        %v1535 = vrot.slane %v1534, 4
        %v1536 = vrot.slane %v731, 5
        %v1537 = vsel %vm1519, %v1535, %v1536
        %v1538 = vrot.slane %v1536, 4
        %v1539 = vrot.slane %v732, 5
        %v1540 = vsel %vm1519, %v1538, %v1539
        %v1541 = vrot.slane %v1456, 5
        %v1542 = vrot.slane %v1541, 4
        %v1543 = vrot.slane %v734, 5
        %v1544 = vsel %vm1519, %v1542, %v1543
        %v1545 = vrot.slane %v1543, 4
        %v1546 = vrot.slane %v735, 5
        %v1547 = vsel %vm1519, %v1545, %v1546
        %v1548 = vrot.slane %v1457, 5
        %v1549 = vrot.slane %v1548, 4
        %v1550 = vrot.slane %v737, 5
        %v1551 = vsel %vm1519, %v1549, %v1550
        %v1552 = vrot.slane %v1550, 4
        %v1553 = vrot.slane %v738, 5
        %v1554 = vsel %vm1519, %v1552, %v1553
        %v1555 = vrot.slane %v1458, 5
        %v1556 = vrot.slane %v1555, 4
        %v1557 = vrot.slane %v740, 5
        %v1558 = vsel %vm1519, %v1556, %v1557
        %v1559 = vrot.slane %v1557, 4
        %v1560 = vrot.slane %v741, 5
        %v1561 = vsel %vm1519, %v1559, %v1560
        %v1562 = vrot.slane %v1459, 5
        %v1563 = vrot.slane %v1562, 4
        %v1564 = vrot.slane %v743, 5
        %v1565 = vsel %vm1519, %v1563, %v1564
        %v1566 = vrot.slane %v1564, 4
        %v1567 = vrot.slane %v744, 5
        %v1568 = vsel %vm1519, %v1566, %v1567
        %v1569 = vrot.slane %v1460, 5
        %v1570 = vrot.slane %v1569, 4
        %v1571 = vrot.slane %v746, 5
        %v1572 = vsel %vm1519, %v1570, %v1571
        %v1573 = vrot.slane %v1571, 4
        %v1574 = vrot.slane %v747, 5
        %v1575 = vsel %vm1519, %v1573, %v1574
        %v1576 = vrot.slane %v1461, 5
        %v1577 = vrot.slane %v1576, 4
        %v1578 = vrot.slane %v749, 5
        %v1579 = vsel %vm1519, %v1577, %v1578
        %v1580 = vrot.slane %v1578, 4
        %v1581 = vrot.slane %v750, 5
        %v1582 = vsel %vm1519, %v1580, %v1581
        %v1583 = vrot.slane %v1462, 5
        %v1584 = vrot.slane %v1583, 4
        %v1585 = vrot.slane %v752, 5
        %v1586 = vsel %vm1519, %v1584, %v1585
        %v1587 = vrot.slane %v1585, 4
        %v1588 = vrot.slane %v753, 5
        %v1589 = vsel %vm1519, %v1587, %v1588
        %v1590 = vrot.slane %v1463, 5
        %v1591 = vrot.slane %v1590, 4
        %v1592 = vrot.slane %v755, 5
        %v1593 = vsel %vm1519, %v1591, %v1592
        %v1594 = vrot.slane %v1592, 4
        %v1595 = vrot.slane %v756, 5
        %v1596 = vsel %vm1519, %v1594, %v1595
        %v1597 = vrot.slane %v1464, 5
        %v1598 = vrot.slane %v1597, 4
        %v1599 = vrot.slane %v758, 5
        %v1600 = vsel %vm1519, %v1598, %v1599
        %v1601 = vrot.slane %v1599, 4
        %v1602 = vrot.slane %v759, 5
        %v1603 = vsel %vm1519, %v1601, %v1602
        %v1604 = vrot.slane %v1465, 5
        %v1605 = vrot.slane %v1604, 4
        %v1606 = vrot.slane %v761, 5
        %v1607 = vsel %vm1519, %v1605, %v1606
        %v1608 = vrot.slane %v1606, 4
        %v1609 = vrot.slane %v762, 5
        %v1610 = vsel %vm1519, %v1608, %v1609
        %v1611 = vrot.slane %v1466, 5
        %v1612 = vrot.slane %v1611, 4
        %v1613 = vrot.slane %v764, 5
        %v1614 = vsel %vm1519, %v1612, %v1613
        %v1615 = vrot.slane %v1613, 4
        %v1616 = vrot.slane %v765, 5
        %v1617 = vsel %vm1519, %v1615, %v1616
        %v1618 = vrot.slane %v1467, 5
        %v1619 = vrot.slane %v1618, 4
        %v1620 = vrot.slane %v767, 5
        %v1621 = vsel %vm1519, %v1619, %v1620
        %v1622 = vrot.slane %v1620, 4
        %v1623 = vrot.slane %v768, 5
        %v1624 = vsel %vm1519, %v1622, %v1623
        %v1625 = vrot.slane %v1468, 5
        %v1626 = vrot.slane %v1625, 4
        %v1627 = vrot.slane %v770, 5
        %v1628 = vsel %vm1519, %v1626, %v1627
        %v1629 = vrot.slane %v1627, 4
        %v1630 = vrot.slane %v771, 5
        %v1631 = vsel %vm1519, %v1629, %v1630
        %s1632 = scalar_lea.vmem %s277, 8
        %v1633 = vld [vmem:[%s1632] sm:$0xf]
        %v1634 = vunpack.c.l.b16 %v1523
        %v1635 = vunpack.c.l.b16 %v1526
        %v1636 = vunpack.c.l.b16 %v1530
        %v1637 = vunpack.c.l.b16 %v1533
        %v1638 = vunpack.c.l.b16 %v1537
        %v1639 = vunpack.c.l.b16 %v1540
        %v1640 = vunpack.c.l.b16 %v1544
        %v1641 = vunpack.c.l.b16 %v1547
        %v1642 = vunpack.c.l.b16 %v1551
        %v1643 = vunpack.c.l.b16 %v1554
        %v1644 = vunpack.c.l.b16 %v1558
        %v1645 = vunpack.c.l.b16 %v1561
        %v1646 = vunpack.c.l.b16 %v1565
        %v1647 = vunpack.c.l.b16 %v1568
        %v1648 = vunpack.c.l.b16 %v1572
        %v1649 = vunpack.c.l.b16 %v1575
        %v1650 = vunpack.c.l.b16 %v1579
        %v1651 = vunpack.c.l.b16 %v1582
        %v1652 = vunpack.c.l.b16 %v1586
        %v1653 = vunpack.c.l.b16 %v1589
        %v1654 = vunpack.c.l.b16 %v1593
        %v1655 = vunpack.c.l.b16 %v1596
        %v1656 = vunpack.c.l.b16 %v1600
        %v1657 = vunpack.c.l.b16 %v1603
        %v1658 = vunpack.c.l.b16 %v1607
        %v1659 = vunpack.c.l.b16 %v1610
        %v1660 = vunpack.c.l.b16 %v1614
        %v1661 = vunpack.c.l.b16 %v1617
        %v1662 = vunpack.c.l.b16 %v1621
        %v1663 = vunpack.c.l.b16 %v1624
        %v1664 = vunpack.c.l.b16 %v1628
        %v1665 = vunpack.c.l.b16 %v1631
        %v1666 = vpack.c.b16 %v1635, %v1634
        %v1667 = vpack.c.b16 %v1637, %v1636
        %v1668 = vpack.c.b16 %v1639, %v1638
        %v1669 = vpack.c.b16 %v1641, %v1640
        %v1670 = vpack.c.b16 %v1643, %v1642
        %v1671 = vpack.c.b16 %v1645, %v1644
        %v1672 = vpack.c.b16 %v1647, %v1646
        %v1673 = vpack.c.b16 %v1649, %v1648
        %v1674 = vpack.c.b16 %v1651, %v1650
        %v1675 = vpack.c.b16 %v1653, %v1652
        %v1676 = vpack.c.b16 %v1655, %v1654
        %v1677 = vpack.c.b16 %v1657, %v1656
        %v1678 = vpack.c.b16 %v1659, %v1658
        %v1679 = vpack.c.b16 %v1661, %v1660
        %v1680 = vpack.c.b16 %v1663, %v1662
        %v1681 = vpack.c.b16 %v1665, %v1664
        %v1683 = vsel %vm478, %v1666, 0
        %v1686 = vsel %vm478, %v1667, 0
        %v1689 = vsel %vm478, %v1668, 0
        %v1692 = vsel %vm478, %v1669, 0
        %v1695 = vsel %vm478, %v1670, 0
        %v1698 = vsel %vm478, %v1671, 0
        %v1701 = vsel %vm478, %v1672, 0
        %v1704 = vsel %vm478, %v1673, 0
        %v1707 = vsel %vm478, %v1674, 0
        %v1710 = vsel %vm478, %v1675, 0
        %v1713 = vsel %vm478, %v1676, 0
        %v1716 = vsel %vm478, %v1677, 0
        %v1719 = vsel %vm478, %v1678, 0
        %v1722 = vsel %vm478, %v1679, 0
        %v1725 = vsel %vm478, %v1680, 0
        %v1728 = vsel %vm478, %v1681, 0
        %v1731 = vsel %vm527, %v1633, 0
        %1733 = vmatprep.subr.bf16.mxu0 0
        %1734 = vmatpush1.bf16.msra.mxu0 %v1731
        %1735 = vmatprep.subr.bf16.mxu0 0
        %1736 = vmatpush1.bf16.msra.mxu0 0
        %1737 = vmatprep.subr.bf16.mxu0 0
        %1738 = vmatpush1.bf16.msra.mxu0 0
        %1739 = vmatprep.subr.bf16.mxu0 0
        %1740 = vmatpush1.bf16.msra.mxu0 0
        %1741 = vmatprep.subr.bf16.mxu0 0
        %1742 = vmatpush1.bf16.msra.mxu0 0
        %1743 = vmatprep.subr.bf16.mxu0 0
        %1744 = vmatpush1.bf16.msra.mxu0 0
        %1745 = vmatprep.subr.bf16.mxu0 0
        %1746 = vmatpush1.bf16.msra.mxu0 0
        %1747 = vmatprep.subr.bf16.mxu0 0
        %1748 = vmatpush1.bf16.msra.mxu0 0
        %1749 = vmatprep.subr.bf16.mxu0 0
        %1750 = vmatpush1.bf16.msra.mxu0 0
        %1751 = vmatprep.subr.bf16.mxu0 0
        %1752 = vmatpush1.bf16.msra.mxu0 0
        %1753 = vmatprep.subr.bf16.mxu0 0
        %1754 = vmatpush1.bf16.msra.mxu0 0
        %1755 = vmatprep.subr.bf16.mxu0 0
        %1756 = vmatpush1.bf16.msra.mxu0 0
        %1757 = vmatprep.subr.bf16.mxu0 0
        %1758 = vmatpush1.bf16.msra.mxu0 0
        %1759 = vmatprep.subr.bf16.mxu0 0
        %1760 = vmatpush1.bf16.msra.mxu0 0
        %1761 = vmatprep.subr.bf16.mxu0 0
        %1762 = vmatpush1.bf16.msra.mxu0 0
        %1763 = vmatprep.subr.bf16.mxu0 0
        %1764 = vmatpush1.bf16.msra.mxu0 0
        %1765 = vmatprep.mubr.bf16.mxu0 0
        %1766 = vmatmul.mubr.bf16.gmra.mrb[0].mxu0 %v1683
        %v1767 = vpop.f32.mrb[0].mxu0
        %v1768 = vadd.f32 0.0, %v1767
        %v1769 = vpop.f32.mrb[0].mxu0
        %v1770 = vpop.f32.mrb[0].mxu0
        %v1771 = vadd.f32 0.0, %v1770
        %v1772 = vpop.f32.mrb[0].mxu0
        %1773 = vmatprep.mubr.bf16.mxu0 0
        %1774 = vmatmul.mubr.bf16.gmra.mrb[0].mxu0 %v1686
        %v1775 = vpop.f32.mrb[0].mxu0
        %v1776 = vadd.f32 0.0, %v1775
        %v1777 = vpop.f32.mrb[0].mxu0
        %v1778 = vpop.f32.mrb[0].mxu0
        %v1779 = vadd.f32 0.0, %v1778
        %v1780 = vpop.f32.mrb[0].mxu0
        %1781 = vmatprep.mubr.bf16.mxu0 0
        %1782 = vmatmul.mubr.bf16.gmra.mrb[0].mxu0 %v1689
        %v1783 = vpop.f32.mrb[0].mxu0
        %v1784 = vadd.f32 0.0, %v1783
        %v1785 = vpop.f32.mrb[0].mxu0
        %v1786 = vpop.f32.mrb[0].mxu0
        %v1787 = vadd.f32 0.0, %v1786
        %v1788 = vpop.f32.mrb[0].mxu0
        %1789 = vmatprep.mubr.bf16.mxu0 0
        %1790 = vmatmul.mubr.bf16.gmra.mrb[0].mxu0 %v1692
        %v1791 = vpop.f32.mrb[0].mxu0
        %v1792 = vadd.f32 0.0, %v1791
        %v1793 = vpop.f32.mrb[0].mxu0
        %v1794 = vpop.f32.mrb[0].mxu0
        %v1795 = vadd.f32 0.0, %v1794
        %v1796 = vpop.f32.mrb[0].mxu0
        %1797 = vmatprep.mubr.bf16.mxu0 0
        %1798 = vmatmul.mubr.bf16.gmra.mrb[0].mxu0 %v1695
        %v1799 = vpop.f32.mrb[0].mxu0
        %v1800 = vadd.f32 0.0, %v1799
        %v1801 = vpop.f32.mrb[0].mxu0
        %v1802 = vpop.f32.mrb[0].mxu0
        %v1803 = vadd.f32 0.0, %v1802
        %v1804 = vpop.f32.mrb[0].mxu0
        %1805 = vmatprep.mubr.bf16.mxu0 0
        %1806 = vmatmul.mubr.bf16.gmra.mrb[0].mxu0 %v1698
        %v1807 = vpop.f32.mrb[0].mxu0
        %v1808 = vadd.f32 0.0, %v1807
        %v1809 = vpop.f32.mrb[0].mxu0
        %v1810 = vpop.f32.mrb[0].mxu0
        %v1811 = vadd.f32 0.0, %v1810
        %v1812 = vpop.f32.mrb[0].mxu0
        %1813 = vmatprep.mubr.bf16.mxu0 0
        %1814 = vmatmul.mubr.bf16.gmra.mrb[0].mxu0 %v1701
        %v1815 = vpop.f32.mrb[0].mxu0
        %v1816 = vadd.f32 0.0, %v1815
        %v1817 = vpop.f32.mrb[0].mxu0
        %v1818 = vpop.f32.mrb[0].mxu0
        %v1819 = vadd.f32 0.0, %v1818
        %v1820 = vpop.f32.mrb[0].mxu0
        %1821 = vmatprep.mubr.bf16.mxu0 0
        %1822 = vmatmul.mubr.bf16.gmra.mrb[0].mxu0 %v1704
        %v1823 = vpop.f32.mrb[0].mxu0
        %v1824 = vadd.f32 0.0, %v1823
        %v1825 = vpop.f32.mrb[0].mxu0
        %v1826 = vpop.f32.mrb[0].mxu0
        %v1827 = vadd.f32 0.0, %v1826
        %v1828 = vpop.f32.mrb[0].mxu0
        %1829 = vmatprep.mubr.bf16.mxu0 0
        %1830 = vmatmul.mubr.bf16.gmra.mrb[0].mxu0 %v1707
        %v1831 = vpop.f32.mrb[0].mxu0
        %v1832 = vadd.f32 0.0, %v1831
        %v1833 = vpop.f32.mrb[0].mxu0
        %v1834 = vpop.f32.mrb[0].mxu0
        %v1835 = vadd.f32 0.0, %v1834
        %v1836 = vpop.f32.mrb[0].mxu0
        %1837 = vmatprep.mubr.bf16.mxu0 0
        %1838 = vmatmul.mubr.bf16.gmra.mrb[0].mxu0 %v1710
        %v1839 = vpop.f32.mrb[0].mxu0
        %v1840 = vadd.f32 0.0, %v1839
        %v1841 = vpop.f32.mrb[0].mxu0
        %v1842 = vpop.f32.mrb[0].mxu0
        %v1843 = vadd.f32 0.0, %v1842
        %v1844 = vpop.f32.mrb[0].mxu0
        %1845 = vmatprep.mubr.bf16.mxu0 0
        %1846 = vmatmul.mubr.bf16.gmra.mrb[0].mxu0 %v1713
        %v1847 = vpop.f32.mrb[0].mxu0
        %v1848 = vadd.f32 0.0, %v1847
        %v1849 = vpop.f32.mrb[0].mxu0
        %v1850 = vpop.f32.mrb[0].mxu0
        %v1851 = vadd.f32 0.0, %v1850
        %v1852 = vpop.f32.mrb[0].mxu0
        %1853 = vmatprep.mubr.bf16.mxu0 0
        %1854 = vmatmul.mubr.bf16.gmra.mrb[0].mxu0 %v1716
        %v1855 = vpop.f32.mrb[0].mxu0
        %v1856 = vadd.f32 0.0, %v1855
        %v1857 = vpop.f32.mrb[0].mxu0
        %v1858 = vpop.f32.mrb[0].mxu0
        %v1859 = vadd.f32 0.0, %v1858
        %v1860 = vpop.f32.mrb[0].mxu0
        %1861 = vmatprep.mubr.bf16.mxu0 0
        %1862 = vmatmul.mubr.bf16.gmra.mrb[0].mxu0 %v1719
        %v1863 = vpop.f32.mrb[0].mxu0
        %v1864 = vadd.f32 0.0, %v1863
        %v1865 = vpop.f32.mrb[0].mxu0
        %v1866 = vpop.f32.mrb[0].mxu0
        %v1867 = vadd.f32 0.0, %v1866
        %v1868 = vpop.f32.mrb[0].mxu0
        %1869 = vmatprep.mubr.bf16.mxu0 0
        %1870 = vmatmul.mubr.bf16.gmra.mrb[0].mxu0 %v1722
        %v1871 = vpop.f32.mrb[0].mxu0
        %v1872 = vadd.f32 0.0, %v1871
        %v1873 = vpop.f32.mrb[0].mxu0
        %v1874 = vpop.f32.mrb[0].mxu0
        %v1875 = vadd.f32 0.0, %v1874
        %v1876 = vpop.f32.mrb[0].mxu0
        %1877 = vmatprep.mubr.bf16.mxu0 0
        %1878 = vmatmul.mubr.bf16.gmra.mrb[0].mxu0 %v1725
        %v1879 = vpop.f32.mrb[0].mxu0
        %v1880 = vadd.f32 0.0, %v1879
        %v1881 = vpop.f32.mrb[0].mxu0
        %v1882 = vpop.f32.mrb[0].mxu0
        %v1883 = vadd.f32 0.0, %v1882
        %v1884 = vpop.f32.mrb[0].mxu0
        %1885 = vmatprep.mubr.bf16.mxu0 0
        %1886 = vmatmul.mubr.bf16.gmra.mrb[0].mxu0 %v1728
        %v1887 = vpop.f32.mrb[0].mxu0
        %v1888 = vadd.f32 0.0, %v1887
        %v1889 = vpop.f32.mrb[0].mxu0
        %v1890 = vpop.f32.mrb[0].mxu0
        %v1891 = vadd.f32 0.0, %v1890
        %v1892 = vpop.f32.mrb[0].mxu0
        %1893 = vdwg.mxu0
        %v1894 = vadd.f32 %v1421, %v1768
        %v1895 = vadd.f32 %v1422, %v1771
        %v1896 = vadd.f32 %v1423, %v1776
        %v1897 = vadd.f32 %v1424, %v1779
        %v1898 = vadd.f32 %v1425, %v1784
        %v1899 = vadd.f32 %v1426, %v1787
        %v1900 = vadd.f32 %v1427, %v1792
        %v1901 = vadd.f32 %v1428, %v1795
        %v1902 = vadd.f32 %v1429, %v1800
        %v1903 = vadd.f32 %v1430, %v1803
        %v1904 = vadd.f32 %v1431, %v1808
        %v1905 = vadd.f32 %v1432, %v1811
        %v1906 = vadd.f32 %v1433, %v1816
        %v1907 = vadd.f32 %v1434, %v1819
        %v1908 = vadd.f32 %v1435, %v1824
        %v1909 = vadd.f32 %v1436, %v1827
        %v1910 = vadd.f32 %v1437, %v1832
        %v1911 = vadd.f32 %v1438, %v1835
        %v1912 = vadd.f32 %v1439, %v1840
        %v1913 = vadd.f32 %v1440, %v1843
        %v1914 = vadd.f32 %v1441, %v1848
        %v1915 = vadd.f32 %v1442, %v1851
        %v1916 = vadd.f32 %v1443, %v1856
        %v1917 = vadd.f32 %v1444, %v1859
        %v1918 = vadd.f32 %v1445, %v1864
        %v1919 = vadd.f32 %v1446, %v1867
        %v1920 = vadd.f32 %v1447, %v1872
        %v1921 = vadd.f32 %v1448, %v1875
        %v1922 = vadd.f32 %v1449, %v1880
        %v1923 = vadd.f32 %v1450, %v1883
        %v1924 = vadd.f32 %v1451, %v1888
        %v1925 = vadd.f32 %v1452, %v1891
        %s1926 = scalar_lea.vmem %s271, 12
        %v1927 = vld [vmem:[%s1926] sm:$0xf]
        %v1928 = vld [vmem:[%s1926 + $0x4] sm:$0xf]
        %v1929 = vld [vmem:[%s1926 + $0xc] sm:$0xf]
        %v1930 = vld [vmem:[%s1926 + $0x10] sm:$0xf]
        %v1931 = vld [vmem:[%s1926 + $0x18] sm:$0xf]
        %v1932 = vld [vmem:[%s1926 + $0x1c] sm:$0xf]
        %v1933 = vld [vmem:[%s1926 + $0x24] sm:$0xf]
        %v1934 = vld [vmem:[%s1926 + $0x28] sm:$0xf]
        %v1935 = vld [vmem:[%s1926 + $0x30] sm:$0xf]
        %v1936 = vld [vmem:[%s1926 + $0x34] sm:$0xf]
        %v1937 = vld [vmem:[%s1926 + $0x3c] sm:$0xf]
        %v1938 = vld [vmem:[%s1926 + $0x40] sm:$0xf]
        %v1939 = vld [vmem:[%s1926 + $0x48] sm:$0xf]
        %v1940 = vld [vmem:[%s1926 + $0x4c] sm:$0xf]
        %v1941 = vld [vmem:[%s1926 + $0x54] sm:$0xf]
        %v1942 = vld [vmem:[%s1926 + $0x58] sm:$0xf]
        %v1943 = vld [vmem:[%s1926 + $0x60] sm:$0xf]
        %v1944 = vld [vmem:[%s1926 + $0x64] sm:$0xf]
        %v1945 = vld [vmem:[%s1926 + $0x6c] sm:$0xf]
        %v1946 = vld [vmem:[%s1926 + $0x70] sm:$0xf]
        %v1947 = vld [vmem:[%s1926 + $0x78] sm:$0xf]
        %v1948 = vld [vmem:[%s1926 + $0x7c] sm:$0xf]
        %v1949 = vld [vmem:[%s1926 + $0x84] sm:$0xf]
        %v1950 = vld [vmem:[%s1926 + $0x88] sm:$0xf]
        %v1951 = vld [vmem:[%s1926 + $0x90] sm:$0xf]
        %v1952 = vld [vmem:[%s1926 + $0x94] sm:$0xf]
        %v1953 = vld [vmem:[%s1926 + $0x9c] sm:$0xf]
        %v1954 = vld [vmem:[%s1926 + $0xa0] sm:$0xf]
        %v1955 = vld [vmem:[%s1926 + $0xa8] sm:$0xf]
        %v1956 = vld [vmem:[%s1926 + $0xac] sm:$0xf]
        %v1957 = vld [vmem:[%s1926 + $0xb4] sm:$0xf]
        %v1958 = vld [vmem:[%s1926 + $0xb8] sm:$0xf]
        %s1959 = scalar_lea.vmem %s277, 12
        %v1960 = vld [vmem:[%s1959] sm:$0xf]
        %v1993 = vunpack.c.l.b16 %v1927
        %v1994 = vunpack.c.l.b16 %v1928
        %v1995 = vunpack.c.l.b16 %v1929
        %v1996 = vunpack.c.l.b16 %v1930
        %v1997 = vunpack.c.l.b16 %v1931
        %v1998 = vunpack.c.l.b16 %v1932
        %v1999 = vunpack.c.l.b16 %v1933
        %v2000 = vunpack.c.l.b16 %v1934
        %v2001 = vunpack.c.l.b16 %v1935
        %v2002 = vunpack.c.l.b16 %v1936
        %v2003 = vunpack.c.l.b16 %v1937
        %v2004 = vunpack.c.l.b16 %v1938
        %v2005 = vunpack.c.l.b16 %v1939
        %v2006 = vunpack.c.l.b16 %v1940
        %v2007 = vunpack.c.l.b16 %v1941
        %v2008 = vunpack.c.l.b16 %v1942
        %v2009 = vunpack.c.l.b16 %v1943
        %v2010 = vunpack.c.l.b16 %v1944
        %v2011 = vunpack.c.l.b16 %v1945
        %v2012 = vunpack.c.l.b16 %v1946
        %v2013 = vunpack.c.l.b16 %v1947
        %v2014 = vunpack.c.l.b16 %v1948
        %v2015 = vunpack.c.l.b16 %v1949
        %v2016 = vunpack.c.l.b16 %v1950
        %v2017 = vunpack.c.l.b16 %v1951
        %v2018 = vunpack.c.l.b16 %v1952
        %v2019 = vunpack.c.l.b16 %v1953
        %v2020 = vunpack.c.l.b16 %v1954
        %v2021 = vunpack.c.l.b16 %v1955
        %v2022 = vunpack.c.l.b16 %v1956
        %v2023 = vunpack.c.l.b16 %v1957
        %v2024 = vunpack.c.l.b16 %v1958
        %v2025 = vpack.c.b16 %v1994, %v1993
        %v2026 = vpack.c.b16 %v1996, %v1995
        %v2027 = vpack.c.b16 %v1998, %v1997
        %v2028 = vpack.c.b16 %v2000, %v1999
        %v2029 = vpack.c.b16 %v2002, %v2001
        %v2030 = vpack.c.b16 %v2004, %v2003
        %v2031 = vpack.c.b16 %v2006, %v2005
        %v2032 = vpack.c.b16 %v2008, %v2007
        %v2033 = vpack.c.b16 %v2010, %v2009
        %v2034 = vpack.c.b16 %v2012, %v2011
        %v2035 = vpack.c.b16 %v2014, %v2013
        %v2036 = vpack.c.b16 %v2016, %v2015
        %v2037 = vpack.c.b16 %v2018, %v2017
        %v2038 = vpack.c.b16 %v2020, %v2019
        %v2039 = vpack.c.b16 %v2022, %v2021
        %v2040 = vpack.c.b16 %v2024, %v2023
        %v2042 = vsel %vm478, %v2025, 0
        %v2045 = vsel %vm478, %v2026, 0
        %v2048 = vsel %vm478, %v2027, 0
        %v2051 = vsel %vm478, %v2028, 0
        %v2054 = vsel %vm478, %v2029, 0
        %v2057 = vsel %vm478, %v2030, 0
        %v2060 = vsel %vm478, %v2031, 0
        %v2063 = vsel %vm478, %v2032, 0
        %v2066 = vsel %vm478, %v2033, 0
        %v2069 = vsel %vm478, %v2034, 0
        %v2072 = vsel %vm478, %v2035, 0
        %v2075 = vsel %vm478, %v2036, 0
        %v2078 = vsel %vm478, %v2037, 0
        %v2081 = vsel %vm478, %v2038, 0
        %v2084 = vsel %vm478, %v2039, 0
        %v2087 = vsel %vm478, %v2040, 0
        %v2090 = vsel %vm527, %v1960, 0
        %2092 = vmatprep.subr.bf16.mxu0 0
        %2093 = vmatpush1.bf16.msra.mxu0 %v2090
        %2094 = vmatprep.subr.bf16.mxu0 0
        %2095 = vmatpush1.bf16.msra.mxu0 0
        %2096 = vmatprep.subr.bf16.mxu0 0
        %2097 = vmatpush1.bf16.msra.mxu0 0
        %2098 = vmatprep.subr.bf16.mxu0 0
        %2099 = vmatpush1.bf16.msra.mxu0 0
        %2100 = vmatprep.subr.bf16.mxu0 0
        %2101 = vmatpush1.bf16.msra.mxu0 0
        %2102 = vmatprep.subr.bf16.mxu0 0
        %2103 = vmatpush1.bf16.msra.mxu0 0
        %2104 = vmatprep.subr.bf16.mxu0 0
        %2105 = vmatpush1.bf16.msra.mxu0 0
        %2106 = vmatprep.subr.bf16.mxu0 0
        %2107 = vmatpush1.bf16.msra.mxu0 0
        %2108 = vmatprep.subr.bf16.mxu0 0
        %2109 = vmatpush1.bf16.msra.mxu0 0
        %2110 = vmatprep.subr.bf16.mxu0 0
        %2111 = vmatpush1.bf16.msra.mxu0 0
        %2112 = vmatprep.subr.bf16.mxu0 0
        %2113 = vmatpush1.bf16.msra.mxu0 0
        %2114 = vmatprep.subr.bf16.mxu0 0
        %2115 = vmatpush1.bf16.msra.mxu0 0
        %2116 = vmatprep.subr.bf16.mxu0 0
        %2117 = vmatpush1.bf16.msra.mxu0 0
        %2118 = vmatprep.subr.bf16.mxu0 0
        %2119 = vmatpush1.bf16.msra.mxu0 0
        %2120 = vmatprep.subr.bf16.mxu0 0
        %2121 = vmatpush1.bf16.msra.mxu0 0
        %2122 = vmatprep.subr.bf16.mxu0 0
        %2123 = vmatpush1.bf16.msra.mxu0 0
        %2124 = vmatprep.mubr.bf16.mxu0 0
        %2125 = vmatmul.mubr.bf16.gmra.mrb[0].mxu0 %v2042
        %v2126 = vpop.f32.mrb[0].mxu0
        %v2127 = vadd.f32 0.0, %v2126
        %v2128 = vpop.f32.mrb[0].mxu0
        %v2129 = vpop.f32.mrb[0].mxu0
        %v2130 = vadd.f32 0.0, %v2129
        %v2131 = vpop.f32.mrb[0].mxu0
        %2132 = vmatprep.mubr.bf16.mxu0 0
        %2133 = vmatmul.mubr.bf16.gmra.mrb[0].mxu0 %v2045
        %v2134 = vpop.f32.mrb[0].mxu0
        %v2135 = vadd.f32 0.0, %v2134
        %v2136 = vpop.f32.mrb[0].mxu0
        %v2137 = vpop.f32.mrb[0].mxu0
        %v2138 = vadd.f32 0.0, %v2137
        %v2139 = vpop.f32.mrb[0].mxu0
        %2140 = vmatprep.mubr.bf16.mxu0 0
        %2141 = vmatmul.mubr.bf16.gmra.mrb[0].mxu0 %v2048
        %v2142 = vpop.f32.mrb[0].mxu0
        %v2143 = vadd.f32 0.0, %v2142
        %v2144 = vpop.f32.mrb[0].mxu0
        %v2145 = vpop.f32.mrb[0].mxu0
        %v2146 = vadd.f32 0.0, %v2145
        %v2147 = vpop.f32.mrb[0].mxu0
        %2148 = vmatprep.mubr.bf16.mxu0 0
        %2149 = vmatmul.mubr.bf16.gmra.mrb[0].mxu0 %v2051
        %v2150 = vpop.f32.mrb[0].mxu0
        %v2151 = vadd.f32 0.0, %v2150
        %v2152 = vpop.f32.mrb[0].mxu0
        %v2153 = vpop.f32.mrb[0].mxu0
        %v2154 = vadd.f32 0.0, %v2153
        %v2155 = vpop.f32.mrb[0].mxu0
        %2156 = vmatprep.mubr.bf16.mxu0 0
        %2157 = vmatmul.mubr.bf16.gmra.mrb[0].mxu0 %v2054
        %v2158 = vpop.f32.mrb[0].mxu0
        %v2159 = vadd.f32 0.0, %v2158
        %v2160 = vpop.f32.mrb[0].mxu0
        %v2161 = vpop.f32.mrb[0].mxu0
        %v2162 = vadd.f32 0.0, %v2161
        %v2163 = vpop.f32.mrb[0].mxu0
        %2164 = vmatprep.mubr.bf16.mxu0 0
        %2165 = vmatmul.mubr.bf16.gmra.mrb[0].mxu0 %v2057
        %v2166 = vpop.f32.mrb[0].mxu0
        %v2167 = vadd.f32 0.0, %v2166
        %v2168 = vpop.f32.mrb[0].mxu0
        %v2169 = vpop.f32.mrb[0].mxu0
        %v2170 = vadd.f32 0.0, %v2169
        %v2171 = vpop.f32.mrb[0].mxu0
        %2172 = vmatprep.mubr.bf16.mxu0 0
        %2173 = vmatmul.mubr.bf16.gmra.mrb[0].mxu0 %v2060
        %v2174 = vpop.f32.mrb[0].mxu0
        %v2175 = vadd.f32 0.0, %v2174
        %v2176 = vpop.f32.mrb[0].mxu0
        %v2177 = vpop.f32.mrb[0].mxu0
        %v2178 = vadd.f32 0.0, %v2177
        %v2179 = vpop.f32.mrb[0].mxu0
        %2180 = vmatprep.mubr.bf16.mxu0 0
        %2181 = vmatmul.mubr.bf16.gmra.mrb[0].mxu0 %v2063
        %v2182 = vpop.f32.mrb[0].mxu0
        %v2183 = vadd.f32 0.0, %v2182
        %v2184 = vpop.f32.mrb[0].mxu0
        %v2185 = vpop.f32.mrb[0].mxu0
        %v2186 = vadd.f32 0.0, %v2185
        %v2187 = vpop.f32.mrb[0].mxu0
        %2188 = vmatprep.mubr.bf16.mxu0 0
        %2189 = vmatmul.mubr.bf16.gmra.mrb[0].mxu0 %v2066
        %v2190 = vpop.f32.mrb[0].mxu0
        %v2191 = vadd.f32 0.0, %v2190
        %v2192 = vpop.f32.mrb[0].mxu0
        %v2193 = vpop.f32.mrb[0].mxu0
        %v2194 = vadd.f32 0.0, %v2193
        %v2195 = vpop.f32.mrb[0].mxu0
        %2196 = vmatprep.mubr.bf16.mxu0 0
        %2197 = vmatmul.mubr.bf16.gmra.mrb[0].mxu0 %v2069
        %v2198 = vpop.f32.mrb[0].mxu0
        %v2199 = vadd.f32 0.0, %v2198
        %v2200 = vpop.f32.mrb[0].mxu0
        %v2201 = vpop.f32.mrb[0].mxu0
        %v2202 = vadd.f32 0.0, %v2201
        %v2203 = vpop.f32.mrb[0].mxu0
        %2204 = vmatprep.mubr.bf16.mxu0 0
        %2205 = vmatmul.mubr.bf16.gmra.mrb[0].mxu0 %v2072
        %v2206 = vpop.f32.mrb[0].mxu0
        %v2207 = vadd.f32 0.0, %v2206
        %v2208 = vpop.f32.mrb[0].mxu0
        %v2209 = vpop.f32.mrb[0].mxu0
        %v2210 = vadd.f32 0.0, %v2209
        %v2211 = vpop.f32.mrb[0].mxu0
        %2212 = vmatprep.mubr.bf16.mxu0 0
        %2213 = vmatmul.mubr.bf16.gmra.mrb[0].mxu0 %v2075
        %v2214 = vpop.f32.mrb[0].mxu0
        %v2215 = vadd.f32 0.0, %v2214
        %v2216 = vpop.f32.mrb[0].mxu0
        %v2217 = vpop.f32.mrb[0].mxu0
        %v2218 = vadd.f32 0.0, %v2217
        %v2219 = vpop.f32.mrb[0].mxu0
        %2220 = vmatprep.mubr.bf16.mxu0 0
        %2221 = vmatmul.mubr.bf16.gmra.mrb[0].mxu0 %v2078
        %v2222 = vpop.f32.mrb[0].mxu0
        %v2223 = vadd.f32 0.0, %v2222
        %v2224 = vpop.f32.mrb[0].mxu0
        %v2225 = vpop.f32.mrb[0].mxu0
        %v2226 = vadd.f32 0.0, %v2225
        %v2227 = vpop.f32.mrb[0].mxu0
        %2228 = vmatprep.mubr.bf16.mxu0 0
        %2229 = vmatmul.mubr.bf16.gmra.mrb[0].mxu0 %v2081
        %v2230 = vpop.f32.mrb[0].mxu0
        %v2231 = vadd.f32 0.0, %v2230
        %v2232 = vpop.f32.mrb[0].mxu0
        %v2233 = vpop.f32.mrb[0].mxu0
        %v2234 = vadd.f32 0.0, %v2233
        %v2235 = vpop.f32.mrb[0].mxu0
        %2236 = vmatprep.mubr.bf16.mxu0 0
        %2237 = vmatmul.mubr.bf16.gmra.mrb[0].mxu0 %v2084
        %v2238 = vpop.f32.mrb[0].mxu0
        %v2239 = vadd.f32 0.0, %v2238
        %v2240 = vpop.f32.mrb[0].mxu0
        %v2241 = vpop.f32.mrb[0].mxu0
        %v2242 = vadd.f32 0.0, %v2241
        %v2243 = vpop.f32.mrb[0].mxu0
        %2244 = vmatprep.mubr.bf16.mxu0 0
        %2245 = vmatmul.mubr.bf16.gmra.mrb[0].mxu0 %v2087
        %v2246 = vpop.f32.mrb[0].mxu0
        %v2247 = vadd.f32 0.0, %v2246
        %v2248 = vpop.f32.mrb[0].mxu0
        %v2249 = vpop.f32.mrb[0].mxu0
        %v2250 = vadd.f32 0.0, %v2249
        %v2251 = vpop.f32.mrb[0].mxu0
        %2252 = vdwg.mxu0
        %v2253 = vadd.f32 %v1894, %v2127
        %v2254 = vadd.f32 %v1895, %v2130
        %v2255 = vadd.f32 %v1896, %v2135
        %v2256 = vadd.f32 %v1897, %v2138
        %v2257 = vadd.f32 %v1898, %v2143
        %v2258 = vadd.f32 %v1899, %v2146
        %v2259 = vadd.f32 %v1900, %v2151
        %v2260 = vadd.f32 %v1901, %v2154
        %v2261 = vadd.f32 %v1902, %v2159
        %v2262 = vadd.f32 %v1903, %v2162
        %v2263 = vadd.f32 %v1904, %v2167
        %v2264 = vadd.f32 %v1905, %v2170
        %v2265 = vadd.f32 %v1906, %v2175
        %v2266 = vadd.f32 %v1907, %v2178
        %v2267 = vadd.f32 %v1908, %v2183
        %v2268 = vadd.f32 %v1909, %v2186
        %v2269 = vadd.f32 %v1910, %v2191
        %v2270 = vadd.f32 %v1911, %v2194
        %v2271 = vadd.f32 %v1912, %v2199
        %v2272 = vadd.f32 %v1913, %v2202
        %v2273 = vadd.f32 %v1914, %v2207
        %v2274 = vadd.f32 %v1915, %v2210
        %v2275 = vadd.f32 %v1916, %v2215
        %v2276 = vadd.f32 %v1917, %v2218
        %v2277 = vadd.f32 %v1918, %v2223
        %v2278 = vadd.f32 %v1919, %v2226
        %v2279 = vadd.f32 %v1920, %v2231
        %v2280 = vadd.f32 %v1921, %v2234
        %v2281 = vadd.f32 %v1922, %v2239
        %v2282 = vadd.f32 %v1923, %v2242
        %v2283 = vadd.f32 %v1924, %v2247
        %v2284 = vadd.f32 %v1925, %v2250
        %v2285 = vld [vmem:[%s1926] sm:$0xf]
        %v2286 = vld [vmem:[%s1926 + $0x4] sm:$0xf]
        %v2287 = vld [vmem:[%s1926 + $0x8] sm:$0x1]
        %v2288 = vld [vmem:[%s1926 + $0xc] sm:$0xf]
        %v2289 = vld [vmem:[%s1926 + $0x10] sm:$0xf]
        %v2290 = vld [vmem:[%s1926 + $0x14] sm:$0x1]
        %v2291 = vld [vmem:[%s1926 + $0x18] sm:$0xf]
        %v2292 = vld [vmem:[%s1926 + $0x1c] sm:$0xf]
        %v2293 = vld [vmem:[%s1926 + $0x20] sm:$0x1]
        %v2294 = vld [vmem:[%s1926 + $0x24] sm:$0xf]
        %v2295 = vld [vmem:[%s1926 + $0x28] sm:$0xf]
        %v2296 = vld [vmem:[%s1926 + $0x2c] sm:$0x1]
        %v2297 = vld [vmem:[%s1926 + $0x30] sm:$0xf]
        %v2298 = vld [vmem:[%s1926 + $0x34] sm:$0xf]
        %v2299 = vld [vmem:[%s1926 + $0x38] sm:$0x1]
        %v2300 = vld [vmem:[%s1926 + $0x3c] sm:$0xf]
        %v2301 = vld [vmem:[%s1926 + $0x40] sm:$0xf]
        %v2302 = vld [vmem:[%s1926 + $0x44] sm:$0x1]
        %v2303 = vld [vmem:[%s1926 + $0x48] sm:$0xf]
        %v2304 = vld [vmem:[%s1926 + $0x4c] sm:$0xf]
        %v2305 = vld [vmem:[%s1926 + $0x50] sm:$0x1]
        %v2306 = vld [vmem:[%s1926 + $0x54] sm:$0xf]
        %v2307 = vld [vmem:[%s1926 + $0x58] sm:$0xf]
        %v2308 = vld [vmem:[%s1926 + $0x5c] sm:$0x1]
        %v2309 = vld [vmem:[%s1926 + $0x60] sm:$0xf]
        %v2310 = vld [vmem:[%s1926 + $0x64] sm:$0xf]
        %v2311 = vld [vmem:[%s1926 + $0x68] sm:$0x1]
        %v2312 = vld [vmem:[%s1926 + $0x6c] sm:$0xf]
        %v2313 = vld [vmem:[%s1926 + $0x70] sm:$0xf]
        %v2314 = vld [vmem:[%s1926 + $0x74] sm:$0x1]
        %v2315 = vld [vmem:[%s1926 + $0x78] sm:$0xf]
        %v2316 = vld [vmem:[%s1926 + $0x7c] sm:$0xf]
        %v2317 = vld [vmem:[%s1926 + $0x80] sm:$0x1]
        %v2318 = vld [vmem:[%s1926 + $0x84] sm:$0xf]
        %v2319 = vld [vmem:[%s1926 + $0x88] sm:$0xf]
        %v2320 = vld [vmem:[%s1926 + $0x8c] sm:$0x1]
        %v2321 = vld [vmem:[%s1926 + $0x90] sm:$0xf]
        %v2322 = vld [vmem:[%s1926 + $0x94] sm:$0xf]
        %v2323 = vld [vmem:[%s1926 + $0x98] sm:$0x1]
        %v2324 = vld [vmem:[%s1926 + $0x9c] sm:$0xf]
        %v2325 = vld [vmem:[%s1926 + $0xa0] sm:$0xf]
        %v2326 = vld [vmem:[%s1926 + $0xa4] sm:$0x1]
        %v2327 = vld [vmem:[%s1926 + $0xa8] sm:$0xf]
        %v2328 = vld [vmem:[%s1926 + $0xac] sm:$0xf]
        %v2329 = vld [vmem:[%s1926 + $0xb0] sm:$0x1]
        %v2330 = vld [vmem:[%s1926 + $0xb4] sm:$0xf]
        %v2331 = vld [vmem:[%s1926 + $0xb8] sm:$0xf]
        %v2332 = vld [vmem:[%s1926 + $0xbc] sm:$0x1]
        %v2334 = vshrl.u32 %v2285, 16
        %v2336 = vrot.slane %v2334, 4
        %v2337 = vshll.u32 %v2285, 16
        %v2339 = vrot.slane %v2337, 5
        %v2340 = vor.u32 %v2336, %v2339
        %v2341 = vrot.slane %v2340, 4
        %v2343 = vshll.u32 %v2286, 16
        %v2345 = vrot.slane %v2343, 5
        %v2346 = vsel %vm774, %v2341, %v2345
        %v2347 = vshrl.u32 %v2286, 16
        %v2349 = vrot.slane %v2347, 4
        %v2350 = vor.u32 %v2349, %v2345
        %v2351 = vrot.slane %v2350, 4
        %v2353 = vshll.u32 %v2287, 16
        %v2355 = vrot.slane %v2353, 5
        %v2356 = vsel %vm774, %v2351, %v2355
        %v2358 = vshrl.u32 %v2288, 16
        %v2360 = vrot.slane %v2358, 4
        %v2361 = vshll.u32 %v2288, 16
        %v2363 = vrot.slane %v2361, 5
        %v2364 = vor.u32 %v2360, %v2363
        %v2365 = vrot.slane %v2364, 4
        %v2367 = vshll.u32 %v2289, 16
        %v2369 = vrot.slane %v2367, 5
        %v2370 = vsel %vm774, %v2365, %v2369
        %v2371 = vshrl.u32 %v2289, 16
        %v2373 = vrot.slane %v2371, 4
        %v2374 = vor.u32 %v2373, %v2369
        %v2375 = vrot.slane %v2374, 4
        %v2377 = vshll.u32 %v2290, 16
        %v2379 = vrot.slane %v2377, 5
        %v2380 = vsel %vm774, %v2375, %v2379
        %v2382 = vshrl.u32 %v2291, 16
        %v2384 = vrot.slane %v2382, 4
        %v2385 = vshll.u32 %v2291, 16
        %v2387 = vrot.slane %v2385, 5
        %v2388 = vor.u32 %v2384, %v2387
        %v2389 = vrot.slane %v2388, 4
        %v2391 = vshll.u32 %v2292, 16
        %v2393 = vrot.slane %v2391, 5
        %v2394 = vsel %vm774, %v2389, %v2393
        %v2395 = vshrl.u32 %v2292, 16
        %v2397 = vrot.slane %v2395, 4
        %v2398 = vor.u32 %v2397, %v2393
        %v2399 = vrot.slane %v2398, 4
        %v2401 = vshll.u32 %v2293, 16
        %v2403 = vrot.slane %v2401, 5
        %v2404 = vsel %vm774, %v2399, %v2403
        %v2406 = vshrl.u32 %v2294, 16
        %v2408 = vrot.slane %v2406, 4
        %v2409 = vshll.u32 %v2294, 16
        %v2411 = vrot.slane %v2409, 5
        %v2412 = vor.u32 %v2408, %v2411
        %v2413 = vrot.slane %v2412, 4
        %v2415 = vshll.u32 %v2295, 16
        %v2417 = vrot.slane %v2415, 5
        %v2418 = vsel %vm774, %v2413, %v2417
        %v2419 = vshrl.u32 %v2295, 16
        %v2421 = vrot.slane %v2419, 4
        %v2422 = vor.u32 %v2421, %v2417
        %v2423 = vrot.slane %v2422, 4
        %v2425 = vshll.u32 %v2296, 16
        %v2427 = vrot.slane %v2425, 5
        %v2428 = vsel %vm774, %v2423, %v2427
        %v2430 = vshrl.u32 %v2297, 16
        %v2432 = vrot.slane %v2430, 4
        %v2433 = vshll.u32 %v2297, 16
        %v2435 = vrot.slane %v2433, 5
        %v2436 = vor.u32 %v2432, %v2435
        %v2437 = vrot.slane %v2436, 4
        %v2439 = vshll.u32 %v2298, 16
        %v2441 = vrot.slane %v2439, 5
        %v2442 = vsel %vm774, %v2437, %v2441
        %v2443 = vshrl.u32 %v2298, 16
        %v2445 = vrot.slane %v2443, 4
        %v2446 = vor.u32 %v2445, %v2441
        %v2447 = vrot.slane %v2446, 4
        %v2449 = vshll.u32 %v2299, 16
        %v2451 = vrot.slane %v2449, 5
        %v2452 = vsel %vm774, %v2447, %v2451
        %v2454 = vshrl.u32 %v2300, 16
        %v2456 = vrot.slane %v2454, 4
        %v2457 = vshll.u32 %v2300, 16
        %v2459 = vrot.slane %v2457, 5
        %v2460 = vor.u32 %v2456, %v2459
        %v2461 = vrot.slane %v2460, 4
        %v2463 = vshll.u32 %v2301, 16
        %v2465 = vrot.slane %v2463, 5
        %v2466 = vsel %vm774, %v2461, %v2465
        %v2467 = vshrl.u32 %v2301, 16
        %v2469 = vrot.slane %v2467, 4
        %v2470 = vor.u32 %v2469, %v2465
        %v2471 = vrot.slane %v2470, 4
        %v2473 = vshll.u32 %v2302, 16
        %v2475 = vrot.slane %v2473, 5
        %v2476 = vsel %vm774, %v2471, %v2475
        %v2478 = vshrl.u32 %v2303, 16
        %v2480 = vrot.slane %v2478, 4
        %v2481 = vshll.u32 %v2303, 16
        %v2483 = vrot.slane %v2481, 5
        %v2484 = vor.u32 %v2480, %v2483
        %v2485 = vrot.slane %v2484, 4
        %v2487 = vshll.u32 %v2304, 16
        %v2489 = vrot.slane %v2487, 5
        %v2490 = vsel %vm774, %v2485, %v2489
        %v2491 = vshrl.u32 %v2304, 16
        %v2493 = vrot.slane %v2491, 4
        %v2494 = vor.u32 %v2493, %v2489
        %v2495 = vrot.slane %v2494, 4
        %v2497 = vshll.u32 %v2305, 16
        %v2499 = vrot.slane %v2497, 5
        %v2500 = vsel %vm774, %v2495, %v2499
        %v2502 = vshrl.u32 %v2306, 16
        %v2504 = vrot.slane %v2502, 4
        %v2505 = vshll.u32 %v2306, 16
        %v2507 = vrot.slane %v2505, 5
        %v2508 = vor.u32 %v2504, %v2507
        %v2509 = vrot.slane %v2508, 4
        %v2511 = vshll.u32 %v2307, 16
        %v2513 = vrot.slane %v2511, 5
        %v2514 = vsel %vm774, %v2509, %v2513
        %v2515 = vshrl.u32 %v2307, 16
        %v2517 = vrot.slane %v2515, 4
        %v2518 = vor.u32 %v2517, %v2513
        %v2519 = vrot.slane %v2518, 4
        %v2521 = vshll.u32 %v2308, 16
        %v2523 = vrot.slane %v2521, 5
        %v2524 = vsel %vm774, %v2519, %v2523
        %v2526 = vshrl.u32 %v2309, 16
        %v2528 = vrot.slane %v2526, 4
        %v2529 = vshll.u32 %v2309, 16
        %v2531 = vrot.slane %v2529, 5
        %v2532 = vor.u32 %v2528, %v2531
        %v2533 = vrot.slane %v2532, 4
        %v2535 = vshll.u32 %v2310, 16
        %v2537 = vrot.slane %v2535, 5
        %v2538 = vsel %vm774, %v2533, %v2537
        %v2539 = vshrl.u32 %v2310, 16
        %v2541 = vrot.slane %v2539, 4
        %v2542 = vor.u32 %v2541, %v2537
        %v2543 = vrot.slane %v2542, 4
        %v2545 = vshll.u32 %v2311, 16
        %v2547 = vrot.slane %v2545, 5
        %v2548 = vsel %vm774, %v2543, %v2547
        %v2550 = vshrl.u32 %v2312, 16
        %v2552 = vrot.slane %v2550, 4
        %v2553 = vshll.u32 %v2312, 16
        %v2555 = vrot.slane %v2553, 5
        %v2556 = vor.u32 %v2552, %v2555
        %v2557 = vrot.slane %v2556, 4
        %v2559 = vshll.u32 %v2313, 16
        %v2561 = vrot.slane %v2559, 5
        %v2562 = vsel %vm774, %v2557, %v2561
        %v2563 = vshrl.u32 %v2313, 16
        %v2565 = vrot.slane %v2563, 4
        %v2566 = vor.u32 %v2565, %v2561
        %v2567 = vrot.slane %v2566, 4
        %v2569 = vshll.u32 %v2314, 16
        %v2571 = vrot.slane %v2569, 5
        %v2572 = vsel %vm774, %v2567, %v2571
        %v2574 = vshrl.u32 %v2315, 16
        %v2576 = vrot.slane %v2574, 4
        %v2577 = vshll.u32 %v2315, 16
        %v2579 = vrot.slane %v2577, 5
        %v2580 = vor.u32 %v2576, %v2579
        %v2581 = vrot.slane %v2580, 4
        %v2583 = vshll.u32 %v2316, 16
        %v2585 = vrot.slane %v2583, 5
        %v2586 = vsel %vm774, %v2581, %v2585
        %v2587 = vshrl.u32 %v2316, 16
        %v2589 = vrot.slane %v2587, 4
        %v2590 = vor.u32 %v2589, %v2585
        %v2591 = vrot.slane %v2590, 4
        %v2593 = vshll.u32 %v2317, 16
        %v2595 = vrot.slane %v2593, 5
        %v2596 = vsel %vm774, %v2591, %v2595
        %v2598 = vshrl.u32 %v2318, 16
        %v2600 = vrot.slane %v2598, 4
        %v2601 = vshll.u32 %v2318, 16
        %v2603 = vrot.slane %v2601, 5
        %v2604 = vor.u32 %v2600, %v2603
        %v2605 = vrot.slane %v2604, 4
        %v2607 = vshll.u32 %v2319, 16
        %v2609 = vrot.slane %v2607, 5
        %v2610 = vsel %vm774, %v2605, %v2609
        %v2611 = vshrl.u32 %v2319, 16
        %v2613 = vrot.slane %v2611, 4
        %v2614 = vor.u32 %v2613, %v2609
        %v2615 = vrot.slane %v2614, 4
        %v2617 = vshll.u32 %v2320, 16
        %v2619 = vrot.slane %v2617, 5
        %v2620 = vsel %vm774, %v2615, %v2619
        %v2622 = vshrl.u32 %v2321, 16
        %v2624 = vrot.slane %v2622, 4
        %v2625 = vshll.u32 %v2321, 16
        %v2627 = vrot.slane %v2625, 5
        %v2628 = vor.u32 %v2624, %v2627
        %v2629 = vrot.slane %v2628, 4
        %v2631 = vshll.u32 %v2322, 16
        %v2633 = vrot.slane %v2631, 5
        %v2634 = vsel %vm774, %v2629, %v2633
        %v2635 = vshrl.u32 %v2322, 16
        %v2637 = vrot.slane %v2635, 4
        %v2638 = vor.u32 %v2637, %v2633
        %v2639 = vrot.slane %v2638, 4
        %v2641 = vshll.u32 %v2323, 16
        %v2643 = vrot.slane %v2641, 5
        %v2644 = vsel %vm774, %v2639, %v2643
        %v2646 = vshrl.u32 %v2324, 16
        %v2648 = vrot.slane %v2646, 4
        %v2649 = vshll.u32 %v2324, 16
        %v2651 = vrot.slane %v2649, 5
        %v2652 = vor.u32 %v2648, %v2651
        %v2653 = vrot.slane %v2652, 4
        %v2655 = vshll.u32 %v2325, 16
        %v2657 = vrot.slane %v2655, 5
        %v2658 = vsel %vm774, %v2653, %v2657
        %v2659 = vshrl.u32 %v2325, 16
        %v2661 = vrot.slane %v2659, 4
        %v2662 = vor.u32 %v2661, %v2657
        %v2663 = vrot.slane %v2662, 4
        %v2665 = vshll.u32 %v2326, 16
        %v2667 = vrot.slane %v2665, 5
        %v2668 = vsel %vm774, %v2663, %v2667
        %v2670 = vshrl.u32 %v2327, 16
        %v2672 = vrot.slane %v2670, 4
        %v2673 = vshll.u32 %v2327, 16
        %v2675 = vrot.slane %v2673, 5
        %v2676 = vor.u32 %v2672, %v2675
        %v2677 = vrot.slane %v2676, 4
        %v2679 = vshll.u32 %v2328, 16
        %v2681 = vrot.slane %v2679, 5
        %v2682 = vsel %vm774, %v2677, %v2681
        %v2683 = vshrl.u32 %v2328, 16
        %v2685 = vrot.slane %v2683, 4
        %v2686 = vor.u32 %v2685, %v2681
        %v2687 = vrot.slane %v2686, 4
        %v2689 = vshll.u32 %v2329, 16
        %v2691 = vrot.slane %v2689, 5
        %v2692 = vsel %vm774, %v2687, %v2691
        %v2694 = vshrl.u32 %v2330, 16
        %v2696 = vrot.slane %v2694, 4
        %v2697 = vshll.u32 %v2330, 16
        %v2699 = vrot.slane %v2697, 5
        %v2700 = vor.u32 %v2696, %v2699
        %v2701 = vrot.slane %v2700, 4
        %v2703 = vshll.u32 %v2331, 16
        %v2705 = vrot.slane %v2703, 5
        %v2706 = vsel %vm774, %v2701, %v2705
        %v2707 = vshrl.u32 %v2331, 16
        %v2709 = vrot.slane %v2707, 4
        %v2710 = vor.u32 %v2709, %v2705
        %v2711 = vrot.slane %v2710, 4
        %v2713 = vshll.u32 %v2332, 16
        %v2715 = vrot.slane %v2713, 5
        %v2716 = vsel %vm774, %v2711, %v2715
        %s2717 = scalar_lea.vmem %s277, 16
        %v2718 = vld [vmem:[%s2717] sm:$0xf]
        %v2719 = vunpack.c.l.b16 %v2346
        %v2720 = vunpack.c.l.b16 %v2356
        %v2721 = vunpack.c.l.b16 %v2370
        %v2722 = vunpack.c.l.b16 %v2380
        %v2723 = vunpack.c.l.b16 %v2394
        %v2724 = vunpack.c.l.b16 %v2404
        %v2725 = vunpack.c.l.b16 %v2418
        %v2726 = vunpack.c.l.b16 %v2428
        %v2727 = vunpack.c.l.b16 %v2442
        %v2728 = vunpack.c.l.b16 %v2452
        %v2729 = vunpack.c.l.b16 %v2466
        %v2730 = vunpack.c.l.b16 %v2476
        %v2731 = vunpack.c.l.b16 %v2490
        %v2732 = vunpack.c.l.b16 %v2500
        %v2733 = vunpack.c.l.b16 %v2514
        %v2734 = vunpack.c.l.b16 %v2524
        %v2735 = vunpack.c.l.b16 %v2538
        %v2736 = vunpack.c.l.b16 %v2548
        %v2737 = vunpack.c.l.b16 %v2562
        %v2738 = vunpack.c.l.b16 %v2572
        %v2739 = vunpack.c.l.b16 %v2586
        %v2740 = vunpack.c.l.b16 %v2596
        %v2741 = vunpack.c.l.b16 %v2610
        %v2742 = vunpack.c.l.b16 %v2620
        %v2743 = vunpack.c.l.b16 %v2634
        %v2744 = vunpack.c.l.b16 %v2644
        %v2745 = vunpack.c.l.b16 %v2658
        %v2746 = vunpack.c.l.b16 %v2668
        %v2747 = vunpack.c.l.b16 %v2682
        %v2748 = vunpack.c.l.b16 %v2692
        %v2749 = vunpack.c.l.b16 %v2706
        %v2750 = vunpack.c.l.b16 %v2716
        %v2751 = vpack.c.b16 %v2720, %v2719
        %v2752 = vpack.c.b16 %v2722, %v2721
        %v2753 = vpack.c.b16 %v2724, %v2723
        %v2754 = vpack.c.b16 %v2726, %v2725
        %v2755 = vpack.c.b16 %v2728, %v2727
        %v2756 = vpack.c.b16 %v2730, %v2729
        %v2757 = vpack.c.b16 %v2732, %v2731
        %v2758 = vpack.c.b16 %v2734, %v2733
        %v2759 = vpack.c.b16 %v2736, %v2735
        %v2760 = vpack.c.b16 %v2738, %v2737
        %v2761 = vpack.c.b16 %v2740, %v2739
        %v2762 = vpack.c.b16 %v2742, %v2741
        %v2763 = vpack.c.b16 %v2744, %v2743
        %v2764 = vpack.c.b16 %v2746, %v2745
        %v2765 = vpack.c.b16 %v2748, %v2747
        %v2766 = vpack.c.b16 %v2750, %v2749
        %v2768 = vsel %vm478, %v2751, 0
        %v2771 = vsel %vm478, %v2752, 0
        %v2774 = vsel %vm478, %v2753, 0
        %v2777 = vsel %vm478, %v2754, 0
        %v2780 = vsel %vm478, %v2755, 0
        %v2783 = vsel %vm478, %v2756, 0
        %v2786 = vsel %vm478, %v2757, 0
        %v2789 = vsel %vm478, %v2758, 0
        %v2792 = vsel %vm478, %v2759, 0
        %v2795 = vsel %vm478, %v2760, 0
        %v2798 = vsel %vm478, %v2761, 0
        %v2801 = vsel %vm478, %v2762, 0
        %v2804 = vsel %vm478, %v2763, 0
        %v2807 = vsel %vm478, %v2764, 0
        %v2810 = vsel %vm478, %v2765, 0
        %v2813 = vsel %vm478, %v2766, 0
        %v2816 = vsel %vm527, %v2718, 0
        %2818 = vmatprep.subr.bf16.mxu0 0
        %2819 = vmatpush1.bf16.msra.mxu0 %v2816
        %2820 = vmatprep.subr.bf16.mxu0 0
        %2821 = vmatpush1.bf16.msra.mxu0 0
        %2822 = vmatprep.subr.bf16.mxu0 0
        %2823 = vmatpush1.bf16.msra.mxu0 0
        %2824 = vmatprep.subr.bf16.mxu0 0
        %2825 = vmatpush1.bf16.msra.mxu0 0
        %2826 = vmatprep.subr.bf16.mxu0 0
        %2827 = vmatpush1.bf16.msra.mxu0 0
        %2828 = vmatprep.subr.bf16.mxu0 0
        %2829 = vmatpush1.bf16.msra.mxu0 0
        %2830 = vmatprep.subr.bf16.mxu0 0
        %2831 = vmatpush1.bf16.msra.mxu0 0
        %2832 = vmatprep.subr.bf16.mxu0 0
        %2833 = vmatpush1.bf16.msra.mxu0 0
        %2834 = vmatprep.subr.bf16.mxu0 0
        %2835 = vmatpush1.bf16.msra.mxu0 0
        %2836 = vmatprep.subr.bf16.mxu0 0
        %2837 = vmatpush1.bf16.msra.mxu0 0
        %2838 = vmatprep.subr.bf16.mxu0 0
        %2839 = vmatpush1.bf16.msra.mxu0 0
        %2840 = vmatprep.subr.bf16.mxu0 0
        %2841 = vmatpush1.bf16.msra.mxu0 0
        %2842 = vmatprep.subr.bf16.mxu0 0
        %2843 = vmatpush1.bf16.msra.mxu0 0
        %2844 = vmatprep.subr.bf16.mxu0 0
        %2845 = vmatpush1.bf16.msra.mxu0 0
        %2846 = vmatprep.subr.bf16.mxu0 0
        %2847 = vmatpush1.bf16.msra.mxu0 0
        %2848 = vmatprep.subr.bf16.mxu0 0
        %2849 = vmatpush1.bf16.msra.mxu0 0
        %2850 = vmatprep.mubr.bf16.mxu0 0
        %2851 = vmatmul.mubr.bf16.gmra.mrb[0].mxu0 %v2768
        %v2852 = vpop.f32.mrb[0].mxu0
        %v2853 = vadd.f32 0.0, %v2852
        %v2854 = vpop.f32.mrb[0].mxu0
        %v2855 = vpop.f32.mrb[0].mxu0
        %v2856 = vadd.f32 0.0, %v2855
        %v2857 = vpop.f32.mrb[0].mxu0
        %2858 = vmatprep.mubr.bf16.mxu0 0
        %2859 = vmatmul.mubr.bf16.gmra.mrb[0].mxu0 %v2771
        %v2860 = vpop.f32.mrb[0].mxu0
        %v2861 = vadd.f32 0.0, %v2860
        %v2862 = vpop.f32.mrb[0].mxu0
        %v2863 = vpop.f32.mrb[0].mxu0
        %v2864 = vadd.f32 0.0, %v2863
        %v2865 = vpop.f32.mrb[0].mxu0
        %2866 = vmatprep.mubr.bf16.mxu0 0
        %2867 = vmatmul.mubr.bf16.gmra.mrb[0].mxu0 %v2774
        %v2868 = vpop.f32.mrb[0].mxu0
        %v2869 = vadd.f32 0.0, %v2868
        %v2870 = vpop.f32.mrb[0].mxu0
        %v2871 = vpop.f32.mrb[0].mxu0
        %v2872 = vadd.f32 0.0, %v2871
        %v2873 = vpop.f32.mrb[0].mxu0
        %2874 = vmatprep.mubr.bf16.mxu0 0
        %2875 = vmatmul.mubr.bf16.gmra.mrb[0].mxu0 %v2777
        %v2876 = vpop.f32.mrb[0].mxu0
        %v2877 = vadd.f32 0.0, %v2876
        %v2878 = vpop.f32.mrb[0].mxu0
        %v2879 = vpop.f32.mrb[0].mxu0
        %v2880 = vadd.f32 0.0, %v2879
        %v2881 = vpop.f32.mrb[0].mxu0
        %2882 = vmatprep.mubr.bf16.mxu0 0
        %2883 = vmatmul.mubr.bf16.gmra.mrb[0].mxu0 %v2780
        %v2884 = vpop.f32.mrb[0].mxu0
        %v2885 = vadd.f32 0.0, %v2884
        %v2886 = vpop.f32.mrb[0].mxu0
        %v2887 = vpop.f32.mrb[0].mxu0
        %v2888 = vadd.f32 0.0, %v2887
        %v2889 = vpop.f32.mrb[0].mxu0
        %2890 = vmatprep.mubr.bf16.mxu0 0
        %2891 = vmatmul.mubr.bf16.gmra.mrb[0].mxu0 %v2783
        %v2892 = vpop.f32.mrb[0].mxu0
        %v2893 = vadd.f32 0.0, %v2892
        %v2894 = vpop.f32.mrb[0].mxu0
        %v2895 = vpop.f32.mrb[0].mxu0
        %v2896 = vadd.f32 0.0, %v2895
        %v2897 = vpop.f32.mrb[0].mxu0
        %2898 = vmatprep.mubr.bf16.mxu0 0
        %2899 = vmatmul.mubr.bf16.gmra.mrb[0].mxu0 %v2786
        %v2900 = vpop.f32.mrb[0].mxu0
        %v2901 = vadd.f32 0.0, %v2900
        %v2902 = vpop.f32.mrb[0].mxu0
        %v2903 = vpop.f32.mrb[0].mxu0
        %v2904 = vadd.f32 0.0, %v2903
        %v2905 = vpop.f32.mrb[0].mxu0
        %2906 = vmatprep.mubr.bf16.mxu0 0
        %2907 = vmatmul.mubr.bf16.gmra.mrb[0].mxu0 %v2789
        %v2908 = vpop.f32.mrb[0].mxu0
        %v2909 = vadd.f32 0.0, %v2908
        %v2910 = vpop.f32.mrb[0].mxu0
        %v2911 = vpop.f32.mrb[0].mxu0
        %v2912 = vadd.f32 0.0, %v2911
        %v2913 = vpop.f32.mrb[0].mxu0
        %2914 = vmatprep.mubr.bf16.mxu0 0
        %2915 = vmatmul.mubr.bf16.gmra.mrb[0].mxu0 %v2792
        %v2916 = vpop.f32.mrb[0].mxu0
        %v2917 = vadd.f32 0.0, %v2916
        %v2918 = vpop.f32.mrb[0].mxu0
        %v2919 = vpop.f32.mrb[0].mxu0
        %v2920 = vadd.f32 0.0, %v2919
        %v2921 = vpop.f32.mrb[0].mxu0
        %2922 = vmatprep.mubr.bf16.mxu0 0
        %2923 = vmatmul.mubr.bf16.gmra.mrb[0].mxu0 %v2795
        %v2924 = vpop.f32.mrb[0].mxu0
        %v2925 = vadd.f32 0.0, %v2924
        %v2926 = vpop.f32.mrb[0].mxu0
        %v2927 = vpop.f32.mrb[0].mxu0
        %v2928 = vadd.f32 0.0, %v2927
        %v2929 = vpop.f32.mrb[0].mxu0
        %2930 = vmatprep.mubr.bf16.mxu0 0
        %2931 = vmatmul.mubr.bf16.gmra.mrb[0].mxu0 %v2798
        %v2932 = vpop.f32.mrb[0].mxu0
        %v2933 = vadd.f32 0.0, %v2932
        %v2934 = vpop.f32.mrb[0].mxu0
        %v2935 = vpop.f32.mrb[0].mxu0
        %v2936 = vadd.f32 0.0, %v2935
        %v2937 = vpop.f32.mrb[0].mxu0
        %2938 = vmatprep.mubr.bf16.mxu0 0
        %2939 = vmatmul.mubr.bf16.gmra.mrb[0].mxu0 %v2801
        %v2940 = vpop.f32.mrb[0].mxu0
        %v2941 = vadd.f32 0.0, %v2940
        %v2942 = vpop.f32.mrb[0].mxu0
        %v2943 = vpop.f32.mrb[0].mxu0
        %v2944 = vadd.f32 0.0, %v2943
        %v2945 = vpop.f32.mrb[0].mxu0
        %2946 = vmatprep.mubr.bf16.mxu0 0
        %2947 = vmatmul.mubr.bf16.gmra.mrb[0].mxu0 %v2804
        %v2948 = vpop.f32.mrb[0].mxu0
        %v2949 = vadd.f32 0.0, %v2948
        %v2950 = vpop.f32.mrb[0].mxu0
        %v2951 = vpop.f32.mrb[0].mxu0
        %v2952 = vadd.f32 0.0, %v2951
        %v2953 = vpop.f32.mrb[0].mxu0
        %2954 = vmatprep.mubr.bf16.mxu0 0
        %2955 = vmatmul.mubr.bf16.gmra.mrb[0].mxu0 %v2807
        %v2956 = vpop.f32.mrb[0].mxu0
        %v2957 = vadd.f32 0.0, %v2956
        %v2958 = vpop.f32.mrb[0].mxu0
        %v2959 = vpop.f32.mrb[0].mxu0
        %v2960 = vadd.f32 0.0, %v2959
        %v2961 = vpop.f32.mrb[0].mxu0
        %2962 = vmatprep.mubr.bf16.mxu0 0
        %2963 = vmatmul.mubr.bf16.gmra.mrb[0].mxu0 %v2810
        %v2964 = vpop.f32.mrb[0].mxu0
        %v2965 = vadd.f32 0.0, %v2964
        %v2966 = vpop.f32.mrb[0].mxu0
        %v2967 = vpop.f32.mrb[0].mxu0
        %v2968 = vadd.f32 0.0, %v2967
        %v2969 = vpop.f32.mrb[0].mxu0
        %2970 = vmatprep.mubr.bf16.mxu0 0
        %2971 = vmatmul.mubr.bf16.gmra.mrb[0].mxu0 %v2813
        %v2972 = vpop.f32.mrb[0].mxu0
        %v2973 = vadd.f32 0.0, %v2972
        %v2974 = vpop.f32.mrb[0].mxu0
        %v2975 = vpop.f32.mrb[0].mxu0
        %v2976 = vadd.f32 0.0, %v2975
        %v2977 = vpop.f32.mrb[0].mxu0
        %2978 = vdwg.mxu0
        %v2979 = vadd.f32 %v2253, %v2853
        %v2980 = vadd.f32 %v2254, %v2856
        %v2981 = vadd.f32 %v2255, %v2861
        %v2982 = vadd.f32 %v2256, %v2864
        %v2983 = vadd.f32 %v2257, %v2869
        %v2984 = vadd.f32 %v2258, %v2872
        %v2985 = vadd.f32 %v2259, %v2877
        %v2986 = vadd.f32 %v2260, %v2880
        %v2987 = vadd.f32 %v2261, %v2885
        %v2988 = vadd.f32 %v2262, %v2888
        %v2989 = vadd.f32 %v2263, %v2893
        %v2990 = vadd.f32 %v2264, %v2896
        %v2991 = vadd.f32 %v2265, %v2901
        %v2992 = vadd.f32 %v2266, %v2904
        %v2993 = vadd.f32 %v2267, %v2909
        %v2994 = vadd.f32 %v2268, %v2912
        %v2995 = vadd.f32 %v2269, %v2917
        %v2996 = vadd.f32 %v2270, %v2920
        %v2997 = vadd.f32 %v2271, %v2925
        %v2998 = vadd.f32 %v2272, %v2928
        %v2999 = vadd.f32 %v2273, %v2933
        %v3000 = vadd.f32 %v2274, %v2936
        %v3001 = vadd.f32 %v2275, %v2941
        %v3002 = vadd.f32 %v2276, %v2944
        %v3003 = vadd.f32 %v2277, %v2949
        %v3004 = vadd.f32 %v2278, %v2952
        %v3005 = vadd.f32 %v2279, %v2957
        %v3006 = vadd.f32 %v2280, %v2960
        %v3007 = vadd.f32 %v2281, %v2965
        %v3008 = vadd.f32 %v2282, %v2968
        %v3009 = vadd.f32 %v2283, %v2973
        %v3010 = vadd.f32 %v2284, %v2976
        %v3011 = vld [vmem:[%s1926] sm:$0xe]
        %v3012 = vld [vmem:[%s1926 + $0xc] sm:$0xe]
        %v3013 = vld [vmem:[%s1926 + $0x18] sm:$0xe]
        %v3014 = vld [vmem:[%s1926 + $0x24] sm:$0xe]
        %v3015 = vld [vmem:[%s1926 + $0x30] sm:$0xe]
        %v3016 = vld [vmem:[%s1926 + $0x3c] sm:$0xe]
        %v3017 = vld [vmem:[%s1926 + $0x48] sm:$0xe]
        %v3018 = vld [vmem:[%s1926 + $0x54] sm:$0xe]
        %v3019 = vld [vmem:[%s1926 + $0x60] sm:$0xe]
        %v3020 = vld [vmem:[%s1926 + $0x6c] sm:$0xe]
        %v3021 = vld [vmem:[%s1926 + $0x78] sm:$0xe]
        %v3022 = vld [vmem:[%s1926 + $0x84] sm:$0xe]
        %v3023 = vld [vmem:[%s1926 + $0x90] sm:$0xe]
        %v3024 = vld [vmem:[%s1926 + $0x9c] sm:$0xe]
        %v3025 = vld [vmem:[%s1926 + $0xa8] sm:$0xe]
        %v3026 = vld [vmem:[%s1926 + $0xb4] sm:$0xe]
        %v3075 = vrot.slane %v3011, 5
        %v3076 = vrot.slane %v3075, 4
        %v3077 = vrot.slane %v2286, 5
        %v3078 = vsel %vm1519, %v3076, %v3077
        %v3079 = vrot.slane %v3077, 4
        %v3080 = vrot.slane %v2287, 5
        %v3081 = vsel %vm1519, %v3079, %v3080
        %v3082 = vrot.slane %v3012, 5
        %v3083 = vrot.slane %v3082, 4
        %v3084 = vrot.slane %v2289, 5
        %v3085 = vsel %vm1519, %v3083, %v3084
        %v3086 = vrot.slane %v3084, 4
        %v3087 = vrot.slane %v2290, 5
        %v3088 = vsel %vm1519, %v3086, %v3087
        %v3089 = vrot.slane %v3013, 5
        %v3090 = vrot.slane %v3089, 4
        %v3091 = vrot.slane %v2292, 5
        %v3092 = vsel %vm1519, %v3090, %v3091
        %v3093 = vrot.slane %v3091, 4
        %v3094 = vrot.slane %v2293, 5
        %v3095 = vsel %vm1519, %v3093, %v3094
        %v3096 = vrot.slane %v3014, 5
        %v3097 = vrot.slane %v3096, 4
        %v3098 = vrot.slane %v2295, 5
        %v3099 = vsel %vm1519, %v3097, %v3098
        %v3100 = vrot.slane %v3098, 4
        %v3101 = vrot.slane %v2296, 5
        %v3102 = vsel %vm1519, %v3100, %v3101
        %v3103 = vrot.slane %v3015, 5
        %v3104 = vrot.slane %v3103, 4
        %v3105 = vrot.slane %v2298, 5
        %v3106 = vsel %vm1519, %v3104, %v3105
        %v3107 = vrot.slane %v3105, 4
        %v3108 = vrot.slane %v2299, 5
        %v3109 = vsel %vm1519, %v3107, %v3108
        %v3110 = vrot.slane %v3016, 5
        %v3111 = vrot.slane %v3110, 4
        %v3112 = vrot.slane %v2301, 5
        %v3113 = vsel %vm1519, %v3111, %v3112
        %v3114 = vrot.slane %v3112, 4
        %v3115 = vrot.slane %v2302, 5
        %v3116 = vsel %vm1519, %v3114, %v3115
        %v3117 = vrot.slane %v3017, 5
        %v3118 = vrot.slane %v3117, 4
        %v3119 = vrot.slane %v2304, 5
        %v3120 = vsel %vm1519, %v3118, %v3119
        %v3121 = vrot.slane %v3119, 4
        %v3122 = vrot.slane %v2305, 5
        %v3123 = vsel %vm1519, %v3121, %v3122
        %v3124 = vrot.slane %v3018, 5
        %v3125 = vrot.slane %v3124, 4
        %v3126 = vrot.slane %v2307, 5
        %v3127 = vsel %vm1519, %v3125, %v3126
        %v3128 = vrot.slane %v3126, 4
        %v3129 = vrot.slane %v2308, 5
        %v3130 = vsel %vm1519, %v3128, %v3129
        %v3131 = vrot.slane %v3019, 5
        %v3132 = vrot.slane %v3131, 4
        %v3133 = vrot.slane %v2310, 5
        %v3134 = vsel %vm1519, %v3132, %v3133
        %v3135 = vrot.slane %v3133, 4
        %v3136 = vrot.slane %v2311, 5
        %v3137 = vsel %vm1519, %v3135, %v3136
        %v3138 = vrot.slane %v3020, 5
        %v3139 = vrot.slane %v3138, 4
        %v3140 = vrot.slane %v2313, 5
        %v3141 = vsel %vm1519, %v3139, %v3140
        %v3142 = vrot.slane %v3140, 4
        %v3143 = vrot.slane %v2314, 5
        %v3144 = vsel %vm1519, %v3142, %v3143
        %v3145 = vrot.slane %v3021, 5
        %v3146 = vrot.slane %v3145, 4
        %v3147 = vrot.slane %v2316, 5
        %v3148 = vsel %vm1519, %v3146, %v3147
        %v3149 = vrot.slane %v3147, 4
        %v3150 = vrot.slane %v2317, 5
        %v3151 = vsel %vm1519, %v3149, %v3150
        %v3152 = vrot.slane %v3022, 5
        %v3153 = vrot.slane %v3152, 4
        %v3154 = vrot.slane %v2319, 5
        %v3155 = vsel %vm1519, %v3153, %v3154
        %v3156 = vrot.slane %v3154, 4
        %v3157 = vrot.slane %v2320, 5
        %v3158 = vsel %vm1519, %v3156, %v3157
        %v3159 = vrot.slane %v3023, 5
        %v3160 = vrot.slane %v3159, 4
        %v3161 = vrot.slane %v2322, 5
        %v3162 = vsel %vm1519, %v3160, %v3161
        %v3163 = vrot.slane %v3161, 4
        %v3164 = vrot.slane %v2323, 5
        %v3165 = vsel %vm1519, %v3163, %v3164
        %v3166 = vrot.slane %v3024, 5
        %v3167 = vrot.slane %v3166, 4
        %v3168 = vrot.slane %v2325, 5
        %v3169 = vsel %vm1519, %v3167, %v3168
        %v3170 = vrot.slane %v3168, 4
        %v3171 = vrot.slane %v2326, 5
        %v3172 = vsel %vm1519, %v3170, %v3171
        %v3173 = vrot.slane %v3025, 5
        %v3174 = vrot.slane %v3173, 4
        %v3175 = vrot.slane %v2328, 5
        %v3176 = vsel %vm1519, %v3174, %v3175
        %v3177 = vrot.slane %v3175, 4
        %v3178 = vrot.slane %v2329, 5
        %v3179 = vsel %vm1519, %v3177, %v3178
        %v3180 = vrot.slane %v3026, 5
        %v3181 = vrot.slane %v3180, 4
        %v3182 = vrot.slane %v2331, 5
        %v3183 = vsel %vm1519, %v3181, %v3182
        %v3184 = vrot.slane %v3182, 4
        %v3185 = vrot.slane %v2332, 5
        %v3186 = vsel %vm1519, %v3184, %v3185
        %s3187 = scalar_lea.vmem %s277, 20
        %v3188 = vld [vmem:[%s3187] sm:$0xf]
        %v3189 = vunpack.c.l.b16 %v3078
        %v3190 = vunpack.c.l.b16 %v3081
        %v3191 = vunpack.c.l.b16 %v3085
        %v3192 = vunpack.c.l.b16 %v3088
        %v3193 = vunpack.c.l.b16 %v3092
        %v3194 = vunpack.c.l.b16 %v3095
        %v3195 = vunpack.c.l.b16 %v3099
        %v3196 = vunpack.c.l.b16 %v3102
        %v3197 = vunpack.c.l.b16 %v3106
        %v3198 = vunpack.c.l.b16 %v3109
        %v3199 = vunpack.c.l.b16 %v3113
        %v3200 = vunpack.c.l.b16 %v3116
        %v3201 = vunpack.c.l.b16 %v3120
        %v3202 = vunpack.c.l.b16 %v3123
        %v3203 = vunpack.c.l.b16 %v3127
        %v3204 = vunpack.c.l.b16 %v3130
        %v3205 = vunpack.c.l.b16 %v3134
        %v3206 = vunpack.c.l.b16 %v3137
        %v3207 = vunpack.c.l.b16 %v3141
        %v3208 = vunpack.c.l.b16 %v3144
        %v3209 = vunpack.c.l.b16 %v3148
        %v3210 = vunpack.c.l.b16 %v3151
        %v3211 = vunpack.c.l.b16 %v3155
        %v3212 = vunpack.c.l.b16 %v3158
        %v3213 = vunpack.c.l.b16 %v3162
        %v3214 = vunpack.c.l.b16 %v3165
        %v3215 = vunpack.c.l.b16 %v3169
        %v3216 = vunpack.c.l.b16 %v3172
        %v3217 = vunpack.c.l.b16 %v3176
        %v3218 = vunpack.c.l.b16 %v3179
        %v3219 = vunpack.c.l.b16 %v3183
        %v3220 = vunpack.c.l.b16 %v3186
        %v3221 = vpack.c.b16 %v3190, %v3189
        %v3222 = vpack.c.b16 %v3192, %v3191
        %v3223 = vpack.c.b16 %v3194, %v3193
        %v3224 = vpack.c.b16 %v3196, %v3195
        %v3225 = vpack.c.b16 %v3198, %v3197
        %v3226 = vpack.c.b16 %v3200, %v3199
        %v3227 = vpack.c.b16 %v3202, %v3201
        %v3228 = vpack.c.b16 %v3204, %v3203
        %v3229 = vpack.c.b16 %v3206, %v3205
        %v3230 = vpack.c.b16 %v3208, %v3207
        %v3231 = vpack.c.b16 %v3210, %v3209
        %v3232 = vpack.c.b16 %v3212, %v3211
        %v3233 = vpack.c.b16 %v3214, %v3213
        %v3234 = vpack.c.b16 %v3216, %v3215
        %v3235 = vpack.c.b16 %v3218, %v3217
        %v3236 = vpack.c.b16 %v3220, %v3219
        %v3238 = vsel %vm478, %v3221, 0
        %v3241 = vsel %vm478, %v3222, 0
        %v3244 = vsel %vm478, %v3223, 0
        %v3247 = vsel %vm478, %v3224, 0
        %v3250 = vsel %vm478, %v3225, 0
        %v3253 = vsel %vm478, %v3226, 0
        %v3256 = vsel %vm478, %v3227, 0
        %v3259 = vsel %vm478, %v3228, 0
        %v3262 = vsel %vm478, %v3229, 0
        %v3265 = vsel %vm478, %v3230, 0
        %v3268 = vsel %vm478, %v3231, 0
        %v3271 = vsel %vm478, %v3232, 0
        %v3274 = vsel %vm478, %v3233, 0
        %v3277 = vsel %vm478, %v3234, 0
        %v3280 = vsel %vm478, %v3235, 0
        %v3283 = vsel %vm478, %v3236, 0
        %v3286 = vsel %vm527, %v3188, 0
        %3288 = vmatprep.subr.bf16.mxu0 0
        %3289 = vmatpush1.bf16.msra.mxu0 %v3286
        %3290 = vmatprep.subr.bf16.mxu0 0
        %3291 = vmatpush1.bf16.msra.mxu0 0
        %3292 = vmatprep.subr.bf16.mxu0 0
        %3293 = vmatpush1.bf16.msra.mxu0 0
        %3294 = vmatprep.subr.bf16.mxu0 0
        %3295 = vmatpush1.bf16.msra.mxu0 0
        %3296 = vmatprep.subr.bf16.mxu0 0
        %3297 = vmatpush1.bf16.msra.mxu0 0
        %3298 = vmatprep.subr.bf16.mxu0 0
        %3299 = vmatpush1.bf16.msra.mxu0 0
        %3300 = vmatprep.subr.bf16.mxu0 0
        %3301 = vmatpush1.bf16.msra.mxu0 0
        %3302 = vmatprep.subr.bf16.mxu0 0
        %3303 = vmatpush1.bf16.msra.mxu0 0
        %3304 = vmatprep.subr.bf16.mxu0 0
        %3305 = vmatpush1.bf16.msra.mxu0 0
        %3306 = vmatprep.subr.bf16.mxu0 0
        %3307 = vmatpush1.bf16.msra.mxu0 0
        %3308 = vmatprep.subr.bf16.mxu0 0
        %3309 = vmatpush1.bf16.msra.mxu0 0
        %3310 = vmatprep.subr.bf16.mxu0 0
        %3311 = vmatpush1.bf16.msra.mxu0 0
        %3312 = vmatprep.subr.bf16.mxu0 0
        %3313 = vmatpush1.bf16.msra.mxu0 0
        %3314 = vmatprep.subr.bf16.mxu0 0
        %3315 = vmatpush1.bf16.msra.mxu0 0
        %3316 = vmatprep.subr.bf16.mxu0 0
        %3317 = vmatpush1.bf16.msra.mxu0 0
        %3318 = vmatprep.subr.bf16.mxu0 0
        %3319 = vmatpush1.bf16.msra.mxu0 0
        %3320 = vmatprep.mubr.bf16.mxu0 0
        %3321 = vmatmul.mubr.bf16.gmra.mrb[0].mxu0 %v3238
        %v3322 = vpop.f32.mrb[0].mxu0
        %v3323 = vadd.f32 0.0, %v3322
        %v3324 = vpop.f32.mrb[0].mxu0
        %v3325 = vpop.f32.mrb[0].mxu0
        %v3326 = vadd.f32 0.0, %v3325
        %v3327 = vpop.f32.mrb[0].mxu0
        %3328 = vmatprep.mubr.bf16.mxu0 0
        %3329 = vmatmul.mubr.bf16.gmra.mrb[0].mxu0 %v3241
        %v3330 = vpop.f32.mrb[0].mxu0
        %v3331 = vadd.f32 0.0, %v3330
        %v3332 = vpop.f32.mrb[0].mxu0
        %v3333 = vpop.f32.mrb[0].mxu0
        %v3334 = vadd.f32 0.0, %v3333
        %v3335 = vpop.f32.mrb[0].mxu0
        %3336 = vmatprep.mubr.bf16.mxu0 0
        %3337 = vmatmul.mubr.bf16.gmra.mrb[0].mxu0 %v3244
        %v3338 = vpop.f32.mrb[0].mxu0
        %v3339 = vadd.f32 0.0, %v3338
        %v3340 = vpop.f32.mrb[0].mxu0
        %v3341 = vpop.f32.mrb[0].mxu0
        %v3342 = vadd.f32 0.0, %v3341
        %v3343 = vpop.f32.mrb[0].mxu0
        %3344 = vmatprep.mubr.bf16.mxu0 0
        %3345 = vmatmul.mubr.bf16.gmra.mrb[0].mxu0 %v3247
        %v3346 = vpop.f32.mrb[0].mxu0
        %v3347 = vadd.f32 0.0, %v3346
        %v3348 = vpop.f32.mrb[0].mxu0
        %v3349 = vpop.f32.mrb[0].mxu0
        %v3350 = vadd.f32 0.0, %v3349
        %v3351 = vpop.f32.mrb[0].mxu0
        %3352 = vmatprep.mubr.bf16.mxu0 0
        %3353 = vmatmul.mubr.bf16.gmra.mrb[0].mxu0 %v3250
        %v3354 = vpop.f32.mrb[0].mxu0
        %v3355 = vadd.f32 0.0, %v3354
        %v3356 = vpop.f32.mrb[0].mxu0
        %v3357 = vpop.f32.mrb[0].mxu0
        %v3358 = vadd.f32 0.0, %v3357
        %v3359 = vpop.f32.mrb[0].mxu0
        %3360 = vmatprep.mubr.bf16.mxu0 0
        %3361 = vmatmul.mubr.bf16.gmra.mrb[0].mxu0 %v3253
        %v3362 = vpop.f32.mrb[0].mxu0
        %v3363 = vadd.f32 0.0, %v3362
        %v3364 = vpop.f32.mrb[0].mxu0
        %v3365 = vpop.f32.mrb[0].mxu0
        %v3366 = vadd.f32 0.0, %v3365
        %v3367 = vpop.f32.mrb[0].mxu0
        %3368 = vmatprep.mubr.bf16.mxu0 0
        %3369 = vmatmul.mubr.bf16.gmra.mrb[0].mxu0 %v3256
        %v3370 = vpop.f32.mrb[0].mxu0
        %v3371 = vadd.f32 0.0, %v3370
        %v3372 = vpop.f32.mrb[0].mxu0
        %v3373 = vpop.f32.mrb[0].mxu0
        %v3374 = vadd.f32 0.0, %v3373
        %v3375 = vpop.f32.mrb[0].mxu0
        %3376 = vmatprep.mubr.bf16.mxu0 0
        %3377 = vmatmul.mubr.bf16.gmra.mrb[0].mxu0 %v3259
        %v3378 = vpop.f32.mrb[0].mxu0
        %v3379 = vadd.f32 0.0, %v3378
        %v3380 = vpop.f32.mrb[0].mxu0
        %v3381 = vpop.f32.mrb[0].mxu0
        %v3382 = vadd.f32 0.0, %v3381
        %v3383 = vpop.f32.mrb[0].mxu0
        %3384 = vmatprep.mubr.bf16.mxu0 0
        %3385 = vmatmul.mubr.bf16.gmra.mrb[0].mxu0 %v3262
        %v3386 = vpop.f32.mrb[0].mxu0
        %v3387 = vadd.f32 0.0, %v3386
        %v3388 = vpop.f32.mrb[0].mxu0
        %v3389 = vpop.f32.mrb[0].mxu0
        %v3390 = vadd.f32 0.0, %v3389
        %v3391 = vpop.f32.mrb[0].mxu0
        %3392 = vmatprep.mubr.bf16.mxu0 0
        %3393 = vmatmul.mubr.bf16.gmra.mrb[0].mxu0 %v3265
        %v3394 = vpop.f32.mrb[0].mxu0
        %v3395 = vadd.f32 0.0, %v3394
        %v3396 = vpop.f32.mrb[0].mxu0
        %v3397 = vpop.f32.mrb[0].mxu0
        %v3398 = vadd.f32 0.0, %v3397
        %v3399 = vpop.f32.mrb[0].mxu0
        %3400 = vmatprep.mubr.bf16.mxu0 0
        %3401 = vmatmul.mubr.bf16.gmra.mrb[0].mxu0 %v3268
        %v3402 = vpop.f32.mrb[0].mxu0
        %v3403 = vadd.f32 0.0, %v3402
        %v3404 = vpop.f32.mrb[0].mxu0
        %v3405 = vpop.f32.mrb[0].mxu0
        %v3406 = vadd.f32 0.0, %v3405
        %v3407 = vpop.f32.mrb[0].mxu0
        %3408 = vmatprep.mubr.bf16.mxu0 0
        %3409 = vmatmul.mubr.bf16.gmra.mrb[0].mxu0 %v3271
        %v3410 = vpop.f32.mrb[0].mxu0
        %v3411 = vadd.f32 0.0, %v3410
        %v3412 = vpop.f32.mrb[0].mxu0
        %v3413 = vpop.f32.mrb[0].mxu0
        %v3414 = vadd.f32 0.0, %v3413
        %v3415 = vpop.f32.mrb[0].mxu0
        %3416 = vmatprep.mubr.bf16.mxu0 0
        %3417 = vmatmul.mubr.bf16.gmra.mrb[0].mxu0 %v3274
        %v3418 = vpop.f32.mrb[0].mxu0
        %v3419 = vadd.f32 0.0, %v3418
        %v3420 = vpop.f32.mrb[0].mxu0
        %v3421 = vpop.f32.mrb[0].mxu0
        %v3422 = vadd.f32 0.0, %v3421
        %v3423 = vpop.f32.mrb[0].mxu0
        %3424 = vmatprep.mubr.bf16.mxu0 0
        %3425 = vmatmul.mubr.bf16.gmra.mrb[0].mxu0 %v3277
        %v3426 = vpop.f32.mrb[0].mxu0
        %v3427 = vadd.f32 0.0, %v3426
        %v3428 = vpop.f32.mrb[0].mxu0
        %v3429 = vpop.f32.mrb[0].mxu0
        %v3430 = vadd.f32 0.0, %v3429
        %v3431 = vpop.f32.mrb[0].mxu0
        %3432 = vmatprep.mubr.bf16.mxu0 0
        %3433 = vmatmul.mubr.bf16.gmra.mrb[0].mxu0 %v3280
        %v3434 = vpop.f32.mrb[0].mxu0
        %v3435 = vadd.f32 0.0, %v3434
        %v3436 = vpop.f32.mrb[0].mxu0
        %v3437 = vpop.f32.mrb[0].mxu0
        %v3438 = vadd.f32 0.0, %v3437
        %v3439 = vpop.f32.mrb[0].mxu0
        %3440 = vmatprep.mubr.bf16.mxu0 0
        %3441 = vmatmul.mubr.bf16.gmra.mrb[0].mxu0 %v3283
        %v3442 = vpop.f32.mrb[0].mxu0
        %v3443 = vadd.f32 0.0, %v3442
        %v3444 = vpop.f32.mrb[0].mxu0
        %v3445 = vpop.f32.mrb[0].mxu0
        %v3446 = vadd.f32 0.0, %v3445
        %v3447 = vpop.f32.mrb[0].mxu0
        %3448 = vdwg.mxu0
        %v3449 = vadd.f32 %v2979, %v3323
        %v3450 = vadd.f32 %v2980, %v3326
        %v3451 = vadd.f32 %v2981, %v3331
        %v3452 = vadd.f32 %v2982, %v3334
        %v3453 = vadd.f32 %v2983, %v3339
        %v3454 = vadd.f32 %v2984, %v3342
        %v3455 = vadd.f32 %v2985, %v3347
        %v3456 = vadd.f32 %v2986, %v3350
        %v3457 = vadd.f32 %v2987, %v3355
        %v3458 = vadd.f32 %v2988, %v3358
        %v3459 = vadd.f32 %v2989, %v3363
        %v3460 = vadd.f32 %v2990, %v3366
        %v3461 = vadd.f32 %v2991, %v3371
        %v3462 = vadd.f32 %v2992, %v3374
        %v3463 = vadd.f32 %v2993, %v3379
        %v3464 = vadd.f32 %v2994, %v3382
        %v3465 = vadd.f32 %v2995, %v3387
        %v3466 = vadd.f32 %v2996, %v3390
        %v3467 = vadd.f32 %v2997, %v3395
        %v3468 = vadd.f32 %v2998, %v3398
        %v3469 = vadd.f32 %v2999, %v3403
        %v3470 = vadd.f32 %v3000, %v3406
        %v3471 = vadd.f32 %v3001, %v3411
        %v3472 = vadd.f32 %v3002, %v3414
        %v3473 = vadd.f32 %v3003, %v3419
        %v3474 = vadd.f32 %v3004, %v3422
        %v3475 = vadd.f32 %v3005, %v3427
        %v3476 = vadd.f32 %v3006, %v3430
        %v3477 = vadd.f32 %v3007, %v3435
        %v3478 = vadd.f32 %v3008, %v3438
        %v3479 = vadd.f32 %v3009, %v3443
        %v3480 = vadd.f32 %v3010, %v3446
        %s3481 = scalar_lea.vmem %s271, 24
        %v3482 = vld [vmem:[%s3481] sm:$0xf]
        %v3483 = vld [vmem:[%s3481 + $0x4] sm:$0xf]
        %v3484 = vld [vmem:[%s3481 + $0xc] sm:$0xf]
        %v3485 = vld [vmem:[%s3481 + $0x10] sm:$0xf]
        %v3486 = vld [vmem:[%s3481 + $0x18] sm:$0xf]
        %v3487 = vld [vmem:[%s3481 + $0x1c] sm:$0xf]
        %v3488 = vld [vmem:[%s3481 + $0x24] sm:$0xf]
        %v3489 = vld [vmem:[%s3481 + $0x28] sm:$0xf]
        %v3490 = vld [vmem:[%s3481 + $0x30] sm:$0xf]
        %v3491 = vld [vmem:[%s3481 + $0x34] sm:$0xf]
        %v3492 = vld [vmem:[%s3481 + $0x3c] sm:$0xf]
        %v3493 = vld [vmem:[%s3481 + $0x40] sm:$0xf]
        %v3494 = vld [vmem:[%s3481 + $0x48] sm:$0xf]
        %v3495 = vld [vmem:[%s3481 + $0x4c] sm:$0xf]
        %v3496 = vld [vmem:[%s3481 + $0x54] sm:$0xf]
        %v3497 = vld [vmem:[%s3481 + $0x58] sm:$0xf]
        %v3498 = vld [vmem:[%s3481 + $0x60] sm:$0xf]
        %v3499 = vld [vmem:[%s3481 + $0x64] sm:$0xf]
        %v3500 = vld [vmem:[%s3481 + $0x6c] sm:$0xf]
        %v3501 = vld [vmem:[%s3481 + $0x70] sm:$0xf]
        %v3502 = vld [vmem:[%s3481 + $0x78] sm:$0xf]
        %v3503 = vld [vmem:[%s3481 + $0x7c] sm:$0xf]
        %v3504 = vld [vmem:[%s3481 + $0x84] sm:$0xf]
        %v3505 = vld [vmem:[%s3481 + $0x88] sm:$0xf]
        %v3506 = vld [vmem:[%s3481 + $0x90] sm:$0xf]
        %v3507 = vld [vmem:[%s3481 + $0x94] sm:$0xf]
        %v3508 = vld [vmem:[%s3481 + $0x9c] sm:$0xf]
        %v3509 = vld [vmem:[%s3481 + $0xa0] sm:$0xf]
        %v3510 = vld [vmem:[%s3481 + $0xa8] sm:$0xf]
        %v3511 = vld [vmem:[%s3481 + $0xac] sm:$0xf]
        %v3512 = vld [vmem:[%s3481 + $0xb4] sm:$0xf]
        %v3513 = vld [vmem:[%s3481 + $0xb8] sm:$0xf]
        %s3514 = scalar_lea.vmem %s277, 24
        %v3515 = vld [vmem:[%s3514] sm:$0xf]
        %v3548 = vunpack.c.l.b16 %v3482
        %v3549 = vunpack.c.l.b16 %v3483
        %v3550 = vunpack.c.l.b16 %v3484
        %v3551 = vunpack.c.l.b16 %v3485
        %v3552 = vunpack.c.l.b16 %v3486
        %v3553 = vunpack.c.l.b16 %v3487
        %v3554 = vunpack.c.l.b16 %v3488
        %v3555 = vunpack.c.l.b16 %v3489
        %v3556 = vunpack.c.l.b16 %v3490
        %v3557 = vunpack.c.l.b16 %v3491
        %v3558 = vunpack.c.l.b16 %v3492
        %v3559 = vunpack.c.l.b16 %v3493
        %v3560 = vunpack.c.l.b16 %v3494
        %v3561 = vunpack.c.l.b16 %v3495
        %v3562 = vunpack.c.l.b16 %v3496
        %v3563 = vunpack.c.l.b16 %v3497
        %v3564 = vunpack.c.l.b16 %v3498
        %v3565 = vunpack.c.l.b16 %v3499
        %v3566 = vunpack.c.l.b16 %v3500
        %v3567 = vunpack.c.l.b16 %v3501
        %v3568 = vunpack.c.l.b16 %v3502
        %v3569 = vunpack.c.l.b16 %v3503
        %v3570 = vunpack.c.l.b16 %v3504
        %v3571 = vunpack.c.l.b16 %v3505
        %v3572 = vunpack.c.l.b16 %v3506
        %v3573 = vunpack.c.l.b16 %v3507
        %v3574 = vunpack.c.l.b16 %v3508
        %v3575 = vunpack.c.l.b16 %v3509
        %v3576 = vunpack.c.l.b16 %v3510
        %v3577 = vunpack.c.l.b16 %v3511
        %v3578 = vunpack.c.l.b16 %v3512
        %v3579 = vunpack.c.l.b16 %v3513
        %v3580 = vpack.c.b16 %v3549, %v3548
        %v3581 = vpack.c.b16 %v3551, %v3550
        %v3582 = vpack.c.b16 %v3553, %v3552
        %v3583 = vpack.c.b16 %v3555, %v3554
        %v3584 = vpack.c.b16 %v3557, %v3556
        %v3585 = vpack.c.b16 %v3559, %v3558
        %v3586 = vpack.c.b16 %v3561, %v3560
        %v3587 = vpack.c.b16 %v3563, %v3562
        %v3588 = vpack.c.b16 %v3565, %v3564
        %v3589 = vpack.c.b16 %v3567, %v3566
        %v3590 = vpack.c.b16 %v3569, %v3568
        %v3591 = vpack.c.b16 %v3571, %v3570
        %v3592 = vpack.c.b16 %v3573, %v3572
        %v3593 = vpack.c.b16 %v3575, %v3574
        %v3594 = vpack.c.b16 %v3577, %v3576
        %v3595 = vpack.c.b16 %v3579, %v3578
        %v3597 = vsel %vm478, %v3580, 0
        %v3600 = vsel %vm478, %v3581, 0
        %v3603 = vsel %vm478, %v3582, 0
        %v3606 = vsel %vm478, %v3583, 0
        %v3609 = vsel %vm478, %v3584, 0
        %v3612 = vsel %vm478, %v3585, 0
        %v3615 = vsel %vm478, %v3586, 0
        %v3618 = vsel %vm478, %v3587, 0
        %v3621 = vsel %vm478, %v3588, 0
        %v3624 = vsel %vm478, %v3589, 0
        %v3627 = vsel %vm478, %v3590, 0
        %v3630 = vsel %vm478, %v3591, 0
        %v3633 = vsel %vm478, %v3592, 0
        %v3636 = vsel %vm478, %v3593, 0
        %v3639 = vsel %vm478, %v3594, 0
        %v3642 = vsel %vm478, %v3595, 0
        %v3645 = vsel %vm527, %v3515, 0
        %3647 = vmatprep.subr.bf16.mxu0 0
        %3648 = vmatpush1.bf16.msra.mxu0 %v3645
        %3649 = vmatprep.subr.bf16.mxu0 0
        %3650 = vmatpush1.bf16.msra.mxu0 0
        %3651 = vmatprep.subr.bf16.mxu0 0
        %3652 = vmatpush1.bf16.msra.mxu0 0
        %3653 = vmatprep.subr.bf16.mxu0 0
        %3654 = vmatpush1.bf16.msra.mxu0 0
        %3655 = vmatprep.subr.bf16.mxu0 0
        %3656 = vmatpush1.bf16.msra.mxu0 0
        %3657 = vmatprep.subr.bf16.mxu0 0
        %3658 = vmatpush1.bf16.msra.mxu0 0
        %3659 = vmatprep.subr.bf16.mxu0 0
        %3660 = vmatpush1.bf16.msra.mxu0 0
        %3661 = vmatprep.subr.bf16.mxu0 0
        %3662 = vmatpush1.bf16.msra.mxu0 0
        %3663 = vmatprep.subr.bf16.mxu0 0
        %3664 = vmatpush1.bf16.msra.mxu0 0
        %3665 = vmatprep.subr.bf16.mxu0 0
        %3666 = vmatpush1.bf16.msra.mxu0 0
        %3667 = vmatprep.subr.bf16.mxu0 0
        %3668 = vmatpush1.bf16.msra.mxu0 0
        %3669 = vmatprep.subr.bf16.mxu0 0
        %3670 = vmatpush1.bf16.msra.mxu0 0
        %3671 = vmatprep.subr.bf16.mxu0 0
        %3672 = vmatpush1.bf16.msra.mxu0 0
        %3673 = vmatprep.subr.bf16.mxu0 0
        %3674 = vmatpush1.bf16.msra.mxu0 0
        %3675 = vmatprep.subr.bf16.mxu0 0
        %3676 = vmatpush1.bf16.msra.mxu0 0
        %3677 = vmatprep.subr.bf16.mxu0 0
        %3678 = vmatpush1.bf16.msra.mxu0 0
        %3679 = vmatprep.mubr.bf16.mxu0 0
        %3680 = vmatmul.mubr.bf16.gmra.mrb[0].mxu0 %v3597
        %v3681 = vpop.f32.mrb[0].mxu0
        %v3682 = vadd.f32 0.0, %v3681
        %v3683 = vpop.f32.mrb[0].mxu0
        %v3684 = vpop.f32.mrb[0].mxu0
        %v3685 = vadd.f32 0.0, %v3684
        %v3686 = vpop.f32.mrb[0].mxu0
        %3687 = vmatprep.mubr.bf16.mxu0 0
        %3688 = vmatmul.mubr.bf16.gmra.mrb[0].mxu0 %v3600
        %v3689 = vpop.f32.mrb[0].mxu0
        %v3690 = vadd.f32 0.0, %v3689
        %v3691 = vpop.f32.mrb[0].mxu0
        %v3692 = vpop.f32.mrb[0].mxu0
        %v3693 = vadd.f32 0.0, %v3692
        %v3694 = vpop.f32.mrb[0].mxu0
        %3695 = vmatprep.mubr.bf16.mxu0 0
        %3696 = vmatmul.mubr.bf16.gmra.mrb[0].mxu0 %v3603
        %v3697 = vpop.f32.mrb[0].mxu0
        %v3698 = vadd.f32 0.0, %v3697
        %v3699 = vpop.f32.mrb[0].mxu0
        %v3700 = vpop.f32.mrb[0].mxu0
        %v3701 = vadd.f32 0.0, %v3700
        %v3702 = vpop.f32.mrb[0].mxu0
        %3703 = vmatprep.mubr.bf16.mxu0 0
        %3704 = vmatmul.mubr.bf16.gmra.mrb[0].mxu0 %v3606
        %v3705 = vpop.f32.mrb[0].mxu0
        %v3706 = vadd.f32 0.0, %v3705
        %v3707 = vpop.f32.mrb[0].mxu0
        %v3708 = vpop.f32.mrb[0].mxu0
        %v3709 = vadd.f32 0.0, %v3708
        %v3710 = vpop.f32.mrb[0].mxu0
        %3711 = vmatprep.mubr.bf16.mxu0 0
        %3712 = vmatmul.mubr.bf16.gmra.mrb[0].mxu0 %v3609
        %v3713 = vpop.f32.mrb[0].mxu0
        %v3714 = vadd.f32 0.0, %v3713
        %v3715 = vpop.f32.mrb[0].mxu0
        %v3716 = vpop.f32.mrb[0].mxu0
        %v3717 = vadd.f32 0.0, %v3716
        %v3718 = vpop.f32.mrb[0].mxu0
        %3719 = vmatprep.mubr.bf16.mxu0 0
        %3720 = vmatmul.mubr.bf16.gmra.mrb[0].mxu0 %v3612
        %v3721 = vpop.f32.mrb[0].mxu0
        %v3722 = vadd.f32 0.0, %v3721
        %v3723 = vpop.f32.mrb[0].mxu0
        %v3724 = vpop.f32.mrb[0].mxu0
        %v3725 = vadd.f32 0.0, %v3724
        %v3726 = vpop.f32.mrb[0].mxu0
        %3727 = vmatprep.mubr.bf16.mxu0 0
        %3728 = vmatmul.mubr.bf16.gmra.mrb[0].mxu0 %v3615
        %v3729 = vpop.f32.mrb[0].mxu0
        %v3730 = vadd.f32 0.0, %v3729
        %v3731 = vpop.f32.mrb[0].mxu0
        %v3732 = vpop.f32.mrb[0].mxu0
        %v3733 = vadd.f32 0.0, %v3732
        %v3734 = vpop.f32.mrb[0].mxu0
        %3735 = vmatprep.mubr.bf16.mxu0 0
        %3736 = vmatmul.mubr.bf16.gmra.mrb[0].mxu0 %v3618
        %v3737 = vpop.f32.mrb[0].mxu0
        %v3738 = vadd.f32 0.0, %v3737
        %v3739 = vpop.f32.mrb[0].mxu0
        %v3740 = vpop.f32.mrb[0].mxu0
        %v3741 = vadd.f32 0.0, %v3740
        %v3742 = vpop.f32.mrb[0].mxu0
        %3743 = vmatprep.mubr.bf16.mxu0 0
        %3744 = vmatmul.mubr.bf16.gmra.mrb[0].mxu0 %v3621
        %v3745 = vpop.f32.mrb[0].mxu0
        %v3746 = vadd.f32 0.0, %v3745
        %v3747 = vpop.f32.mrb[0].mxu0
        %v3748 = vpop.f32.mrb[0].mxu0
        %v3749 = vadd.f32 0.0, %v3748
        %v3750 = vpop.f32.mrb[0].mxu0
        %3751 = vmatprep.mubr.bf16.mxu0 0
        %3752 = vmatmul.mubr.bf16.gmra.mrb[0].mxu0 %v3624
        %v3753 = vpop.f32.mrb[0].mxu0
        %v3754 = vadd.f32 0.0, %v3753
        %v3755 = vpop.f32.mrb[0].mxu0
        %v3756 = vpop.f32.mrb[0].mxu0
        %v3757 = vadd.f32 0.0, %v3756
        %v3758 = vpop.f32.mrb[0].mxu0
        %3759 = vmatprep.mubr.bf16.mxu0 0
        %3760 = vmatmul.mubr.bf16.gmra.mrb[0].mxu0 %v3627
        %v3761 = vpop.f32.mrb[0].mxu0
        %v3762 = vadd.f32 0.0, %v3761
        %v3763 = vpop.f32.mrb[0].mxu0
        %v3764 = vpop.f32.mrb[0].mxu0
        %v3765 = vadd.f32 0.0, %v3764
        %v3766 = vpop.f32.mrb[0].mxu0
        %3767 = vmatprep.mubr.bf16.mxu0 0
        %3768 = vmatmul.mubr.bf16.gmra.mrb[0].mxu0 %v3630
        %v3769 = vpop.f32.mrb[0].mxu0
        %v3770 = vadd.f32 0.0, %v3769
        %v3771 = vpop.f32.mrb[0].mxu0
        %v3772 = vpop.f32.mrb[0].mxu0
        %v3773 = vadd.f32 0.0, %v3772
        %v3774 = vpop.f32.mrb[0].mxu0
        %3775 = vmatprep.mubr.bf16.mxu0 0
        %3776 = vmatmul.mubr.bf16.gmra.mrb[0].mxu0 %v3633
        %v3777 = vpop.f32.mrb[0].mxu0
        %v3778 = vadd.f32 0.0, %v3777
        %v3779 = vpop.f32.mrb[0].mxu0
        %v3780 = vpop.f32.mrb[0].mxu0
        %v3781 = vadd.f32 0.0, %v3780
        %v3782 = vpop.f32.mrb[0].mxu0
        %3783 = vmatprep.mubr.bf16.mxu0 0
        %3784 = vmatmul.mubr.bf16.gmra.mrb[0].mxu0 %v3636
        %v3785 = vpop.f32.mrb[0].mxu0
        %v3786 = vadd.f32 0.0, %v3785
        %v3787 = vpop.f32.mrb[0].mxu0
        %v3788 = vpop.f32.mrb[0].mxu0
        %v3789 = vadd.f32 0.0, %v3788
        %v3790 = vpop.f32.mrb[0].mxu0
        %3791 = vmatprep.mubr.bf16.mxu0 0
        %3792 = vmatmul.mubr.bf16.gmra.mrb[0].mxu0 %v3639
        %v3793 = vpop.f32.mrb[0].mxu0
        %v3794 = vadd.f32 0.0, %v3793
        %v3795 = vpop.f32.mrb[0].mxu0
        %v3796 = vpop.f32.mrb[0].mxu0
        %v3797 = vadd.f32 0.0, %v3796
        %v3798 = vpop.f32.mrb[0].mxu0
        %3799 = vmatprep.mubr.bf16.mxu0 0
        %3800 = vmatmul.mubr.bf16.gmra.mrb[0].mxu0 %v3642
        %v3801 = vpop.f32.mrb[0].mxu0
        %v3802 = vadd.f32 0.0, %v3801
        %v3803 = vpop.f32.mrb[0].mxu0
        %v3804 = vpop.f32.mrb[0].mxu0
        %v3805 = vadd.f32 0.0, %v3804
        %v3806 = vpop.f32.mrb[0].mxu0
        %3807 = vdwg.mxu0
        %v3808 = vadd.f32 %v3449, %v3682
        %v3809 = vadd.f32 %v3450, %v3685
        %v3810 = vadd.f32 %v3451, %v3690
        %v3811 = vadd.f32 %v3452, %v3693
        %v3812 = vadd.f32 %v3453, %v3698
        %v3813 = vadd.f32 %v3454, %v3701
        %v3814 = vadd.f32 %v3455, %v3706
        %v3815 = vadd.f32 %v3456, %v3709
        %v3816 = vadd.f32 %v3457, %v3714
        %v3817 = vadd.f32 %v3458, %v3717
        %v3818 = vadd.f32 %v3459, %v3722
        %v3819 = vadd.f32 %v3460, %v3725
        %v3820 = vadd.f32 %v3461, %v3730
        %v3821 = vadd.f32 %v3462, %v3733
        %v3822 = vadd.f32 %v3463, %v3738
        %v3823 = vadd.f32 %v3464, %v3741
        %v3824 = vadd.f32 %v3465, %v3746
        %v3825 = vadd.f32 %v3466, %v3749
        %v3826 = vadd.f32 %v3467, %v3754
        %v3827 = vadd.f32 %v3468, %v3757
        %v3828 = vadd.f32 %v3469, %v3762
        %v3829 = vadd.f32 %v3470, %v3765
        %v3830 = vadd.f32 %v3471, %v3770
        %v3831 = vadd.f32 %v3472, %v3773
        %v3832 = vadd.f32 %v3473, %v3778
        %v3833 = vadd.f32 %v3474, %v3781
        %v3834 = vadd.f32 %v3475, %v3786
        %v3835 = vadd.f32 %v3476, %v3789
        %v3836 = vadd.f32 %v3477, %v3794
        %v3837 = vadd.f32 %v3478, %v3797
        %v3838 = vadd.f32 %v3479, %v3802
        %v3839 = vadd.f32 %v3480, %v3805
        %v3840 = vld [vmem:[%s3481] sm:$0xf]
        %v3841 = vld [vmem:[%s3481 + $0x4] sm:$0xf]
        %v3842 = vld [vmem:[%s3481 + $0x8] sm:$0x1]
        %v3843 = vld [vmem:[%s3481 + $0xc] sm:$0xf]
        %v3844 = vld [vmem:[%s3481 + $0x10] sm:$0xf]
        %v3845 = vld [vmem:[%s3481 + $0x14] sm:$0x1]
        %v3846 = vld [vmem:[%s3481 + $0x18] sm:$0xf]
        %v3847 = vld [vmem:[%s3481 + $0x1c] sm:$0xf]
        %v3848 = vld [vmem:[%s3481 + $0x20] sm:$0x1]
        %v3849 = vld [vmem:[%s3481 + $0x24] sm:$0xf]
        %v3850 = vld [vmem:[%s3481 + $0x28] sm:$0xf]
        %v3851 = vld [vmem:[%s3481 + $0x2c] sm:$0x1]
        %v3852 = vld [vmem:[%s3481 + $0x30] sm:$0xf]
        %v3853 = vld [vmem:[%s3481 + $0x34] sm:$0xf]
        %v3854 = vld [vmem:[%s3481 + $0x38] sm:$0x1]
        %v3855 = vld [vmem:[%s3481 + $0x3c] sm:$0xf]
        %v3856 = vld [vmem:[%s3481 + $0x40] sm:$0xf]
        %v3857 = vld [vmem:[%s3481 + $0x44] sm:$0x1]
        %v3858 = vld [vmem:[%s3481 + $0x48] sm:$0xf]
        %v3859 = vld [vmem:[%s3481 + $0x4c] sm:$0xf]
        %v3860 = vld [vmem:[%s3481 + $0x50] sm:$0x1]
        %v3861 = vld [vmem:[%s3481 + $0x54] sm:$0xf]
        %v3862 = vld [vmem:[%s3481 + $0x58] sm:$0xf]
        %v3863 = vld [vmem:[%s3481 + $0x5c] sm:$0x1]
        %v3864 = vld [vmem:[%s3481 + $0x60] sm:$0xf]
        %v3865 = vld [vmem:[%s3481 + $0x64] sm:$0xf]
        %v3866 = vld [vmem:[%s3481 + $0x68] sm:$0x1]
        %v3867 = vld [vmem:[%s3481 + $0x6c] sm:$0xf]
        %v3868 = vld [vmem:[%s3481 + $0x70] sm:$0xf]
        %v3869 = vld [vmem:[%s3481 + $0x74] sm:$0x1]
        %v3870 = vld [vmem:[%s3481 + $0x78] sm:$0xf]
        %v3871 = vld [vmem:[%s3481 + $0x7c] sm:$0xf]
        %v3872 = vld [vmem:[%s3481 + $0x80] sm:$0x1]
        %v3873 = vld [vmem:[%s3481 + $0x84] sm:$0xf]
        %v3874 = vld [vmem:[%s3481 + $0x88] sm:$0xf]
        %v3875 = vld [vmem:[%s3481 + $0x8c] sm:$0x1]
        %v3876 = vld [vmem:[%s3481 + $0x90] sm:$0xf]
        %v3877 = vld [vmem:[%s3481 + $0x94] sm:$0xf]
        %v3878 = vld [vmem:[%s3481 + $0x98] sm:$0x1]
        %v3879 = vld [vmem:[%s3481 + $0x9c] sm:$0xf]
        %v3880 = vld [vmem:[%s3481 + $0xa0] sm:$0xf]
        %v3881 = vld [vmem:[%s3481 + $0xa4] sm:$0x1]
        %v3882 = vld [vmem:[%s3481 + $0xa8] sm:$0xf]
        %v3883 = vld [vmem:[%s3481 + $0xac] sm:$0xf]
        %v3884 = vld [vmem:[%s3481 + $0xb0] sm:$0x1]
        %v3885 = vld [vmem:[%s3481 + $0xb4] sm:$0xf]
        %v3886 = vld [vmem:[%s3481 + $0xb8] sm:$0xf]
        %v3887 = vld [vmem:[%s3481 + $0xbc] sm:$0x1]
        %v3889 = vshrl.u32 %v3840, 16
        %v3891 = vrot.slane %v3889, 4
        %v3892 = vshll.u32 %v3840, 16
        %v3894 = vrot.slane %v3892, 5
        %v3895 = vor.u32 %v3891, %v3894
        %v3896 = vrot.slane %v3895, 4
        %v3898 = vshll.u32 %v3841, 16
        %v3900 = vrot.slane %v3898, 5
        %v3901 = vsel %vm774, %v3896, %v3900
        %v3902 = vshrl.u32 %v3841, 16
        %v3904 = vrot.slane %v3902, 4
        %v3905 = vor.u32 %v3904, %v3900
        %v3906 = vrot.slane %v3905, 4
        %v3908 = vshll.u32 %v3842, 16
        %v3910 = vrot.slane %v3908, 5
        %v3911 = vsel %vm774, %v3906, %v3910
        %v3913 = vshrl.u32 %v3843, 16
        %v3915 = vrot.slane %v3913, 4
        %v3916 = vshll.u32 %v3843, 16
        %v3918 = vrot.slane %v3916, 5
        %v3919 = vor.u32 %v3915, %v3918
        %v3920 = vrot.slane %v3919, 4
        %v3922 = vshll.u32 %v3844, 16
        %v3924 = vrot.slane %v3922, 5
        %v3925 = vsel %vm774, %v3920, %v3924
        %v3926 = vshrl.u32 %v3844, 16
        %v3928 = vrot.slane %v3926, 4
        %v3929 = vor.u32 %v3928, %v3924
        %v3930 = vrot.slane %v3929, 4
        %v3932 = vshll.u32 %v3845, 16
        %v3934 = vrot.slane %v3932, 5
        %v3935 = vsel %vm774, %v3930, %v3934
        %v3937 = vshrl.u32 %v3846, 16
        %v3939 = vrot.slane %v3937, 4
        %v3940 = vshll.u32 %v3846, 16
        %v3942 = vrot.slane %v3940, 5
        %v3943 = vor.u32 %v3939, %v3942
        %v3944 = vrot.slane %v3943, 4
        %v3946 = vshll.u32 %v3847, 16
        %v3948 = vrot.slane %v3946, 5
        %v3949 = vsel %vm774, %v3944, %v3948
        %v3950 = vshrl.u32 %v3847, 16
        %v3952 = vrot.slane %v3950, 4
        %v3953 = vor.u32 %v3952, %v3948
        %v3954 = vrot.slane %v3953, 4
        %v3956 = vshll.u32 %v3848, 16
        %v3958 = vrot.slane %v3956, 5
        %v3959 = vsel %vm774, %v3954, %v3958
        %v3961 = vshrl.u32 %v3849, 16
        %v3963 = vrot.slane %v3961, 4
        %v3964 = vshll.u32 %v3849, 16
        %v3966 = vrot.slane %v3964, 5
        %v3967 = vor.u32 %v3963, %v3966
        %v3968 = vrot.slane %v3967, 4
        %v3970 = vshll.u32 %v3850, 16
        %v3972 = vrot.slane %v3970, 5
        %v3973 = vsel %vm774, %v3968, %v3972
        %v3974 = vshrl.u32 %v3850, 16
        %v3976 = vrot.slane %v3974, 4
        %v3977 = vor.u32 %v3976, %v3972
        %v3978 = vrot.slane %v3977, 4
        %v3980 = vshll.u32 %v3851, 16
        %v3982 = vrot.slane %v3980, 5
        %v3983 = vsel %vm774, %v3978, %v3982
        %v3985 = vshrl.u32 %v3852, 16
        %v3987 = vrot.slane %v3985, 4
        %v3988 = vshll.u32 %v3852, 16
        %v3990 = vrot.slane %v3988, 5
        %v3991 = vor.u32 %v3987, %v3990
        %v3992 = vrot.slane %v3991, 4
        %v3994 = vshll.u32 %v3853, 16
        %v3996 = vrot.slane %v3994, 5
        %v3997 = vsel %vm774, %v3992, %v3996
        %v3998 = vshrl.u32 %v3853, 16
        %v4000 = vrot.slane %v3998, 4
        %v4001 = vor.u32 %v4000, %v3996
        %v4002 = vrot.slane %v4001, 4
        %v4004 = vshll.u32 %v3854, 16
        %v4006 = vrot.slane %v4004, 5
        %v4007 = vsel %vm774, %v4002, %v4006
        %v4009 = vshrl.u32 %v3855, 16
        %v4011 = vrot.slane %v4009, 4
        %v4012 = vshll.u32 %v3855, 16
        %v4014 = vrot.slane %v4012, 5
        %v4015 = vor.u32 %v4011, %v4014
        %v4016 = vrot.slane %v4015, 4
        %v4018 = vshll.u32 %v3856, 16
        %v4020 = vrot.slane %v4018, 5
        %v4021 = vsel %vm774, %v4016, %v4020
        %v4022 = vshrl.u32 %v3856, 16
        %v4024 = vrot.slane %v4022, 4
        %v4025 = vor.u32 %v4024, %v4020
        %v4026 = vrot.slane %v4025, 4
        %v4028 = vshll.u32 %v3857, 16
        %v4030 = vrot.slane %v4028, 5
        %v4031 = vsel %vm774, %v4026, %v4030
        %v4033 = vshrl.u32 %v3858, 16
        %v4035 = vrot.slane %v4033, 4
        %v4036 = vshll.u32 %v3858, 16
        %v4038 = vrot.slane %v4036, 5
        %v4039 = vor.u32 %v4035, %v4038
        %v4040 = vrot.slane %v4039, 4
        %v4042 = vshll.u32 %v3859, 16
        %v4044 = vrot.slane %v4042, 5
        %v4045 = vsel %vm774, %v4040, %v4044
        %v4046 = vshrl.u32 %v3859, 16
        %v4048 = vrot.slane %v4046, 4
        %v4049 = vor.u32 %v4048, %v4044
        %v4050 = vrot.slane %v4049, 4
        %v4052 = vshll.u32 %v3860, 16
        %v4054 = vrot.slane %v4052, 5
        %v4055 = vsel %vm774, %v4050, %v4054
        %v4057 = vshrl.u32 %v3861, 16
        %v4059 = vrot.slane %v4057, 4
        %v4060 = vshll.u32 %v3861, 16
        %v4062 = vrot.slane %v4060, 5
        %v4063 = vor.u32 %v4059, %v4062
        %v4064 = vrot.slane %v4063, 4
        %v4066 = vshll.u32 %v3862, 16
        %v4068 = vrot.slane %v4066, 5
        %v4069 = vsel %vm774, %v4064, %v4068
        %v4070 = vshrl.u32 %v3862, 16
        %v4072 = vrot.slane %v4070, 4
        %v4073 = vor.u32 %v4072, %v4068
        %v4074 = vrot.slane %v4073, 4
        %v4076 = vshll.u32 %v3863, 16
        %v4078 = vrot.slane %v4076, 5
        %v4079 = vsel %vm774, %v4074, %v4078
        %v4081 = vshrl.u32 %v3864, 16
        %v4083 = vrot.slane %v4081, 4
        %v4084 = vshll.u32 %v3864, 16
        %v4086 = vrot.slane %v4084, 5
        %v4087 = vor.u32 %v4083, %v4086
        %v4088 = vrot.slane %v4087, 4
        %v4090 = vshll.u32 %v3865, 16
        %v4092 = vrot.slane %v4090, 5
        %v4093 = vsel %vm774, %v4088, %v4092
        %v4094 = vshrl.u32 %v3865, 16
        %v4096 = vrot.slane %v4094, 4
        %v4097 = vor.u32 %v4096, %v4092
        %v4098 = vrot.slane %v4097, 4
        %v4100 = vshll.u32 %v3866, 16
        %v4102 = vrot.slane %v4100, 5
        %v4103 = vsel %vm774, %v4098, %v4102
        %v4105 = vshrl.u32 %v3867, 16
        %v4107 = vrot.slane %v4105, 4
        %v4108 = vshll.u32 %v3867, 16
        %v4110 = vrot.slane %v4108, 5
        %v4111 = vor.u32 %v4107, %v4110
        %v4112 = vrot.slane %v4111, 4
        %v4114 = vshll.u32 %v3868, 16
        %v4116 = vrot.slane %v4114, 5
        %v4117 = vsel %vm774, %v4112, %v4116
        %v4118 = vshrl.u32 %v3868, 16
        %v4120 = vrot.slane %v4118, 4
        %v4121 = vor.u32 %v4120, %v4116
        %v4122 = vrot.slane %v4121, 4
        %v4124 = vshll.u32 %v3869, 16
        %v4126 = vrot.slane %v4124, 5
        %v4127 = vsel %vm774, %v4122, %v4126
        %v4129 = vshrl.u32 %v3870, 16
        %v4131 = vrot.slane %v4129, 4
        %v4132 = vshll.u32 %v3870, 16
        %v4134 = vrot.slane %v4132, 5
        %v4135 = vor.u32 %v4131, %v4134
        %v4136 = vrot.slane %v4135, 4
        %v4138 = vshll.u32 %v3871, 16
        %v4140 = vrot.slane %v4138, 5
        %v4141 = vsel %vm774, %v4136, %v4140
        %v4142 = vshrl.u32 %v3871, 16
        %v4144 = vrot.slane %v4142, 4
        %v4145 = vor.u32 %v4144, %v4140
        %v4146 = vrot.slane %v4145, 4
        %v4148 = vshll.u32 %v3872, 16
        %v4150 = vrot.slane %v4148, 5
        %v4151 = vsel %vm774, %v4146, %v4150
        %v4153 = vshrl.u32 %v3873, 16
        %v4155 = vrot.slane %v4153, 4
        %v4156 = vshll.u32 %v3873, 16
        %v4158 = vrot.slane %v4156, 5
        %v4159 = vor.u32 %v4155, %v4158
        %v4160 = vrot.slane %v4159, 4
        %v4162 = vshll.u32 %v3874, 16
        %v4164 = vrot.slane %v4162, 5
        %v4165 = vsel %vm774, %v4160, %v4164
        %v4166 = vshrl.u32 %v3874, 16
        %v4168 = vrot.slane %v4166, 4
        %v4169 = vor.u32 %v4168, %v4164
        %v4170 = vrot.slane %v4169, 4
        %v4172 = vshll.u32 %v3875, 16
        %v4174 = vrot.slane %v4172, 5
        %v4175 = vsel %vm774, %v4170, %v4174
        %v4177 = vshrl.u32 %v3876, 16
        %v4179 = vrot.slane %v4177, 4
        %v4180 = vshll.u32 %v3876, 16
        %v4182 = vrot.slane %v4180, 5
        %v4183 = vor.u32 %v4179, %v4182
        %v4184 = vrot.slane %v4183, 4
        %v4186 = vshll.u32 %v3877, 16
        %v4188 = vrot.slane %v4186, 5
        %v4189 = vsel %vm774, %v4184, %v4188
        %v4190 = vshrl.u32 %v3877, 16
        %v4192 = vrot.slane %v4190, 4
        %v4193 = vor.u32 %v4192, %v4188
        %v4194 = vrot.slane %v4193, 4
        %v4196 = vshll.u32 %v3878, 16
        %v4198 = vrot.slane %v4196, 5
        %v4199 = vsel %vm774, %v4194, %v4198
        %v4201 = vshrl.u32 %v3879, 16
        %v4203 = vrot.slane %v4201, 4
        %v4204 = vshll.u32 %v3879, 16
        %v4206 = vrot.slane %v4204, 5
        %v4207 = vor.u32 %v4203, %v4206
        %v4208 = vrot.slane %v4207, 4
        %v4210 = vshll.u32 %v3880, 16
        %v4212 = vrot.slane %v4210, 5
        %v4213 = vsel %vm774, %v4208, %v4212
        %v4214 = vshrl.u32 %v3880, 16
        %v4216 = vrot.slane %v4214, 4
        %v4217 = vor.u32 %v4216, %v4212
        %v4218 = vrot.slane %v4217, 4
        %v4220 = vshll.u32 %v3881, 16
        %v4222 = vrot.slane %v4220, 5
        %v4223 = vsel %vm774, %v4218, %v4222
        %v4225 = vshrl.u32 %v3882, 16
        %v4227 = vrot.slane %v4225, 4
        %v4228 = vshll.u32 %v3882, 16
        %v4230 = vrot.slane %v4228, 5
        %v4231 = vor.u32 %v4227, %v4230
        %v4232 = vrot.slane %v4231, 4
        %v4234 = vshll.u32 %v3883, 16
        %v4236 = vrot.slane %v4234, 5
        %v4237 = vsel %vm774, %v4232, %v4236
        %v4238 = vshrl.u32 %v3883, 16
        %v4240 = vrot.slane %v4238, 4
        %v4241 = vor.u32 %v4240, %v4236
        %v4242 = vrot.slane %v4241, 4
        %v4244 = vshll.u32 %v3884, 16
        %v4246 = vrot.slane %v4244, 5
        %v4247 = vsel %vm774, %v4242, %v4246
        %v4249 = vshrl.u32 %v3885, 16
        %v4251 = vrot.slane %v4249, 4
        %v4252 = vshll.u32 %v3885, 16
        %v4254 = vrot.slane %v4252, 5
        %v4255 = vor.u32 %v4251, %v4254
        %v4256 = vrot.slane %v4255, 4
        %v4258 = vshll.u32 %v3886, 16
        %v4260 = vrot.slane %v4258, 5
        %v4261 = vsel %vm774, %v4256, %v4260
        %v4262 = vshrl.u32 %v3886, 16
        %v4264 = vrot.slane %v4262, 4
        %v4265 = vor.u32 %v4264, %v4260
        %v4266 = vrot.slane %v4265, 4
        %v4268 = vshll.u32 %v3887, 16
        %v4270 = vrot.slane %v4268, 5
        %v4271 = vsel %vm774, %v4266, %v4270
        %s4272 = scalar_lea.vmem %s277, 28
        %v4273 = vld [vmem:[%s4272] sm:$0xf]
        %v4274 = vunpack.c.l.b16 %v3901
        %v4275 = vunpack.c.l.b16 %v3911
        %v4276 = vunpack.c.l.b16 %v3925
        %v4277 = vunpack.c.l.b16 %v3935
        %v4278 = vunpack.c.l.b16 %v3949
        %v4279 = vunpack.c.l.b16 %v3959
        %v4280 = vunpack.c.l.b16 %v3973
        %v4281 = vunpack.c.l.b16 %v3983
        %v4282 = vunpack.c.l.b16 %v3997
        %v4283 = vunpack.c.l.b16 %v4007
        %v4284 = vunpack.c.l.b16 %v4021
        %v4285 = vunpack.c.l.b16 %v4031
        %v4286 = vunpack.c.l.b16 %v4045
        %v4287 = vunpack.c.l.b16 %v4055
        %v4288 = vunpack.c.l.b16 %v4069
        %v4289 = vunpack.c.l.b16 %v4079
        %v4290 = vunpack.c.l.b16 %v4093
        %v4291 = vunpack.c.l.b16 %v4103
        %v4292 = vunpack.c.l.b16 %v4117
        %v4293 = vunpack.c.l.b16 %v4127
        %v4294 = vunpack.c.l.b16 %v4141
        %v4295 = vunpack.c.l.b16 %v4151
        %v4296 = vunpack.c.l.b16 %v4165
        %v4297 = vunpack.c.l.b16 %v4175
        %v4298 = vunpack.c.l.b16 %v4189
        %v4299 = vunpack.c.l.b16 %v4199
        %v4300 = vunpack.c.l.b16 %v4213
        %v4301 = vunpack.c.l.b16 %v4223
        %v4302 = vunpack.c.l.b16 %v4237
        %v4303 = vunpack.c.l.b16 %v4247
        %v4304 = vunpack.c.l.b16 %v4261
        %v4305 = vunpack.c.l.b16 %v4271
        %v4306 = vpack.c.b16 %v4275, %v4274
        %v4307 = vpack.c.b16 %v4277, %v4276
        %v4308 = vpack.c.b16 %v4279, %v4278
        %v4309 = vpack.c.b16 %v4281, %v4280
        %v4310 = vpack.c.b16 %v4283, %v4282
        %v4311 = vpack.c.b16 %v4285, %v4284
        %v4312 = vpack.c.b16 %v4287, %v4286
        %v4313 = vpack.c.b16 %v4289, %v4288
        %v4314 = vpack.c.b16 %v4291, %v4290
        %v4315 = vpack.c.b16 %v4293, %v4292
        %v4316 = vpack.c.b16 %v4295, %v4294
        %v4317 = vpack.c.b16 %v4297, %v4296
        %v4318 = vpack.c.b16 %v4299, %v4298
        %v4319 = vpack.c.b16 %v4301, %v4300
        %v4320 = vpack.c.b16 %v4303, %v4302
        %v4321 = vpack.c.b16 %v4305, %v4304
        %v4323 = vsel %vm478, %v4306, 0
        %v4326 = vsel %vm478, %v4307, 0
        %v4329 = vsel %vm478, %v4308, 0
        %v4332 = vsel %vm478, %v4309, 0
        %v4335 = vsel %vm478, %v4310, 0
        %v4338 = vsel %vm478, %v4311, 0
        %v4341 = vsel %vm478, %v4312, 0
        %v4344 = vsel %vm478, %v4313, 0
        %v4347 = vsel %vm478, %v4314, 0
        %v4350 = vsel %vm478, %v4315, 0
        %v4353 = vsel %vm478, %v4316, 0
        %v4356 = vsel %vm478, %v4317, 0
        %v4359 = vsel %vm478, %v4318, 0
        %v4362 = vsel %vm478, %v4319, 0
        %v4365 = vsel %vm478, %v4320, 0
        %v4368 = vsel %vm478, %v4321, 0
        %v4371 = vsel %vm527, %v4273, 0
        %4373 = vmatprep.subr.bf16.mxu0 0
        %4374 = vmatpush1.bf16.msra.mxu0 %v4371
        %4375 = vmatprep.subr.bf16.mxu0 0
        %4376 = vmatpush1.bf16.msra.mxu0 0
        %4377 = vmatprep.subr.bf16.mxu0 0
        %4378 = vmatpush1.bf16.msra.mxu0 0
        %4379 = vmatprep.subr.bf16.mxu0 0
        %4380 = vmatpush1.bf16.msra.mxu0 0
        %4381 = vmatprep.subr.bf16.mxu0 0
        %4382 = vmatpush1.bf16.msra.mxu0 0
        %4383 = vmatprep.subr.bf16.mxu0 0
        %4384 = vmatpush1.bf16.msra.mxu0 0
        %4385 = vmatprep.subr.bf16.mxu0 0
        %4386 = vmatpush1.bf16.msra.mxu0 0
        %4387 = vmatprep.subr.bf16.mxu0 0
        %4388 = vmatpush1.bf16.msra.mxu0 0
        %4389 = vmatprep.subr.bf16.mxu0 0
        %4390 = vmatpush1.bf16.msra.mxu0 0
        %4391 = vmatprep.subr.bf16.mxu0 0
        %4392 = vmatpush1.bf16.msra.mxu0 0
        %4393 = vmatprep.subr.bf16.mxu0 0
        %4394 = vmatpush1.bf16.msra.mxu0 0
        %4395 = vmatprep.subr.bf16.mxu0 0
        %4396 = vmatpush1.bf16.msra.mxu0 0
        %4397 = vmatprep.subr.bf16.mxu0 0
        %4398 = vmatpush1.bf16.msra.mxu0 0
        %4399 = vmatprep.subr.bf16.mxu0 0
        %4400 = vmatpush1.bf16.msra.mxu0 0
        %4401 = vmatprep.subr.bf16.mxu0 0
        %4402 = vmatpush1.bf16.msra.mxu0 0
        %4403 = vmatprep.subr.bf16.mxu0 0
        %4404 = vmatpush1.bf16.msra.mxu0 0
        %4405 = vmatprep.mubr.bf16.mxu0 0
        %4406 = vmatmul.mubr.bf16.gmra.mrb[0].mxu0 %v4323
        %v4407 = vpop.f32.mrb[0].mxu0
        %v4408 = vadd.f32 0.0, %v4407
        %v4409 = vpop.f32.mrb[0].mxu0
        %v4410 = vpop.f32.mrb[0].mxu0
        %v4411 = vadd.f32 0.0, %v4410
        %v4412 = vpop.f32.mrb[0].mxu0
        %4413 = vmatprep.mubr.bf16.mxu0 0
        %4414 = vmatmul.mubr.bf16.gmra.mrb[0].mxu0 %v4326
        %v4415 = vpop.f32.mrb[0].mxu0
        %v4416 = vadd.f32 0.0, %v4415
        %v4417 = vpop.f32.mrb[0].mxu0
        %v4418 = vpop.f32.mrb[0].mxu0
        %v4419 = vadd.f32 0.0, %v4418
        %v4420 = vpop.f32.mrb[0].mxu0
        %4421 = vmatprep.mubr.bf16.mxu0 0
        %4422 = vmatmul.mubr.bf16.gmra.mrb[0].mxu0 %v4329
        %v4423 = vpop.f32.mrb[0].mxu0
        %v4424 = vadd.f32 0.0, %v4423
        %v4425 = vpop.f32.mrb[0].mxu0
        %v4426 = vpop.f32.mrb[0].mxu0
        %v4427 = vadd.f32 0.0, %v4426
        %v4428 = vpop.f32.mrb[0].mxu0
        %4429 = vmatprep.mubr.bf16.mxu0 0
        %4430 = vmatmul.mubr.bf16.gmra.mrb[0].mxu0 %v4332
        %v4431 = vpop.f32.mrb[0].mxu0
        %v4432 = vadd.f32 0.0, %v4431
        %v4433 = vpop.f32.mrb[0].mxu0
        %v4434 = vpop.f32.mrb[0].mxu0
        %v4435 = vadd.f32 0.0, %v4434
        %v4436 = vpop.f32.mrb[0].mxu0
        %4437 = vmatprep.mubr.bf16.mxu0 0
        %4438 = vmatmul.mubr.bf16.gmra.mrb[0].mxu0 %v4335
        %v4439 = vpop.f32.mrb[0].mxu0
        %v4440 = vadd.f32 0.0, %v4439
        %v4441 = vpop.f32.mrb[0].mxu0
        %v4442 = vpop.f32.mrb[0].mxu0
        %v4443 = vadd.f32 0.0, %v4442
        %v4444 = vpop.f32.mrb[0].mxu0
        %4445 = vmatprep.mubr.bf16.mxu0 0
        %4446 = vmatmul.mubr.bf16.gmra.mrb[0].mxu0 %v4338
        %v4447 = vpop.f32.mrb[0].mxu0
        %v4448 = vadd.f32 0.0, %v4447
        %v4449 = vpop.f32.mrb[0].mxu0
        %v4450 = vpop.f32.mrb[0].mxu0
        %v4451 = vadd.f32 0.0, %v4450
        %v4452 = vpop.f32.mrb[0].mxu0
        %4453 = vmatprep.mubr.bf16.mxu0 0
        %4454 = vmatmul.mubr.bf16.gmra.mrb[0].mxu0 %v4341
        %v4455 = vpop.f32.mrb[0].mxu0
        %v4456 = vadd.f32 0.0, %v4455
        %v4457 = vpop.f32.mrb[0].mxu0
        %v4458 = vpop.f32.mrb[0].mxu0
        %v4459 = vadd.f32 0.0, %v4458
        %v4460 = vpop.f32.mrb[0].mxu0
        %4461 = vmatprep.mubr.bf16.mxu0 0
        %4462 = vmatmul.mubr.bf16.gmra.mrb[0].mxu0 %v4344
        %v4463 = vpop.f32.mrb[0].mxu0
        %v4464 = vadd.f32 0.0, %v4463
        %v4465 = vpop.f32.mrb[0].mxu0
        %v4466 = vpop.f32.mrb[0].mxu0
        %v4467 = vadd.f32 0.0, %v4466
        %v4468 = vpop.f32.mrb[0].mxu0
        %4469 = vmatprep.mubr.bf16.mxu0 0
        %4470 = vmatmul.mubr.bf16.gmra.mrb[0].mxu0 %v4347
        %v4471 = vpop.f32.mrb[0].mxu0
        %v4472 = vadd.f32 0.0, %v4471
        %v4473 = vpop.f32.mrb[0].mxu0
        %v4474 = vpop.f32.mrb[0].mxu0
        %v4475 = vadd.f32 0.0, %v4474
        %v4476 = vpop.f32.mrb[0].mxu0
        %4477 = vmatprep.mubr.bf16.mxu0 0
        %4478 = vmatmul.mubr.bf16.gmra.mrb[0].mxu0 %v4350
        %v4479 = vpop.f32.mrb[0].mxu0
        %v4480 = vadd.f32 0.0, %v4479
        %v4481 = vpop.f32.mrb[0].mxu0
        %v4482 = vpop.f32.mrb[0].mxu0
        %v4483 = vadd.f32 0.0, %v4482
        %v4484 = vpop.f32.mrb[0].mxu0
        %4485 = vmatprep.mubr.bf16.mxu0 0
        %4486 = vmatmul.mubr.bf16.gmra.mrb[0].mxu0 %v4353
        %v4487 = vpop.f32.mrb[0].mxu0
        %v4488 = vadd.f32 0.0, %v4487
        %v4489 = vpop.f32.mrb[0].mxu0
        %v4490 = vpop.f32.mrb[0].mxu0
        %v4491 = vadd.f32 0.0, %v4490
        %v4492 = vpop.f32.mrb[0].mxu0
        %4493 = vmatprep.mubr.bf16.mxu0 0
        %4494 = vmatmul.mubr.bf16.gmra.mrb[0].mxu0 %v4356
        %v4495 = vpop.f32.mrb[0].mxu0
        %v4496 = vadd.f32 0.0, %v4495
        %v4497 = vpop.f32.mrb[0].mxu0
        %v4498 = vpop.f32.mrb[0].mxu0
        %v4499 = vadd.f32 0.0, %v4498
        %v4500 = vpop.f32.mrb[0].mxu0
        %4501 = vmatprep.mubr.bf16.mxu0 0
        %4502 = vmatmul.mubr.bf16.gmra.mrb[0].mxu0 %v4359
        %v4503 = vpop.f32.mrb[0].mxu0
        %v4504 = vadd.f32 0.0, %v4503
        %v4505 = vpop.f32.mrb[0].mxu0
        %v4506 = vpop.f32.mrb[0].mxu0
        %v4507 = vadd.f32 0.0, %v4506
        %v4508 = vpop.f32.mrb[0].mxu0
        %4509 = vmatprep.mubr.bf16.mxu0 0
        %4510 = vmatmul.mubr.bf16.gmra.mrb[0].mxu0 %v4362
        %v4511 = vpop.f32.mrb[0].mxu0
        %v4512 = vadd.f32 0.0, %v4511
        %v4513 = vpop.f32.mrb[0].mxu0
        %v4514 = vpop.f32.mrb[0].mxu0
        %v4515 = vadd.f32 0.0, %v4514
        %v4516 = vpop.f32.mrb[0].mxu0
        %4517 = vmatprep.mubr.bf16.mxu0 0
        %4518 = vmatmul.mubr.bf16.gmra.mrb[0].mxu0 %v4365
        %v4519 = vpop.f32.mrb[0].mxu0
        %v4520 = vadd.f32 0.0, %v4519
        %v4521 = vpop.f32.mrb[0].mxu0
        %v4522 = vpop.f32.mrb[0].mxu0
        %v4523 = vadd.f32 0.0, %v4522
        %v4524 = vpop.f32.mrb[0].mxu0
        %4525 = vmatprep.mubr.bf16.mxu0 0
        %4526 = vmatmul.mubr.bf16.gmra.mrb[0].mxu0 %v4368
        %v4527 = vpop.f32.mrb[0].mxu0
        %v4528 = vadd.f32 0.0, %v4527
        %v4529 = vpop.f32.mrb[0].mxu0
        %v4530 = vpop.f32.mrb[0].mxu0
        %v4531 = vadd.f32 0.0, %v4530
        %v4532 = vpop.f32.mrb[0].mxu0
        %4533 = vdwg.mxu0
        %v4534 = vadd.f32 %v3808, %v4408
        %v4535 = vadd.f32 %v3809, %v4411
        %v4536 = vadd.f32 %v3810, %v4416
        %v4537 = vadd.f32 %v3811, %v4419
        %v4538 = vadd.f32 %v3812, %v4424
        %v4539 = vadd.f32 %v3813, %v4427
        %v4540 = vadd.f32 %v3814, %v4432
        %v4541 = vadd.f32 %v3815, %v4435
        %v4542 = vadd.f32 %v3816, %v4440
        %v4543 = vadd.f32 %v3817, %v4443
        %v4544 = vadd.f32 %v3818, %v4448
        %v4545 = vadd.f32 %v3819, %v4451
        %v4546 = vadd.f32 %v3820, %v4456
        %v4547 = vadd.f32 %v3821, %v4459
        %v4548 = vadd.f32 %v3822, %v4464
        %v4549 = vadd.f32 %v3823, %v4467
        %v4550 = vadd.f32 %v3824, %v4472
        %v4551 = vadd.f32 %v3825, %v4475
        %v4552 = vadd.f32 %v3826, %v4480
        %v4553 = vadd.f32 %v3827, %v4483
        %v4554 = vadd.f32 %v3828, %v4488
        %v4555 = vadd.f32 %v3829, %v4491
        %v4556 = vadd.f32 %v3830, %v4496
        %v4557 = vadd.f32 %v3831, %v4499
        %v4558 = vadd.f32 %v3832, %v4504
        %v4559 = vadd.f32 %v3833, %v4507
        %v4560 = vadd.f32 %v3834, %v4512
        %v4561 = vadd.f32 %v3835, %v4515
        %v4562 = vadd.f32 %v3836, %v4520
        %v4563 = vadd.f32 %v3837, %v4523
        %v4564 = vadd.f32 %v3838, %v4528
        %v4565 = vadd.f32 %v3839, %v4531
        %v4566 = vld [vmem:[%s3481] sm:$0xe]
        %v4567 = vld [vmem:[%s3481 + $0xc] sm:$0xe]
        %v4568 = vld [vmem:[%s3481 + $0x18] sm:$0xe]
        %v4569 = vld [vmem:[%s3481 + $0x24] sm:$0xe]
        %v4570 = vld [vmem:[%s3481 + $0x30] sm:$0xe]
        %v4571 = vld [vmem:[%s3481 + $0x3c] sm:$0xe]
        %v4572 = vld [vmem:[%s3481 + $0x48] sm:$0xe]
        %v4573 = vld [vmem:[%s3481 + $0x54] sm:$0xe]
        %v4574 = vld [vmem:[%s3481 + $0x60] sm:$0xe]
        %v4575 = vld [vmem:[%s3481 + $0x6c] sm:$0xe]
        %v4576 = vld [vmem:[%s3481 + $0x78] sm:$0xe]
        %v4577 = vld [vmem:[%s3481 + $0x84] sm:$0xe]
        %v4578 = vld [vmem:[%s3481 + $0x90] sm:$0xe]
        %v4579 = vld [vmem:[%s3481 + $0x9c] sm:$0xe]
        %v4580 = vld [vmem:[%s3481 + $0xa8] sm:$0xe]
        %v4581 = vld [vmem:[%s3481 + $0xb4] sm:$0xe]
        %v4630 = vrot.slane %v4566, 5
        %v4631 = vrot.slane %v4630, 4
        %v4632 = vrot.slane %v3841, 5
        %v4633 = vsel %vm1519, %v4631, %v4632
        %v4634 = vrot.slane %v4632, 4
        %v4635 = vrot.slane %v3842, 5
        %v4636 = vsel %vm1519, %v4634, %v4635
        %v4637 = vrot.slane %v4567, 5
        %v4638 = vrot.slane %v4637, 4
        %v4639 = vrot.slane %v3844, 5
        %v4640 = vsel %vm1519, %v4638, %v4639
        %v4641 = vrot.slane %v4639, 4
        %v4642 = vrot.slane %v3845, 5
        %v4643 = vsel %vm1519, %v4641, %v4642
        %v4644 = vrot.slane %v4568, 5
        %v4645 = vrot.slane %v4644, 4
        %v4646 = vrot.slane %v3847, 5
        %v4647 = vsel %vm1519, %v4645, %v4646
        %v4648 = vrot.slane %v4646, 4
        %v4649 = vrot.slane %v3848, 5
        %v4650 = vsel %vm1519, %v4648, %v4649
        %v4651 = vrot.slane %v4569, 5
        %v4652 = vrot.slane %v4651, 4
        %v4653 = vrot.slane %v3850, 5
        %v4654 = vsel %vm1519, %v4652, %v4653
        %v4655 = vrot.slane %v4653, 4
        %v4656 = vrot.slane %v3851, 5
        %v4657 = vsel %vm1519, %v4655, %v4656
        %v4658 = vrot.slane %v4570, 5
        %v4659 = vrot.slane %v4658, 4
        %v4660 = vrot.slane %v3853, 5
        %v4661 = vsel %vm1519, %v4659, %v4660
        %v4662 = vrot.slane %v4660, 4
        %v4663 = vrot.slane %v3854, 5
        %v4664 = vsel %vm1519, %v4662, %v4663
        %v4665 = vrot.slane %v4571, 5
        %v4666 = vrot.slane %v4665, 4
        %v4667 = vrot.slane %v3856, 5
        %v4668 = vsel %vm1519, %v4666, %v4667
        %v4669 = vrot.slane %v4667, 4
        %v4670 = vrot.slane %v3857, 5
        %v4671 = vsel %vm1519, %v4669, %v4670
        %v4672 = vrot.slane %v4572, 5
        %v4673 = vrot.slane %v4672, 4
        %v4674 = vrot.slane %v3859, 5
        %v4675 = vsel %vm1519, %v4673, %v4674
        %v4676 = vrot.slane %v4674, 4
        %v4677 = vrot.slane %v3860, 5
        %v4678 = vsel %vm1519, %v4676, %v4677
        %v4679 = vrot.slane %v4573, 5
        %v4680 = vrot.slane %v4679, 4
        %v4681 = vrot.slane %v3862, 5
        %v4682 = vsel %vm1519, %v4680, %v4681
        %v4683 = vrot.slane %v4681, 4
        %v4684 = vrot.slane %v3863, 5
        %v4685 = vsel %vm1519, %v4683, %v4684
        %v4686 = vrot.slane %v4574, 5
        %v4687 = vrot.slane %v4686, 4
        %v4688 = vrot.slane %v3865, 5
        %v4689 = vsel %vm1519, %v4687, %v4688
        %v4690 = vrot.slane %v4688, 4
        %v4691 = vrot.slane %v3866, 5
        %v4692 = vsel %vm1519, %v4690, %v4691
        %v4693 = vrot.slane %v4575, 5
        %v4694 = vrot.slane %v4693, 4
        %v4695 = vrot.slane %v3868, 5
        %v4696 = vsel %vm1519, %v4694, %v4695
        %v4697 = vrot.slane %v4695, 4
        %v4698 = vrot.slane %v3869, 5
        %v4699 = vsel %vm1519, %v4697, %v4698
        %v4700 = vrot.slane %v4576, 5
        %v4701 = vrot.slane %v4700, 4
        %v4702 = vrot.slane %v3871, 5
        %v4703 = vsel %vm1519, %v4701, %v4702
        %v4704 = vrot.slane %v4702, 4
        %v4705 = vrot.slane %v3872, 5
        %v4706 = vsel %vm1519, %v4704, %v4705
        %v4707 = vrot.slane %v4577, 5
        %v4708 = vrot.slane %v4707, 4
        %v4709 = vrot.slane %v3874, 5
        %v4710 = vsel %vm1519, %v4708, %v4709
        %v4711 = vrot.slane %v4709, 4
        %v4712 = vrot.slane %v3875, 5
        %v4713 = vsel %vm1519, %v4711, %v4712
        %v4714 = vrot.slane %v4578, 5
        %v4715 = vrot.slane %v4714, 4
        %v4716 = vrot.slane %v3877, 5
        %v4717 = vsel %vm1519, %v4715, %v4716
        %v4718 = vrot.slane %v4716, 4
        %v4719 = vrot.slane %v3878, 5
        %v4720 = vsel %vm1519, %v4718, %v4719
        %v4721 = vrot.slane %v4579, 5
        %v4722 = vrot.slane %v4721, 4
        %v4723 = vrot.slane %v3880, 5
        %v4724 = vsel %vm1519, %v4722, %v4723
        %v4725 = vrot.slane %v4723, 4
        %v4726 = vrot.slane %v3881, 5
        %v4727 = vsel %vm1519, %v4725, %v4726
        %v4728 = vrot.slane %v4580, 5
        %v4729 = vrot.slane %v4728, 4
        %v4730 = vrot.slane %v3883, 5
        %v4731 = vsel %vm1519, %v4729, %v4730
        %v4732 = vrot.slane %v4730, 4
        %v4733 = vrot.slane %v3884, 5
        %v4734 = vsel %vm1519, %v4732, %v4733
        %v4735 = vrot.slane %v4581, 5
        %v4736 = vrot.slane %v4735, 4
        %v4737 = vrot.slane %v3886, 5
        %v4738 = vsel %vm1519, %v4736, %v4737
        %v4739 = vrot.slane %v4737, 4
        %v4740 = vrot.slane %v3887, 5
        %v4741 = vsel %vm1519, %v4739, %v4740
        %s4742 = scalar_lea.vmem %s277, 32
        %v4743 = vld [vmem:[%s4742] sm:$0xf]
        %v4744 = vunpack.c.l.b16 %v4633
        %v4745 = vunpack.c.l.b16 %v4636
        %v4746 = vunpack.c.l.b16 %v4640
        %v4747 = vunpack.c.l.b16 %v4643
        %v4748 = vunpack.c.l.b16 %v4647
        %v4749 = vunpack.c.l.b16 %v4650
        %v4750 = vunpack.c.l.b16 %v4654
        %v4751 = vunpack.c.l.b16 %v4657
        %v4752 = vunpack.c.l.b16 %v4661
        %v4753 = vunpack.c.l.b16 %v4664
        %v4754 = vunpack.c.l.b16 %v4668
        %v4755 = vunpack.c.l.b16 %v4671
        %v4756 = vunpack.c.l.b16 %v4675
        %v4757 = vunpack.c.l.b16 %v4678
        %v4758 = vunpack.c.l.b16 %v4682
        %v4759 = vunpack.c.l.b16 %v4685
        %v4760 = vunpack.c.l.b16 %v4689
        %v4761 = vunpack.c.l.b16 %v4692
        %v4762 = vunpack.c.l.b16 %v4696
        %v4763 = vunpack.c.l.b16 %v4699
        %v4764 = vunpack.c.l.b16 %v4703
        %v4765 = vunpack.c.l.b16 %v4706
        %v4766 = vunpack.c.l.b16 %v4710
        %v4767 = vunpack.c.l.b16 %v4713
        %v4768 = vunpack.c.l.b16 %v4717
        %v4769 = vunpack.c.l.b16 %v4720
        %v4770 = vunpack.c.l.b16 %v4724
        %v4771 = vunpack.c.l.b16 %v4727
        %v4772 = vunpack.c.l.b16 %v4731
        %v4773 = vunpack.c.l.b16 %v4734
        %v4774 = vunpack.c.l.b16 %v4738
        %v4775 = vunpack.c.l.b16 %v4741
        %v4776 = vpack.c.b16 %v4745, %v4744
        %v4777 = vpack.c.b16 %v4747, %v4746
        %v4778 = vpack.c.b16 %v4749, %v4748
        %v4779 = vpack.c.b16 %v4751, %v4750
        %v4780 = vpack.c.b16 %v4753, %v4752
        %v4781 = vpack.c.b16 %v4755, %v4754
        %v4782 = vpack.c.b16 %v4757, %v4756
        %v4783 = vpack.c.b16 %v4759, %v4758
        %v4784 = vpack.c.b16 %v4761, %v4760
        %v4785 = vpack.c.b16 %v4763, %v4762
        %v4786 = vpack.c.b16 %v4765, %v4764
        %v4787 = vpack.c.b16 %v4767, %v4766
        %v4788 = vpack.c.b16 %v4769, %v4768
        %v4789 = vpack.c.b16 %v4771, %v4770
        %v4790 = vpack.c.b16 %v4773, %v4772
        %v4791 = vpack.c.b16 %v4775, %v4774
        %v4793 = vsel %vm478, %v4776, 0
        %v4796 = vsel %vm478, %v4777, 0
        %v4799 = vsel %vm478, %v4778, 0
        %v4802 = vsel %vm478, %v4779, 0
        %v4805 = vsel %vm478, %v4780, 0
        %v4808 = vsel %vm478, %v4781, 0
        %v4811 = vsel %vm478, %v4782, 0
        %v4814 = vsel %vm478, %v4783, 0
        %v4817 = vsel %vm478, %v4784, 0
        %v4820 = vsel %vm478, %v4785, 0
        %v4823 = vsel %vm478, %v4786, 0
        %v4826 = vsel %vm478, %v4787, 0
        %v4829 = vsel %vm478, %v4788, 0
        %v4832 = vsel %vm478, %v4789, 0
        %v4835 = vsel %vm478, %v4790, 0
        %v4838 = vsel %vm478, %v4791, 0
        %v4841 = vsel %vm527, %v4743, 0
        %4843 = vmatprep.subr.bf16.mxu0 0
        %4844 = vmatpush1.bf16.msra.mxu0 %v4841
        %4845 = vmatprep.subr.bf16.mxu0 0
        %4846 = vmatpush1.bf16.msra.mxu0 0
        %4847 = vmatprep.subr.bf16.mxu0 0
        %4848 = vmatpush1.bf16.msra.mxu0 0
        %4849 = vmatprep.subr.bf16.mxu0 0
        %4850 = vmatpush1.bf16.msra.mxu0 0
        %4851 = vmatprep.subr.bf16.mxu0 0
        %4852 = vmatpush1.bf16.msra.mxu0 0
        %4853 = vmatprep.subr.bf16.mxu0 0
        %4854 = vmatpush1.bf16.msra.mxu0 0
        %4855 = vmatprep.subr.bf16.mxu0 0
        %4856 = vmatpush1.bf16.msra.mxu0 0
        %4857 = vmatprep.subr.bf16.mxu0 0
        %4858 = vmatpush1.bf16.msra.mxu0 0
        %4859 = vmatprep.subr.bf16.mxu0 0
        %4860 = vmatpush1.bf16.msra.mxu0 0
        %4861 = vmatprep.subr.bf16.mxu0 0
        %4862 = vmatpush1.bf16.msra.mxu0 0
        %4863 = vmatprep.subr.bf16.mxu0 0
        %4864 = vmatpush1.bf16.msra.mxu0 0
        %4865 = vmatprep.subr.bf16.mxu0 0
        %4866 = vmatpush1.bf16.msra.mxu0 0
        %4867 = vmatprep.subr.bf16.mxu0 0
        %4868 = vmatpush1.bf16.msra.mxu0 0
        %4869 = vmatprep.subr.bf16.mxu0 0
        %4870 = vmatpush1.bf16.msra.mxu0 0
        %4871 = vmatprep.subr.bf16.mxu0 0
        %4872 = vmatpush1.bf16.msra.mxu0 0
        %4873 = vmatprep.subr.bf16.mxu0 0
        %4874 = vmatpush1.bf16.msra.mxu0 0
        %4875 = vmatprep.mubr.bf16.mxu0 0
        %4876 = vmatmul.mubr.bf16.gmra.mrb[0].mxu0 %v4793
        %v4877 = vpop.f32.mrb[0].mxu0
        %v4878 = vadd.f32 0.0, %v4877
        %v4879 = vpop.f32.mrb[0].mxu0
        %v4880 = vpop.f32.mrb[0].mxu0
        %v4881 = vadd.f32 0.0, %v4880
        %v4882 = vpop.f32.mrb[0].mxu0
        %4883 = vmatprep.mubr.bf16.mxu0 0
        %4884 = vmatmul.mubr.bf16.gmra.mrb[0].mxu0 %v4796
        %v4885 = vpop.f32.mrb[0].mxu0
        %v4886 = vadd.f32 0.0, %v4885
        %v4887 = vpop.f32.mrb[0].mxu0
        %v4888 = vpop.f32.mrb[0].mxu0
        %v4889 = vadd.f32 0.0, %v4888
        %v4890 = vpop.f32.mrb[0].mxu0
        %4891 = vmatprep.mubr.bf16.mxu0 0
        %4892 = vmatmul.mubr.bf16.gmra.mrb[0].mxu0 %v4799
        %v4893 = vpop.f32.mrb[0].mxu0
        %v4894 = vadd.f32 0.0, %v4893
        %v4895 = vpop.f32.mrb[0].mxu0
        %v4896 = vpop.f32.mrb[0].mxu0
        %v4897 = vadd.f32 0.0, %v4896
        %v4898 = vpop.f32.mrb[0].mxu0
        %4899 = vmatprep.mubr.bf16.mxu0 0
        %4900 = vmatmul.mubr.bf16.gmra.mrb[0].mxu0 %v4802
        %v4901 = vpop.f32.mrb[0].mxu0
        %v4902 = vadd.f32 0.0, %v4901
        %v4903 = vpop.f32.mrb[0].mxu0
        %v4904 = vpop.f32.mrb[0].mxu0
        %v4905 = vadd.f32 0.0, %v4904
        %v4906 = vpop.f32.mrb[0].mxu0
        %4907 = vmatprep.mubr.bf16.mxu0 0
        %4908 = vmatmul.mubr.bf16.gmra.mrb[0].mxu0 %v4805
        %v4909 = vpop.f32.mrb[0].mxu0
        %v4910 = vadd.f32 0.0, %v4909
        %v4911 = vpop.f32.mrb[0].mxu0
        %v4912 = vpop.f32.mrb[0].mxu0
        %v4913 = vadd.f32 0.0, %v4912
        %v4914 = vpop.f32.mrb[0].mxu0
        %4915 = vmatprep.mubr.bf16.mxu0 0
        %4916 = vmatmul.mubr.bf16.gmra.mrb[0].mxu0 %v4808
        %v4917 = vpop.f32.mrb[0].mxu0
        %v4918 = vadd.f32 0.0, %v4917
        %v4919 = vpop.f32.mrb[0].mxu0
        %v4920 = vpop.f32.mrb[0].mxu0
        %v4921 = vadd.f32 0.0, %v4920
        %v4922 = vpop.f32.mrb[0].mxu0
        %4923 = vmatprep.mubr.bf16.mxu0 0
        %4924 = vmatmul.mubr.bf16.gmra.mrb[0].mxu0 %v4811
        %v4925 = vpop.f32.mrb[0].mxu0
        %v4926 = vadd.f32 0.0, %v4925
        %v4927 = vpop.f32.mrb[0].mxu0
        %v4928 = vpop.f32.mrb[0].mxu0
        %v4929 = vadd.f32 0.0, %v4928
        %v4930 = vpop.f32.mrb[0].mxu0
        %4931 = vmatprep.mubr.bf16.mxu0 0
        %4932 = vmatmul.mubr.bf16.gmra.mrb[0].mxu0 %v4814
        %v4933 = vpop.f32.mrb[0].mxu0
        %v4934 = vadd.f32 0.0, %v4933
        %v4935 = vpop.f32.mrb[0].mxu0
        %v4936 = vpop.f32.mrb[0].mxu0
        %v4937 = vadd.f32 0.0, %v4936
        %v4938 = vpop.f32.mrb[0].mxu0
        %4939 = vmatprep.mubr.bf16.mxu0 0
        %4940 = vmatmul.mubr.bf16.gmra.mrb[0].mxu0 %v4817
        %v4941 = vpop.f32.mrb[0].mxu0
        %v4942 = vadd.f32 0.0, %v4941
        %v4943 = vpop.f32.mrb[0].mxu0
        %v4944 = vpop.f32.mrb[0].mxu0
        %v4945 = vadd.f32 0.0, %v4944
        %v4946 = vpop.f32.mrb[0].mxu0
        %4947 = vmatprep.mubr.bf16.mxu0 0
        %4948 = vmatmul.mubr.bf16.gmra.mrb[0].mxu0 %v4820
        %v4949 = vpop.f32.mrb[0].mxu0
        %v4950 = vadd.f32 0.0, %v4949
        %v4951 = vpop.f32.mrb[0].mxu0
        %v4952 = vpop.f32.mrb[0].mxu0
        %v4953 = vadd.f32 0.0, %v4952
        %v4954 = vpop.f32.mrb[0].mxu0
        %4955 = vmatprep.mubr.bf16.mxu0 0
        %4956 = vmatmul.mubr.bf16.gmra.mrb[0].mxu0 %v4823
        %v4957 = vpop.f32.mrb[0].mxu0
        %v4958 = vadd.f32 0.0, %v4957
        %v4959 = vpop.f32.mrb[0].mxu0
        %v4960 = vpop.f32.mrb[0].mxu0
        %v4961 = vadd.f32 0.0, %v4960
        %v4962 = vpop.f32.mrb[0].mxu0
        %4963 = vmatprep.mubr.bf16.mxu0 0
        %4964 = vmatmul.mubr.bf16.gmra.mrb[0].mxu0 %v4826
        %v4965 = vpop.f32.mrb[0].mxu0
        %v4966 = vadd.f32 0.0, %v4965
        %v4967 = vpop.f32.mrb[0].mxu0
        %v4968 = vpop.f32.mrb[0].mxu0
        %v4969 = vadd.f32 0.0, %v4968
        %v4970 = vpop.f32.mrb[0].mxu0
        %4971 = vmatprep.mubr.bf16.mxu0 0
        %4972 = vmatmul.mubr.bf16.gmra.mrb[0].mxu0 %v4829
        %v4973 = vpop.f32.mrb[0].mxu0
        %v4974 = vadd.f32 0.0, %v4973
        %v4975 = vpop.f32.mrb[0].mxu0
        %v4976 = vpop.f32.mrb[0].mxu0
        %v4977 = vadd.f32 0.0, %v4976
        %v4978 = vpop.f32.mrb[0].mxu0
        %4979 = vmatprep.mubr.bf16.mxu0 0
        %4980 = vmatmul.mubr.bf16.gmra.mrb[0].mxu0 %v4832
        %v4981 = vpop.f32.mrb[0].mxu0
        %v4982 = vadd.f32 0.0, %v4981
        %v4983 = vpop.f32.mrb[0].mxu0
        %v4984 = vpop.f32.mrb[0].mxu0
        %v4985 = vadd.f32 0.0, %v4984
        %v4986 = vpop.f32.mrb[0].mxu0
        %4987 = vmatprep.mubr.bf16.mxu0 0
        %4988 = vmatmul.mubr.bf16.gmra.mrb[0].mxu0 %v4835
        %v4989 = vpop.f32.mrb[0].mxu0
        %v4990 = vadd.f32 0.0, %v4989
        %v4991 = vpop.f32.mrb[0].mxu0
        %v4992 = vpop.f32.mrb[0].mxu0
        %v4993 = vadd.f32 0.0, %v4992
        %v4994 = vpop.f32.mrb[0].mxu0
        %4995 = vmatprep.mubr.bf16.mxu0 0
        %4996 = vmatmul.mubr.bf16.gmra.mrb[0].mxu0 %v4838
        %v4997 = vpop.f32.mrb[0].mxu0
        %v4998 = vadd.f32 0.0, %v4997
        %v4999 = vpop.f32.mrb[0].mxu0
        %v5000 = vpop.f32.mrb[0].mxu0
        %v5001 = vadd.f32 0.0, %v5000
        %v5002 = vpop.f32.mrb[0].mxu0
        %5003 = vdwg.mxu0
        %v5004 = vadd.f32 %v4534, %v4878
        %v5005 = vadd.f32 %v4535, %v4881
        %v5006 = vadd.f32 %v4536, %v4886
        %v5007 = vadd.f32 %v4537, %v4889
        %v5008 = vadd.f32 %v4538, %v4894
        %v5009 = vadd.f32 %v4539, %v4897
        %v5010 = vadd.f32 %v4540, %v4902
        %v5011 = vadd.f32 %v4541, %v4905
        %v5012 = vadd.f32 %v4542, %v4910
        %v5013 = vadd.f32 %v4543, %v4913
        %v5014 = vadd.f32 %v4544, %v4918
        %v5015 = vadd.f32 %v4545, %v4921
        %v5016 = vadd.f32 %v4546, %v4926
        %v5017 = vadd.f32 %v4547, %v4929
        %v5018 = vadd.f32 %v4548, %v4934
        %v5019 = vadd.f32 %v4549, %v4937
        %v5020 = vadd.f32 %v4550, %v4942
        %v5021 = vadd.f32 %v4551, %v4945
        %v5022 = vadd.f32 %v4552, %v4950
        %v5023 = vadd.f32 %v4553, %v4953
        %v5024 = vadd.f32 %v4554, %v4958
        %v5025 = vadd.f32 %v4555, %v4961
        %v5026 = vadd.f32 %v4556, %v4966
        %v5027 = vadd.f32 %v4557, %v4969
        %v5028 = vadd.f32 %v4558, %v4974
        %v5029 = vadd.f32 %v4559, %v4977
        %v5030 = vadd.f32 %v4560, %v4982
        %v5031 = vadd.f32 %v4561, %v4985
        %v5032 = vadd.f32 %v4562, %v4990
        %v5033 = vadd.f32 %v4563, %v4993
        %v5034 = vadd.f32 %v4564, %v4998
        %v5035 = vadd.f32 %v4565, %v5001
        %5036 = vst.msk [vmem:[#allocation2] sm:$0xff] %vm478, %v5004
        %5037 = vst.msk [vmem:[#allocation2 + $0x8] sm:$0xff] %vm478, %v5005
        %5038 = vst.msk [vmem:[#allocation2 + $0x10] sm:$0xff] %vm478, %v5006
        %5039 = vst.msk [vmem:[#allocation2 + $0x18] sm:$0xff] %vm478, %v5007
        %5040 = vst.msk [vmem:[#allocation2 + $0x20] sm:$0xff] %vm478, %v5008
        %5041 = vst.msk [vmem:[#allocation2 + $0x28] sm:$0xff] %vm478, %v5009
        %5042 = vst.msk [vmem:[#allocation2 + $0x30] sm:$0xff] %vm478, %v5010
        %5043 = vst.msk [vmem:[#allocation2 + $0x38] sm:$0xff] %vm478, %v5011
        %5044 = vst.msk [vmem:[#allocation2 + $0x40] sm:$0xff] %vm478, %v5012
        %5045 = vst.msk [vmem:[#allocation2 + $0x48] sm:$0xff] %vm478, %v5013
        %5046 = vst.msk [vmem:[#allocation2 + $0x50] sm:$0xff] %vm478, %v5014
        %5047 = vst.msk [vmem:[#allocation2 + $0x58] sm:$0xff] %vm478, %v5015
        %5048 = vst.msk [vmem:[#allocation2 + $0x60] sm:$0xff] %vm478, %v5016
        %5049 = vst.msk [vmem:[#allocation2 + $0x68] sm:$0xff] %vm478, %v5017
        %5050 = vst.msk [vmem:[#allocation2 + $0x70] sm:$0xff] %vm478, %v5018
        %5051 = vst.msk [vmem:[#allocation2 + $0x78] sm:$0xff] %vm478, %v5019
        %5052 = vst.msk [vmem:[#allocation2 + $0x80] sm:$0xff] %vm478, %v5020
        %5053 = vst.msk [vmem:[#allocation2 + $0x88] sm:$0xff] %vm478, %v5021
        %5054 = vst.msk [vmem:[#allocation2 + $0x90] sm:$0xff] %vm478, %v5022
        %5055 = vst.msk [vmem:[#allocation2 + $0x98] sm:$0xff] %vm478, %v5023
        %5056 = vst.msk [vmem:[#allocation2 + $0xa0] sm:$0xff] %vm478, %v5024
        %5057 = vst.msk [vmem:[#allocation2 + $0xa8] sm:$0xff] %vm478, %v5025
        %5058 = vst.msk [vmem:[#allocation2 + $0xb0] sm:$0xff] %vm478, %v5026
        %5059 = vst.msk [vmem:[#allocation2 + $0xb8] sm:$0xff] %vm478, %v5027
        %5060 = vst.msk [vmem:[#allocation2 + $0xc0] sm:$0xff] %vm478, %v5028
        %5061 = vst.msk [vmem:[#allocation2 + $0xc8] sm:$0xff] %vm478, %v5029
        %5062 = vst.msk [vmem:[#allocation2 + $0xd0] sm:$0xff] %vm478, %v5030
        %5063 = vst.msk [vmem:[#allocation2 + $0xd8] sm:$0xff] %vm478, %v5031
        %5064 = vst.msk [vmem:[#allocation2 + $0xe0] sm:$0xff] %vm478, %v5032
        %5065 = vst.msk [vmem:[#allocation2 + $0xe8] sm:$0xff] %vm478, %v5033
        %5066 = vst.msk [vmem:[#allocation2 + $0xf0] sm:$0xff] %vm478, %v5034
        %5067 = vst.msk [vmem:[#allocation2 + $0xf8] sm:$0xff] %vm478, %v5035
        %p5068 = scmp.eq.s32.totalorder %s29, 2
        // Predicated region
        $region37: #{tpu_custom_call.1} parent=27 // pred_check
          %p5069 = pneg %p5068
        $region38: #{tpu_custom_call.1} parent=27 // pred_check_branch
          %5071 = sbr.rel (%p5069) target = $region40
        $region39: #{tpu_custom_call.1} parent=27 // pred_region
          %v5072 = vld [vmem:[#allocation2] sm:$0xff]
          %v5073 = vld [vmem:[#allocation2 + $0x8] sm:$0xff]
          %v5074 = vld [vmem:[#allocation2 + $0x10] sm:$0xff]
          %v5075 = vld [vmem:[#allocation2 + $0x18] sm:$0xff]
          %v5076 = vld [vmem:[#allocation2 + $0x20] sm:$0xff]
          %v5077 = vld [vmem:[#allocation2 + $0x28] sm:$0xff]
          %v5078 = vld [vmem:[#allocation2 + $0x30] sm:$0xff]
          %v5079 = vld [vmem:[#allocation2 + $0x38] sm:$0xff]
          %v5080 = vld [vmem:[#allocation2 + $0x40] sm:$0xff]
          %v5081 = vld [vmem:[#allocation2 + $0x48] sm:$0xff]
          %v5082 = vld [vmem:[#allocation2 + $0x50] sm:$0xff]
          %v5083 = vld [vmem:[#allocation2 + $0x58] sm:$0xff]
          %v5084 = vld [vmem:[#allocation2 + $0x60] sm:$0xff]
          %v5085 = vld [vmem:[#allocation2 + $0x68] sm:$0xff]
          %v5086 = vld [vmem:[#allocation2 + $0x70] sm:$0xff]
          %v5087 = vld [vmem:[#allocation2 + $0x78] sm:$0xff]
          %v5088 = vld [vmem:[#allocation2 + $0x80] sm:$0xff]
          %v5089 = vld [vmem:[#allocation2 + $0x88] sm:$0xff]
          %v5090 = vld [vmem:[#allocation2 + $0x90] sm:$0xff]
          %v5091 = vld [vmem:[#allocation2 + $0x98] sm:$0xff]
          %v5092 = vld [vmem:[#allocation2 + $0xa0] sm:$0xff]
          %v5093 = vld [vmem:[#allocation2 + $0xa8] sm:$0xff]
          %v5094 = vld [vmem:[#allocation2 + $0xb0] sm:$0xff]
          %v5095 = vld [vmem:[#allocation2 + $0xb8] sm:$0xff]
          %v5096 = vld [vmem:[#allocation2 + $0xc0] sm:$0xff]
          %v5097 = vld [vmem:[#allocation2 + $0xc8] sm:$0xff]
          %v5098 = vld [vmem:[#allocation2 + $0xd0] sm:$0xff]
          %v5099 = vld [vmem:[#allocation2 + $0xd8] sm:$0xff]
          %v5100 = vld [vmem:[#allocation2 + $0xe0] sm:$0xff]
          %v5101 = vld [vmem:[#allocation2 + $0xe8] sm:$0xff]
          %v5102 = vld [vmem:[#allocation2 + $0xf0] sm:$0xff]
          %v5103 = vld [vmem:[#allocation2 + $0xf8] sm:$0xff]
          %5104 = vst.msk [vmem:[%s286] sm:$0xff] %vm478, %v5072
          %5105 = vst.msk [vmem:[%s286 + $0x8] sm:$0xff] %vm478, %v5073
          %5106 = vst.msk [vmem:[%s286 + $0x10] sm:$0xff] %vm478, %v5074
          %5107 = vst.msk [vmem:[%s286 + $0x18] sm:$0xff] %vm478, %v5075
          %5108 = vst.msk [vmem:[%s286 + $0x20] sm:$0xff] %vm478, %v5076
          %5109 = vst.msk [vmem:[%s286 + $0x28] sm:$0xff] %vm478, %v5077
          %5110 = vst.msk [vmem:[%s286 + $0x30] sm:$0xff] %vm478, %v5078
          %5111 = vst.msk [vmem:[%s286 + $0x38] sm:$0xff] %vm478, %v5079
          %5112 = vst.msk [vmem:[%s286 + $0x40] sm:$0xff] %vm478, %v5080
          %5113 = vst.msk [vmem:[%s286 + $0x48] sm:$0xff] %vm478, %v5081
          %5114 = vst.msk [vmem:[%s286 + $0x50] sm:$0xff] %vm478, %v5082
          %5115 = vst.msk [vmem:[%s286 + $0x58] sm:$0xff] %vm478, %v5083
          %5116 = vst.msk [vmem:[%s286 + $0x60] sm:$0xff] %vm478, %v5084
          %5117 = vst.msk [vmem:[%s286 + $0x68] sm:$0xff] %vm478, %v5085
          %5118 = vst.msk [vmem:[%s286 + $0x70] sm:$0xff] %vm478, %v5086
          %5119 = vst.msk [vmem:[%s286 + $0x78] sm:$0xff] %vm478, %v5087
          %5120 = vst.msk [vmem:[%s286 + $0x80] sm:$0xff] %vm478, %v5088
          %5121 = vst.msk [vmem:[%s286 + $0x88] sm:$0xff] %vm478, %v5089
          %5122 = vst.msk [vmem:[%s286 + $0x90] sm:$0xff] %vm478, %v5090
          %5123 = vst.msk [vmem:[%s286 + $0x98] sm:$0xff] %vm478, %v5091
          %5124 = vst.msk [vmem:[%s286 + $0xa0] sm:$0xff] %vm478, %v5092
          %5125 = vst.msk [vmem:[%s286 + $0xa8] sm:$0xff] %vm478, %v5093
          %5126 = vst.msk [vmem:[%s286 + $0xb0] sm:$0xff] %vm478, %v5094
          %5127 = vst.msk [vmem:[%s286 + $0xb8] sm:$0xff] %vm478, %v5095
          %5128 = vst.msk [vmem:[%s286 + $0xc0] sm:$0xff] %vm478, %v5096
          %5129 = vst.msk [vmem:[%s286 + $0xc8] sm:$0xff] %vm478, %v5097
          %5130 = vst.msk [vmem:[%s286 + $0xd0] sm:$0xff] %vm478, %v5098
          %5131 = vst.msk [vmem:[%s286 + $0xd8] sm:$0xff] %vm478, %v5099
          %5132 = vst.msk [vmem:[%s286 + $0xe0] sm:$0xff] %vm478, %v5100
          %5133 = vst.msk [vmem:[%s286 + $0xe8] sm:$0xff] %vm478, %v5101
          %5134 = vst.msk [vmem:[%s286 + $0xf0] sm:$0xff] %vm478, %v5102
          %5135 = vst.msk [vmem:[%s286 + $0xf8] sm:$0xff] %vm478, %v5103
          %v5136 = vld [vmem:[%s255] sm:$0x1]
          %v5137 = vsel %vm478, %v5072, 0.0
          %v5138 = vsel %vm478, %v5073, 0.0
          %v5139 = vadd.f32 %v5137, %v5138
          %v5140 = vsel %vm478, %v5074, 0.0
          %v5141 = vadd.f32 %v5139, %v5140
          %v5142 = vsel %vm478, %v5075, 0.0
          %v5143 = vadd.f32 %v5141, %v5142
          %v5144 = vsel %vm478, %v5076, 0.0
          %v5145 = vadd.f32 %v5143, %v5144
          %v5146 = vsel %vm478, %v5077, 0.0
          %v5147 = vadd.f32 %v5145, %v5146
          %v5148 = vsel %vm478, %v5078, 0.0
          %v5149 = vadd.f32 %v5147, %v5148
          %v5150 = vsel %vm478, %v5079, 0.0
          %v5151 = vadd.f32 %v5149, %v5150
          %v5152 = vsel %vm478, %v5080, 0.0
          %v5153 = vadd.f32 %v5151, %v5152
          %v5154 = vsel %vm478, %v5081, 0.0
          %v5155 = vadd.f32 %v5153, %v5154
          %v5156 = vsel %vm478, %v5082, 0.0
          %v5157 = vadd.f32 %v5155, %v5156
          %v5158 = vsel %vm478, %v5083, 0.0
          %v5159 = vadd.f32 %v5157, %v5158
          %v5160 = vsel %vm478, %v5084, 0.0
          %v5161 = vadd.f32 %v5159, %v5160
          %v5162 = vsel %vm478, %v5085, 0.0
          %v5163 = vadd.f32 %v5161, %v5162
          %v5164 = vsel %vm478, %v5086, 0.0
          %v5165 = vadd.f32 %v5163, %v5164
          %v5166 = vsel %vm478, %v5087, 0.0
          %v5167 = vadd.f32 %v5165, %v5166
          %v5168 = vsel %vm478, %v5088, 0.0
          %v5169 = vadd.f32 %v5167, %v5168
          %v5170 = vsel %vm478, %v5089, 0.0
          %v5171 = vadd.f32 %v5169, %v5170
          %v5172 = vsel %vm478, %v5090, 0.0
          %v5173 = vadd.f32 %v5171, %v5172
          %v5174 = vsel %vm478, %v5091, 0.0
          %v5175 = vadd.f32 %v5173, %v5174
          %v5176 = vsel %vm478, %v5092, 0.0
          %v5177 = vadd.f32 %v5175, %v5176
          %v5178 = vsel %vm478, %v5093, 0.0
          %v5179 = vadd.f32 %v5177, %v5178
          %v5180 = vsel %vm478, %v5094, 0.0
          %v5181 = vadd.f32 %v5179, %v5180
          %v5182 = vsel %vm478, %v5095, 0.0
          %v5183 = vadd.f32 %v5181, %v5182
          %v5184 = vsel %vm478, %v5096, 0.0
          %v5185 = vadd.f32 %v5183, %v5184
          %v5186 = vsel %vm478, %v5097, 0.0
          %v5187 = vadd.f32 %v5185, %v5186
          %v5188 = vsel %vm478, %v5098, 0.0
          %v5189 = vadd.f32 %v5187, %v5188
          %v5190 = vsel %vm478, %v5099, 0.0
          %v5191 = vadd.f32 %v5189, %v5190
          %v5192 = vsel %vm478, %v5100, 0.0
          %v5193 = vadd.f32 %v5191, %v5192
          %v5194 = vsel %vm478, %v5101, 0.0
          %v5195 = vadd.f32 %v5193, %v5194
          %v5196 = vsel %vm478, %v5102, 0.0
          %v5197 = vadd.f32 %v5195, %v5196
          %v5198 = vsel %vm478, %v5103, 0.0
          %v5199 = vadd.f32 %v5197, %v5198
          %v5200 = vrot.slane %v5199, 4
          %v5201 = vadd.f32 %v5199, %v5200
          %v5202 = vrot.slane %v5201, 2
          %v5203 = vadd.f32 %v5201, %v5202
          %v5204 = vrot.slane %v5203, 1
          %v5205 = vadd.f32 %v5203, %v5204
          %v5206 = vadd.f32 %v5136, %v5205
          %vm5207 = vcmask 57344
          %5208 = vst.msk [vmem:[%s255] sm:$0x1] %vm5207, %v5206
          %v5209 = vld [vmem:[%s261] sm:$0x1]
          %v5210 = vmul.f32 %v5072, %v5072
          %v5211 = vmul.f32 %v5073, %v5073
          %v5212 = vmul.f32 %v5074, %v5074
          %v5213 = vmul.f32 %v5075, %v5075
          %v5214 = vmul.f32 %v5076, %v5076
          %v5215 = vmul.f32 %v5077, %v5077
          %v5216 = vmul.f32 %v5078, %v5078
          %v5217 = vmul.f32 %v5079, %v5079
          %v5218 = vmul.f32 %v5080, %v5080
          %v5219 = vmul.f32 %v5081, %v5081
          %v5220 = vmul.f32 %v5082, %v5082
          %v5221 = vmul.f32 %v5083, %v5083
          %v5222 = vmul.f32 %v5084, %v5084
          %v5223 = vmul.f32 %v5085, %v5085
          %v5224 = vmul.f32 %v5086, %v5086
          %v5225 = vmul.f32 %v5087, %v5087
          %v5226 = vmul.f32 %v5088, %v5088
          %v5227 = vmul.f32 %v5089, %v5089
          %v5228 = vmul.f32 %v5090, %v5090
          %v5229 = vmul.f32 %v5091, %v5091
          %v5230 = vmul.f32 %v5092, %v5092
          %v5231 = vmul.f32 %v5093, %v5093
          %v5232 = vmul.f32 %v5094, %v5094
          %v5233 = vmul.f32 %v5095, %v5095
          %v5234 = vmul.f32 %v5096, %v5096
          %v5235 = vmul.f32 %v5097, %v5097
          %v5236 = vmul.f32 %v5098, %v5098
          %v5237 = vmul.f32 %v5099, %v5099
          %v5238 = vmul.f32 %v5100, %v5100
          %v5239 = vmul.f32 %v5101, %v5101
          %v5240 = vmul.f32 %v5102, %v5102
          %v5241 = vmul.f32 %v5103, %v5103
          %v5242 = vsel %vm478, %v5210, 0.0
          %v5243 = vsel %vm478, %v5211, 0.0
          %v5244 = vadd.f32 %v5242, %v5243
          %v5245 = vsel %vm478, %v5212, 0.0
          %v5246 = vadd.f32 %v5244, %v5245
          %v5247 = vsel %vm478, %v5213, 0.0
          %v5248 = vadd.f32 %v5246, %v5247
          %v5249 = vsel %vm478, %v5214, 0.0
          %v5250 = vadd.f32 %v5248, %v5249
          %v5251 = vsel %vm478, %v5215, 0.0
          %v5252 = vadd.f32 %v5250, %v5251
          %v5253 = vsel %vm478, %v5216, 0.0
          %v5254 = vadd.f32 %v5252, %v5253
          %v5255 = vsel %vm478, %v5217, 0.0
          %v5256 = vadd.f32 %v5254, %v5255
          %v5257 = vsel %vm478, %v5218, 0.0
          %v5258 = vadd.f32 %v5256, %v5257
          %v5259 = vsel %vm478, %v5219, 0.0
          %v5260 = vadd.f32 %v5258, %v5259
          %v5261 = vsel %vm478, %v5220, 0.0
          %v5262 = vadd.f32 %v5260, %v5261
          %v5263 = vsel %vm478, %v5221, 0.0
          %v5264 = vadd.f32 %v5262, %v5263
          %v5265 = vsel %vm478, %v5222, 0.0
          %v5266 = vadd.f32 %v5264, %v5265
          %v5267 = vsel %vm478, %v5223, 0.0
          %v5268 = vadd.f32 %v5266, %v5267
          %v5269 = vsel %vm478, %v5224, 0.0
          %v5270 = vadd.f32 %v5268, %v5269
          %v5271 = vsel %vm478, %v5225, 0.0
          %v5272 = vadd.f32 %v5270, %v5271
          %v5273 = vsel %vm478, %v5226, 0.0
          %v5274 = vadd.f32 %v5272, %v5273
          %v5275 = vsel %vm478, %v5227, 0.0
          %v5276 = vadd.f32 %v5274, %v5275
          %v5277 = vsel %vm478, %v5228, 0.0
          %v5278 = vadd.f32 %v5276, %v5277
          %v5279 = vsel %vm478, %v5229, 0.0
          %v5280 = vadd.f32 %v5278, %v5279
          %v5281 = vsel %vm478, %v5230, 0.0
          %v5282 = vadd.f32 %v5280, %v5281
          %v5283 = vsel %vm478, %v5231, 0.0
          %v5284 = vadd.f32 %v5282, %v5283
          %v5285 = vsel %vm478, %v5232, 0.0
          %v5286 = vadd.f32 %v5284, %v5285
          %v5287 = vsel %vm478, %v5233, 0.0
          %v5288 = vadd.f32 %v5286, %v5287
          %v5289 = vsel %vm478, %v5234, 0.0
          %v5290 = vadd.f32 %v5288, %v5289
          %v5291 = vsel %vm478, %v5235, 0.0
          %v5292 = vadd.f32 %v5290, %v5291
          %v5293 = vsel %vm478, %v5236, 0.0
          %v5294 = vadd.f32 %v5292, %v5293
          %v5295 = vsel %vm478, %v5237, 0.0
          %v5296 = vadd.f32 %v5294, %v5295
          %v5297 = vsel %vm478, %v5238, 0.0
          %v5298 = vadd.f32 %v5296, %v5297
          %v5299 = vsel %vm478, %v5239, 0.0
          %v5300 = vadd.f32 %v5298, %v5299
          %v5301 = vsel %vm478, %v5240, 0.0
          %v5302 = vadd.f32 %v5300, %v5301
          %v5303 = vsel %vm478, %v5241, 0.0
          %v5304 = vadd.f32 %v5302, %v5303
          %v5305 = vrot.slane %v5304, 4
          %v5306 = vadd.f32 %v5304, %v5305
          %v5307 = vrot.slane %v5306, 2
          %v5308 = vadd.f32 %v5306, %v5307
          %v5309 = vrot.slane %v5308, 1
          %v5310 = vadd.f32 %v5308, %v5309
          %v5311 = vadd.f32 %v5209, %v5310
          %5312 = vst.msk [vmem:[%s261] sm:$0x1] %vm5207, %v5311
        $region40: #{tpu_custom_call.1} parent=27 // pred_fallthru
          _
        %p5313 = scmp.lt.s32.totalorder %s27, 1
        %s5314 = scalar_select %p5313, %s27, 1
        %p5315 = scmp.lt.s32.totalorder %s28, 7
        %s5316 = scalar_select %p5315, %s28, 7
        %s5317 = smul.addr %s5316, 32
        %s5318 = smul.addr %s5314, 256
        %s5319 = sadd.s32 %s5317, %s5318
        %s5320 = smul.addr %s5319, 8
        %s5321 = scalar_lea.vmem %s2, %s5320
        %s5322 = sand.u32 %s133, 1
        %s5323 = scalar_lea.sflag [#allocation4], %s5322
        %s5324 = sand.u32 %s133, 1
        %s5325 = scalar_lea.vmem [#allocation3], %s5324
        %s5326 = sand.u32 %s159, 1
        %s5327 = scalar_lea.sflag [#allocation6], %s5326
        %s5328 = sand.u32 %s159, 1
        %s5329 = scalar_lea.vmem [#allocation5], %s5328
        // Predicated region
        $region41: #{tpu_custom_call.1} parent=27 // pred_check
          %p5330 = pneg %p117
        $region42: #{tpu_custom_call.1} parent=27 // pred_check_branch
          %5332 = sbr.rel (%p5330) target = $region44
        $region43: #{tpu_custom_call.1} parent=27 // pred_region
          _
        $region44: #{tpu_custom_call.1} parent=27 // pred_fallthru
          _
        // Predicated region
        $region45: #{tpu_custom_call.1} parent=27 // pred_check
          %p5333 = pneg %p143
        $region46: #{tpu_custom_call.1} parent=27 // pred_check_branch
          %5335 = sbr.rel (%p5333) target = $region48
        $region47: #{tpu_custom_call.1} parent=27 // pred_region
          %s5337 = ssub.s32 16, 16
          %5338 = vsyncadd %s5323, %s5337
          %s5339 = smul.addr %s27, 16
          %s5340 = scalar_lea.hbm %s3, %s5339
          %s5342 = sshll.u32 %s5325, 4
          %s5343 = int_to_ptr.vmem [resolvable:$true] %s5342
          %5345 = dma.vmem_to_hbm [thread:$0]  %s5343, 16, %s5340, %s5323
        $region48: #{tpu_custom_call.1} parent=27 // pred_fallthru
          _
        // Predicated region
        $region49: #{tpu_custom_call.1} parent=27 // pred_check
          %p5346 = pneg %p169
        $region50: #{tpu_custom_call.1} parent=27 // pred_check_branch
          %5348 = sbr.rel (%p5346) target = $region52
        $region51: #{tpu_custom_call.1} parent=27 // pred_region
          %s5350 = ssub.s32 16, 16
          %5351 = vsyncadd %s5327, %s5350
          %s5352 = smul.addr %s27, 16
          %s5353 = scalar_lea.hbm %s4, %s5352
          %s5355 = sshll.u32 %s5329, 4
          %s5356 = int_to_ptr.vmem [resolvable:$true] %s5355
          %5358 = dma.vmem_to_hbm [thread:$0]  %s5356, 16, %s5353, %s5327
        $region52: #{tpu_custom_call.1} parent=27 // pred_fallthru
          _
      $region28: #{tpu_custom_call.1} parent=5 // pred_fallthru
        _
      %p5359 = scmp.le.s32.totalorder 2, %s17
      // Predicated region
      $region53: #{tpu_custom_call.1} parent=5 // pred_check
        %p5360 = pneg %p5359
      $region54: #{tpu_custom_call.1} parent=5 // pred_check_branch
        %5362 = sbr.rel (%p5360) target = $region56
      $region55: #{tpu_custom_call.1} parent=5 // pred_region
        %s5363 = ssub.s32 %s17, 2
        // Predicated region
        $region57: #{tpu_custom_call.1} parent=55 // pred_check
          %p5364 = pneg %p123
        $region58: #{tpu_custom_call.1} parent=55 // pred_check_branch
          %5366 = sbr.rel (%p5364) target = $region60
        $region59: #{tpu_custom_call.1} parent=55 // pred_region
          %p5367 = scmp.lt.s32.totalorder %s30, 1
          %s5368 = scalar_select %p5367, %s30, 1
          %p5369 = scmp.lt.s32.totalorder %s31, 7
          %s5370 = scalar_select %p5369, %s31, 7
          %s5371 = smul.addr %s5370, 32
          %s5372 = smul.addr %s5368, 256
          %s5373 = sadd.s32 %s5371, %s5372
          %s5374 = smul.addr %s5373, 8
          %s5375 = scalar_lea.vmem %s2, %s5374
        $region60: #{tpu_custom_call.1} parent=55 // pred_fallthru
          _
        // Predicated region
        $region61: #{tpu_custom_call.1} parent=55 // pred_check
          %p5376 = pneg %p149
        $region62: #{tpu_custom_call.1} parent=55 // pred_check_branch
          %5378 = sbr.rel (%p5376) target = $region64
        $region63: #{tpu_custom_call.1} parent=55 // pred_region
          %s5379 = sand.u32 %s134, 1
          %s5380 = scalar_lea.sflag [#allocation4], %s5379
          %s5381 = sand.u32 %s134, 1
          %s5382 = scalar_lea.vmem [#allocation3], %s5381
          %5383 = dma.done %s5380, 16
        $region64: #{tpu_custom_call.1} parent=55 // pred_fallthru
          _
        // Predicated region
        $region65: #{tpu_custom_call.1} parent=55 // pred_check
          %p5384 = pneg %p175
        $region66: #{tpu_custom_call.1} parent=55 // pred_check_branch
          %5386 = sbr.rel (%p5384) target = $region68
        $region67: #{tpu_custom_call.1} parent=55 // pred_region
          %s5387 = sand.u32 %s160, 1
          %s5388 = scalar_lea.sflag [#allocation6], %s5387
          %s5389 = sand.u32 %s160, 1
          %s5390 = scalar_lea.vmem [#allocation5], %s5389
          %5391 = dma.done %s5388, 16
        $region68: #{tpu_custom_call.1} parent=55 // pred_fallthru
          _
      $region56: #{tpu_custom_call.1} parent=5 // pred_fallthru
        _
    $region6: #{tpu_custom_call.1} parent=1 // loop_footer
      %s21 = sadd.s32 1, %s17
    $region7: #{tpu_custom_call.1} parent=1 // loop_footer_branch
      %16 = sbr.rel target = $region3
    $region8: #{tpu_custom_call.1} parent=1 // loop_exit
      _
    %5392 = vsyncpa [#allocation4], 1
    %s5393 = scalar_lea.sflag [#allocation4], 1
    %5394 = vsyncpa %s5393, 1
    %5395 = vsyncpa [#allocation6], 1
    %s5396 = scalar_lea.sflag [#allocation6], 1
    %5397 = vsyncpa %s5396, 1

</llo_original>
